<compile_context>
chip_gen: v7x
topology: tpu7x:2x2x1
jax: 0.10.0
libtpu: 0.0.40
codegen_flags: <defaults>
</compile_context>

<pallas_src>
import jax
import jax.numpy as jnp
from jax.experimental import pallas as pl
from jax.experimental.pallas import tpu as pltpu

# ---------------- config (small synthetic CLIP ViT-B/32 analogue) ----------------
IMG = 32                       # image H = W
PATCH = 8                      # patch size -> 4x4 = 16 patches
CHANS = 3
N_PATCH = (IMG // PATCH) ** 2  # 16
SEQ = N_PATCH + 1              # 17 tokens (CLS + patches)
EMBED = 32                     # transformer width
HEADS = 4
DH = EMBED // HEADS            # 8
LAYERS = 2
MLP = 4 * EMBED                # 128 (lane-dense fc1 output)
CLIP_DIM = 16                  # visual-projection ("CLIP feature") dim
HIDDEN = 32                    # classifier hidden_dim
NUM_CLASSES = 5
OUT_PAD = 128                  # pad classifier output to a lane-dense width
CPP = CHANS * PATCH * PATCH    # 192

BF16 = jnp.bfloat16
F32 = jnp.float32
LN_EPS = 1e-5


# ----------------------------------------------------------------------------
# Fused per-image forward kernel (one grid step == one image, all VMEM-resident)
# ----------------------------------------------------------------------------
def _fused_forward_kernel(
    patches_ref, tok_bias_ref,
    patch_w_ref, pre_g_ref, pre_b_ref,
    wqkv_ref, bqkv_ref, wo_ref, bo_ref,
    ln1_g_ref, ln1_b_ref, ln2_g_ref, ln2_b_ref,
    wfc1_ref, bfc1_ref, wfc2_ref, bfc2_ref,
    post_g_ref, post_b_ref, proj_w_ref,
    cw1_ref, cb1_ref, cw2_ref, cb2_ref, cw3_ref, cb3_ref,
    out_ref,
):
    def ln(x, g, b):                       # LayerNorm stats in f32 (VPU), weights bf16
        mu = jnp.mean(x, axis=-1, keepdims=True)
        var = jnp.mean((x - mu) ** 2, axis=-1, keepdims=True)
        y = (x - mu) * jax.lax.rsqrt(var + LN_EPS)
        return y * g.astype(F32) + b.astype(F32)

    # ---- patch embedding (conv == per-patch matmul). CLS row of `patches`
    #      is zero; tok_bias carries pos_emb (+ cls_emb on the CLS row). ----
    tok = jnp.dot(patches_ref[...], patch_w_ref[...], preferred_element_type=F32)
    tok = tok + tok_bias_ref[...].astype(F32)
    tok = ln(tok, pre_g_ref[...], pre_b_ref[...])            # CLIP pre_layernorm

    for l in range(LAYERS):                                   # static unroll (toy depth)
        # ---- self-attention block (pre-norm): fused LN + single fused QKV ----
        h = ln(tok, ln1_g_ref[l], ln1_b_ref[l]).astype(BF16)
        # wqkv packed as [Q | K | V] along lanes; Q pre-scaled by 1/sqrt(DH).
        qkv = (jnp.dot(h, wqkv_ref[l], preferred_element_type=F32)
               + bqkv_ref[l].astype(F32))                     # (SEQ, 3*EMBED)
        heads_out = []
        for hd in range(HEADS):
            q = qkv[:, hd * DH:(hd + 1) * DH].astype(BF16)
            k = qkv[:, EMBED + hd * DH:EMBED + (hd + 1) * DH].astype(BF16)
            v = qkv[:, 2 * EMBED + hd * DH:2 * EMBED + (hd + 1) * DH].astype(BF16)
            s = jax.lax.dot_general(q, k, (((1,), (1,)), ((), ())),
                                    preferred_element_type=F32)   # (SEQ, SEQ)
            m = jnp.max(s, axis=-1, keepdims=True)
            p = jnp.exp(s - m)
            p = p * pl.reciprocal(jnp.sum(p, axis=-1, keepdims=True), approx=True)
            heads_out.append(jnp.dot(p.astype(BF16), v, preferred_element_type=F32))
        # lane-concatenate all heads, then a single fused output projection
        o_cat = jnp.concatenate(heads_out, axis=-1).astype(BF16)   # (SEQ, EMBED)
        tok = tok + (jnp.dot(o_cat, wo_ref[l], preferred_element_type=F32)
                     + bo_ref[l].astype(F32))                      # residual epilogue

        # ---- MLP block (pre-norm): LN + fc1 + quick-GELU + fc2 + residual ----
        h = ln(tok, ln2_g_ref[l], ln2_b_ref[l]).astype(BF16)
        a = jnp.dot(h, wfc1_ref[l], preferred_element_type=F32) + bfc1_ref[l].astype(F32)
        a = a * jax.nn.sigmoid(1.702 * a)                          # quick_gelu (EUP), f32
        tok = (tok
               + jnp.dot(a.astype(BF16), wfc2_ref[l], preferred_element_type=F32)
               + bfc2_ref[l].astype(F32))

    # ---- pooled CLS (static slice) -> post-LN -> visual projection ----
    pooled = ln(tok[0:1, :], post_g_ref[...], post_b_ref[...])
    feats = jnp.dot(pooled.astype(BF16), proj_w_ref[...], preferred_element_type=F32)

    # ---- classifier head (f32): Linear-ReLU-(Dropout)-Linear-ReLU-(Dropout)-Linear ----
    h1 = jnp.maximum(jnp.dot(feats, cw1_ref[...], preferred_element_type=F32)
                     + cb1_ref[...], 0.0)
    h2 = jnp.maximum(jnp.dot(h1, cw2_ref[...], preferred_element_type=F32)
                     + cb2_ref[...], 0.0)
    out_ref[...] = jnp.dot(h2, cw3_ref[...], preferred_element_type=F32) + cb3_ref[...]


# ----------------------------------------------------------------------------
# Parameters (synthetic, deterministic)
# ----------------------------------------------------------------------------
def init_params(key):
    ks = iter(jax.random.split(key, 32))
    rndf = lambda shape: 0.02 * jax.random.normal(next(ks), shape, F32)
    rnd = lambda shape, dt: rndf(shape).astype(dt)

    # QKV packed as [Q | K | V] along the last axis (head-major within each block);
    # the 1/sqrt(DH) softmax scale is folded into the Q weights (and would be
    # folded into the Q bias too when loading real CLIP weights).
    q_scale = 1.0 / (DH ** 0.5)
    wq = rndf((LAYERS, EMBED, EMBED)) * q_scale
    wk = rndf((LAYERS, EMBED, EMBED))
    wv = rndf((LAYERS, EMBED, EMBED))
    wqkv = jnp.concatenate([wq, wk, wv], axis=-1).astype(BF16)      # (L, E, 3E)
    bqkv = jnp.zeros((LAYERS, 1, 3 * EMBED), BF16)

    return {
        # frozen CLIP-style vision backbone (bf16)
        "patch_w": rnd((CPP, EMBED), BF16),            # patch conv (bias-free, as in CLIP)
        "cls_emb": rnd((EMBED,), BF16),
        "pos_emb": rnd((SEQ, EMBED), BF16),
        "pre_g": jnp.ones((1, EMBED), BF16), "pre_b": jnp.zeros((1, EMBED), BF16),
        "wqkv": wqkv, "bqkv": bqkv,
        "wo": rnd((LAYERS, EMBED, EMBED), BF16),       # rows ordered head-major
        "bo": jnp.zeros((LAYERS, 1, EMBED), BF16),
        "ln1_g": jnp.ones((LAYERS, 1, EMBED), BF16), "ln1_b": jnp.zeros((LAYERS, 1, EMBED), BF16),
        "ln2_g": jnp.ones((LAYERS, 1, EMBED), BF16), "ln2_b": jnp.zeros((LAYERS, 1, EMBED), BF16),
        "wfc1": rnd((LAYERS, EMBED, MLP), BF16), "bfc1": jnp.zeros((LAYERS, 1, MLP), BF16),
        "wfc2": rnd((LAYERS, MLP, EMBED), BF16), "bfc2": jnp.zeros((LAYERS, 1, EMBED), BF16),
        "post_g": jnp.ones((1, EMBED), BF16), "post_b": jnp.zeros((1, EMBED), BF16),
        "proj_w": rnd((EMBED, CLIP_DIM), BF16),        # visual_projection (no bias)
        # trainable classifier head (f32)
        "cls_w1": rnd((CLIP_DIM, HIDDEN), F32), "cls_b1": jnp.zeros((1, HIDDEN), F32),
        "cls_w2": rnd((HIDDEN, HIDDEN // 2), F32), "cls_b2": jnp.zeros((1, HIDDEN // 2), F32),
        "cls_w3": rnd((HIDDEN // 2, NUM_CLASSES), F32), "cls_b3": jnp.zeros((1, NUM_CLASSES), F32),
    }


def _extract_patches(x):
    """NCHW image -> (B, num_patches, C*P*P) row-major patch vectors."""
    B, C, H, W = x.shape
    hp, wp = H // PATCH, W // PATCH
    xp = x.reshape(B, C, hp, PATCH, wp, PATCH)
    xp = xp.transpose(0, 2, 4, 1, 3, 5)                 # B, hp, wp, C, P, P
    return xp.reshape(B, hp * wp, CPP)


def traffic_light_classifier_forward(x, p):
    """TrafficLightCLIPClassifier.forward: frozen CLIP features -> f32 MLP head."""
    B = x.shape[0]

    # Plain-JAX glue (cheap / constant-foldable): patch extraction, CLS/pos
    # bias table, classifier-head lane padding.
    patches = _extract_patches(x)
    patches = jnp.concatenate([jnp.zeros((B, 1, CPP), x.dtype), patches], axis=1)
    patches = patches.astype(BF16)                       # (B, SEQ, CPP); CLS row zero

    tok_bias = p["pos_emb"].at[0].add(p["cls_emb"]).astype(BF16)          # (SEQ, E)

    w3 = jnp.zeros((HIDDEN // 2, OUT_PAD), F32).at[:, :NUM_CLASSES].set(p["cls_w3"])
    b3 = jnp.zeros((1, OUT_PAD), F32).at[:, :NUM_CLASSES].set(p["cls_b3"])

    weights = (
        p["patch_w"], p["pre_g"], p["pre_b"],
        p["wqkv"], p["bqkv"], p["wo"], p["bo"],
        p["ln1_g"], p["ln1_b"], p["ln2_g"], p["ln2_b"],
        p["wfc1"], p["bfc1"], p["wfc2"], p["bfc2"],
        p["post_g"], p["post_b"], p["proj_w"],
        p["cls_w1"], p["cls_b1"], p["cls_w2"], p["cls_b2"], w3, b3,
    )

    def full_spec(arr):            # whole-array block, same block every grid step
        return pl.BlockSpec(arr.shape, lambda b, _n=arr.ndim: (0,) * _n)

    in_specs = [
        pl.BlockSpec((None, SEQ, CPP), lambda b: (b, 0, 0)),     # per-image patches
        pl.BlockSpec((SEQ, EMBED), lambda b: (0, 0)),            # shared CLS/pos bias
    ] + [full_spec(w) for w in weights]

    out = pl.pallas_call(
        _fused_forward_kernel,
        grid=(B,),
        in_specs=in_specs,
        out_specs=pl.BlockSpec((None, 1, OUT_PAD), lambda b: (b, 0, 0)),
        out_shape=jax.ShapeDtypeStruct((B, 1, OUT_PAD), F32),
        compiler_params=pltpu.CompilerParams(
            dimension_semantics=("parallel",)),                  # megacore on v7x
    )(patches, tok_bias, *weights)

    return out[:, 0, :NUM_CLASSES]                               # (B, NUM_CLASSES) f32


if __name__ == "__main__":
    key = jax.random.PRNGKey(0)
    kp, kx = jax.random.split(key)
    params = init_params(kp)

    # NCHW input, batch=2, 3x32x32 (small stand-in for CLIP's 3x224x224)
    x = jax.random.normal(kx, (2, CHANS, IMG, IMG), dtype=F32)

    logits = jax.jit(traffic_light_classifier_forward)(x, params)
    logits = jax.block_until_ready(logits)

    assert logits.shape == (2, NUM_CLASSES)
    assert logits.dtype == jnp.float32
    assert bool(jnp.all(jnp.isfinite(logits)))
    print("KERNEL_OK")
</pallas_src>

<mosaic_0001>
module attributes {stable_mosaic.version = 11 : i64} {
  func.func @_fused_forward_kernel(%arg0: i32, %arg1: memref<1x17x192xbf16, #tpu.memory_space<vmem>>, %arg2: memref<17x32xbf16, #tpu.memory_space<vmem>>, %arg3: memref<192x32xbf16, #tpu.memory_space<vmem>>, %arg4: memref<1x32xbf16, #tpu.memory_space<vmem>>, %arg5: memref<1x32xbf16, #tpu.memory_space<vmem>>, %arg6: memref<2x32x96xbf16, #tpu.memory_space<vmem>>, %arg7: memref<2x1x96xbf16, #tpu.memory_space<vmem>>, %arg8: memref<2x32x32xbf16, #tpu.memory_space<vmem>>, %arg9: memref<2x1x32xbf16, #tpu.memory_space<vmem>>, %arg10: memref<2x1x32xbf16, #tpu.memory_space<vmem>>, %arg11: memref<2x1x32xbf16, #tpu.memory_space<vmem>>, %arg12: memref<2x1x32xbf16, #tpu.memory_space<vmem>>, %arg13: memref<2x1x32xbf16, #tpu.memory_space<vmem>>, %arg14: memref<2x32x128xbf16, #tpu.memory_space<vmem>>, %arg15: memref<2x1x128xbf16, #tpu.memory_space<vmem>>, %arg16: memref<2x128x32xbf16, #tpu.memory_space<vmem>>, %arg17: memref<2x1x32xbf16, #tpu.memory_space<vmem>>, %arg18: memref<1x32xbf16, #tpu.memory_space<vmem>>, %arg19: memref<1x32xbf16, #tpu.memory_space<vmem>>, %arg20: memref<32x16xbf16, #tpu.memory_space<vmem>>, %arg21: memref<16x32xf32, #tpu.memory_space<vmem>>, %arg22: memref<1x32xf32, #tpu.memory_space<vmem>>, %arg23: memref<32x16xf32, #tpu.memory_space<vmem>>, %arg24: memref<1x16xf32, #tpu.memory_space<vmem>>, %arg25: memref<16x128xf32, #tpu.memory_space<vmem>>, %arg26: memref<1x128xf32, #tpu.memory_space<vmem>>, %arg27: memref<1x1x128xf32, #tpu.memory_space<vmem>>) attributes {dimension_semantics = [#tpu.dimension_semantics<parallel>], iteration_bounds = array<i64: 2>, scalar_prefetch = 0 : i64, scratch_operands = 0 : i64, tpu.core_type = #tpu.core_type<tc>, window_params = [{transform_indices = @transform_0, window_bounds = array<i64: 1, 17, 192>}, {pipeline_mode = #tpu.pipeline_mode<synchronous>, transform_indices = @transform_1, window_bounds = array<i64: 17, 32>}, {pipeline_mode = #tpu.pipeline_mode<synchronous>, transform_indices = @transform_2, window_bounds = array<i64: 192, 32>}, {pipeline_mode = #tpu.pipeline_mode<synchronous>, transform_indices = @transform_3, window_bounds = array<i64: 1, 32>}, {pipeline_mode = #tpu.pipeline_mode<synchronous>, transform_indices = @transform_4, window_bounds = array<i64: 1, 32>}, {pipeline_mode = #tpu.pipeline_mode<synchronous>, transform_indices = @transform_5, window_bounds = array<i64: 2, 32, 96>}, {pipeline_mode = #tpu.pipeline_mode<synchronous>, transform_indices = @transform_6, window_bounds = array<i64: 2, 1, 96>}, {pipeline_mode = #tpu.pipeline_mode<synchronous>, transform_indices = @transform_7, window_bounds = array<i64: 2, 32, 32>}, {pipeline_mode = #tpu.pipeline_mode<synchronous>, transform_indices = @transform_8, window_bounds = array<i64: 2, 1, 32>}, {pipeline_mode = #tpu.pipeline_mode<synchronous>, transform_indices = @transform_9, window_bounds = array<i64: 2, 1, 32>}, {pipeline_mode = #tpu.pipeline_mode<synchronous>, transform_indices = @transform_10, window_bounds = array<i64: 2, 1, 32>}, {pipeline_mode = #tpu.pipeline_mode<synchronous>, transform_indices = @transform_11, window_bounds = array<i64: 2, 1, 32>}, {pipeline_mode = #tpu.pipeline_mode<synchronous>, transform_indices = @transform_12, window_bounds = array<i64: 2, 1, 32>}, {pipeline_mode = #tpu.pipeline_mode<synchronous>, transform_indices = @transform_13, window_bounds = array<i64: 2, 32, 128>}, {pipeline_mode = #tpu.pipeline_mode<synchronous>, transform_indices = @transform_14, window_bounds = array<i64: 2, 1, 128>}, {pipeline_mode = #tpu.pipeline_mode<synchronous>, transform_indices = @transform_15, window_bounds = array<i64: 2, 128, 32>}, {pipeline_mode = #tpu.pipeline_mode<synchronous>, transform_indices = @transform_16, window_bounds = array<i64: 2, 1, 32>}, {pipeline_mode = #tpu.pipeline_mode<synchronous>, transform_indices = @transform_17, window_bounds = array<i64: 1, 32>}, {pipeline_mode = #tpu.pipeline_mode<synchronous>, transform_indices = @transform_18, window_bounds = array<i64: 1, 32>}, {pipeline_mode = #tpu.pipeline_mode<synchronous>, transform_indices = @transform_19, window_bounds = array<i64: 32, 16>}, {pipeline_mode = #tpu.pipeline_mode<synchronous>, transform_indices = @transform_20, window_bounds = array<i64: 16, 32>}, {pipeline_mode = #tpu.pipeline_mode<synchronous>, transform_indices = @transform_21, window_bounds = array<i64: 1, 32>}, {pipeline_mode = #tpu.pipeline_mode<synchronous>, transform_indices = @transform_22, window_bounds = array<i64: 32, 16>}, {pipeline_mode = #tpu.pipeline_mode<synchronous>, transform_indices = @transform_23, window_bounds = array<i64: 1, 16>}, {pipeline_mode = #tpu.pipeline_mode<synchronous>, transform_indices = @transform_24, window_bounds = array<i64: 16, 128>}, {pipeline_mode = #tpu.pipeline_mode<synchronous>, transform_indices = @transform_25, window_bounds = array<i64: 1, 128>}, {transform_indices = @transform_26, window_bounds = array<i64: 1, 1, 128>}]} {
    %c0 = arith.constant 0 : index
    %c0_0 = arith.constant 0 : index
    %c0_1 = arith.constant 0 : index
    %0 = vector.load %arg1[%c0, %c0_0, %c0_1] : memref<1x17x192xbf16, #tpu.memory_space<vmem>>, vector<1x17x192xbf16>
    %1 = vector.shape_cast %0 : vector<1x17x192xbf16> to vector<17x192xbf16>
    %c0_2 = arith.constant 0 : index
    %c0_3 = arith.constant 0 : index
    %2 = vector.load %arg3[%c0_2, %c0_3] : memref<192x32xbf16, #tpu.memory_space<vmem>>, vector<192x32xbf16>
    %cst = arith.constant dense<0.000000e+00> : vector<17x32xf32>
    %3 = tpu.matmul %1, %2, %cst {dimension_numbers = #tpu.dot_dimension_numbers<[1], [0], [0], [1], [0, 0, 1, 1], [], []>} : vector<17x192xbf16>, vector<192x32xbf16>, vector<17x32xf32> -> vector<17x32xf32>
    %c0_4 = arith.constant 0 : index
    %c0_5 = arith.constant 0 : index
    %4 = vector.load %arg2[%c0_4, %c0_5] : memref<17x32xbf16, #tpu.memory_space<vmem>>, vector<17x32xbf16>
    %5 = arith.extf %4 : vector<17x32xbf16> to vector<17x32xf32>
    %6 = arith.addf %3, %5 : vector<17x32xf32>
    %c0_6 = arith.constant 0 : index
    %c0_7 = arith.constant 0 : index
    %7 = vector.load %arg4[%c0_6, %c0_7] : memref<1x32xbf16, #tpu.memory_space<vmem>>, vector<1x32xbf16>
    %c0_8 = arith.constant 0 : index
    %c0_9 = arith.constant 0 : index
    %8 = vector.load %arg5[%c0_8, %c0_9] : memref<1x32xbf16, #tpu.memory_space<vmem>>, vector<1x32xbf16>
    %cst_10 = arith.constant dense<0.000000e+00> : vector<17xf32>
    %9 = vector.multi_reduction <add>, %6, %cst_10 [1] : vector<17x32xf32> to vector<17xf32>
    %10 = vector.shape_cast %9 : vector<17xf32> to vector<17x1xf32>
    %cst_11 = arith.constant 3.200000e+01 : f32
    %11 = vector.broadcast %cst_11 : f32 to vector<17x1xf32>
    %12 = arith.divf %10, %11 : vector<17x1xf32>
    %13 = vector.broadcast %12 : vector<17x1xf32> to vector<17x32xf32>
    %14 = arith.subf %6, %13 : vector<17x32xf32>
    %15 = arith.mulf %14, %14 : vector<17x32xf32>
    %cst_12 = arith.constant dense<0.000000e+00> : vector<17xf32>
    %16 = vector.multi_reduction <add>, %15, %cst_12 [1] : vector<17x32xf32> to vector<17xf32>
    %17 = vector.shape_cast %16 : vector<17xf32> to vector<17x1xf32>
    %cst_13 = arith.constant 3.200000e+01 : f32
    %18 = vector.broadcast %cst_13 : f32 to vector<17x1xf32>
    %19 = arith.divf %17, %18 : vector<17x1xf32>
    %20 = vector.broadcast %12 : vector<17x1xf32> to vector<17x32xf32>
    %21 = arith.subf %6, %20 : vector<17x32xf32>
    %cst_14 = arith.constant 9.99999974E-6 : f32
    %22 = vector.broadcast %cst_14 : f32 to vector<17x1xf32>
    %23 = arith.addf %19, %22 : vector<17x1xf32>
    %24 = math.rsqrt %23 : vector<17x1xf32>
    %25 = vector.broadcast %24 : vector<17x1xf32> to vector<17x32xf32>
    %26 = arith.mulf %21, %25 : vector<17x32xf32>
    %27 = arith.extf %7 : vector<1x32xbf16> to vector<1x32xf32>
    %28 = vector.broadcast %27 : vector<1x32xf32> to vector<17x32xf32>
    %29 = arith.mulf %26, %28 : vector<17x32xf32>
    %30 = arith.extf %8 : vector<1x32xbf16> to vector<1x32xf32>
    %31 = vector.broadcast %30 : vector<1x32xf32> to vector<17x32xf32>
    %32 = arith.addf %29, %31 : vector<17x32xf32>
    %c0_15 = arith.constant 0 : index
    %c0_16 = arith.constant 0 : index
    %c0_17 = arith.constant 0 : index
    %33 = vector.load %arg10[%c0_15, %c0_16, %c0_17] : memref<2x1x32xbf16, #tpu.memory_space<vmem>>, vector<1x1x32xbf16>
    %34 = vector.shape_cast %33 : vector<1x1x32xbf16> to vector<1x32xbf16>
    %c0_18 = arith.constant 0 : index
    %c0_19 = arith.constant 0 : index
    %c0_20 = arith.constant 0 : index
    %35 = vector.load %arg11[%c0_18, %c0_19, %c0_20] : memref<2x1x32xbf16, #tpu.memory_space<vmem>>, vector<1x1x32xbf16>
    %36 = vector.shape_cast %35 : vector<1x1x32xbf16> to vector<1x32xbf16>
    %cst_21 = arith.constant dense<0.000000e+00> : vector<17xf32>
    %37 = vector.multi_reduction <add>, %32, %cst_21 [1] : vector<17x32xf32> to vector<17xf32>
    %38 = vector.shape_cast %37 : vector<17xf32> to vector<17x1xf32>
    %cst_22 = arith.constant 3.200000e+01 : f32
    %39 = vector.broadcast %cst_22 : f32 to vector<17x1xf32>
    %40 = arith.divf %38, %39 : vector<17x1xf32>
    %41 = vector.broadcast %40 : vector<17x1xf32> to vector<17x32xf32>
    %42 = arith.subf %32, %41 : vector<17x32xf32>
    %43 = arith.mulf %42, %42 : vector<17x32xf32>
    %cst_23 = arith.constant dense<0.000000e+00> : vector<17xf32>
    %44 = vector.multi_reduction <add>, %43, %cst_23 [1] : vector<17x32xf32> to vector<17xf32>
    %45 = vector.shape_cast %44 : vector<17xf32> to vector<17x1xf32>
    %cst_24 = arith.constant 3.200000e+01 : f32
    %46 = vector.broadcast %cst_24 : f32 to vector<17x1xf32>
    %47 = arith.divf %45, %46 : vector<17x1xf32>
    %48 = vector.broadcast %40 : vector<17x1xf32> to vector<17x32xf32>
    %49 = arith.subf %32, %48 : vector<17x32xf32>
    %cst_25 = arith.constant 9.99999974E-6 : f32
    %50 = vector.broadcast %cst_25 : f32 to vector<17x1xf32>
    %51 = arith.addf %47, %50 : vector<17x1xf32>
    %52 = math.rsqrt %51 : vector<17x1xf32>
    %53 = vector.broadcast %52 : vector<17x1xf32> to vector<17x32xf32>
    %54 = arith.mulf %49, %53 : vector<17x32xf32>
    %55 = arith.extf %34 : vector<1x32xbf16> to vector<1x32xf32>
    %56 = vector.broadcast %55 : vector<1x32xf32> to vector<17x32xf32>
    %57 = arith.mulf %54, %56 : vector<17x32xf32>
    %58 = arith.extf %36 : vector<1x32xbf16> to vector<1x32xf32>
    %59 = vector.broadcast %58 : vector<1x32xf32> to vector<17x32xf32>
    %60 = arith.addf %57, %59 : vector<17x32xf32>
    %61 = arith.truncf %60 : vector<17x32xf32> to vector<17x32xbf16>
    %c0_26 = arith.constant 0 : index
    %c0_27 = arith.constant 0 : index
    %c0_28 = arith.constant 0 : index
    %62 = vector.load %arg6[%c0_26, %c0_27, %c0_28] : memref<2x32x96xbf16, #tpu.memory_space<vmem>>, vector<1x32x96xbf16>
    %63 = vector.shape_cast %62 : vector<1x32x96xbf16> to vector<32x96xbf16>
    %cst_29 = arith.constant dense<0.000000e+00> : vector<17x96xf32>
    %64 = tpu.matmul %61, %63, %cst_29 {dimension_numbers = #tpu.dot_dimension_numbers<[1], [0], [0], [1], [0, 0, 1, 1], [], []>} : vector<17x32xbf16>, vector<32x96xbf16>, vector<17x96xf32> -> vector<17x96xf32>
    %c0_30 = arith.constant 0 : index
    %c0_31 = arith.constant 0 : index
    %c0_32 = arith.constant 0 : index
    %65 = vector.load %arg7[%c0_30, %c0_31, %c0_32] : memref<2x1x96xbf16, #tpu.memory_space<vmem>>, vector<1x1x96xbf16>
    %66 = vector.shape_cast %65 : vector<1x1x96xbf16> to vector<1x96xbf16>
    %67 = arith.extf %66 : vector<1x96xbf16> to vector<1x96xf32>
    %68 = vector.broadcast %67 : vector<1x96xf32> to vector<17x96xf32>
    %69 = arith.addf %64, %68 : vector<17x96xf32>
    %70 = vector.extract_strided_slice %69 {offsets = [0, 0], sizes = [17, 8], strides = [1, 1]} : vector<17x96xf32> to vector<17x8xf32>
    %71 = arith.truncf %70 : vector<17x8xf32> to vector<17x8xbf16>
    %72 = vector.extract_strided_slice %69 {offsets = [0, 32], sizes = [17, 8], strides = [1, 1]} : vector<17x96xf32> to vector<17x8xf32>
    %73 = arith.truncf %72 : vector<17x8xf32> to vector<17x8xbf16>
    %74 = vector.extract_strided_slice %69 {offsets = [0, 64], sizes = [17, 8], strides = [1, 1]} : vector<17x96xf32> to vector<17x8xf32>
    %75 = arith.truncf %74 : vector<17x8xf32> to vector<17x8xbf16>
    %cst_33 = arith.constant dense<0.000000e+00> : vector<17x17xf32>
    %76 = tpu.matmul %71, %73, %cst_33 {dimension_numbers = #tpu.dot_dimension_numbers<[1], [1], [0], [0], [0, 0, 1, 0], [], []>} : vector<17x8xbf16>, vector<17x8xbf16>, vector<17x17xf32> -> vector<17x17xf32>
    %cst_34 = arith.constant dense<0xFF800000> : vector<17xf32>
    %77 = vector.multi_reduction <maximumf>, %76, %cst_34 [1] : vector<17x17xf32> to vector<17xf32>
    %78 = vector.shape_cast %77 : vector<17xf32> to vector<17x1xf32>
    %79 = vector.broadcast %78 : vector<17x1xf32> to vector<17x17xf32>
    %80 = arith.subf %76, %79 : vector<17x17xf32>
    %81 = math.exp %80 : vector<17x17xf32>
    %cst_35 = arith.constant dense<0.000000e+00> : vector<17xf32>
    %82 = vector.multi_reduction <add>, %81, %cst_35 [1] : vector<17x17xf32> to vector<17xf32>
    %83 = vector.shape_cast %82 : vector<17xf32> to vector<17x1xf32>
    %84 = tpu.reciprocal %83 {approx = true} : vector<17x1xf32> -> vector<17x1xf32>
    %85 = vector.broadcast %84 : vector<17x1xf32> to vector<17x17xf32>
    %86 = arith.mulf %81, %85 : vector<17x17xf32>
    %87 = arith.truncf %86 : vector<17x17xf32> to vector<17x17xbf16>
    %cst_36 = arith.constant dense<0.000000e+00> : vector<17x8xf32>
    %88 = tpu.matmul %87, %75, %cst_36 {dimension_numbers = #tpu.dot_dimension_numbers<[1], [0], [0], [1], [0, 0, 1, 1], [], []>} : vector<17x17xbf16>, vector<17x8xbf16>, vector<17x8xf32> -> vector<17x8xf32>
    %89 = vector.extract_strided_slice %69 {offsets = [0, 8], sizes = [17, 8], strides = [1, 1]} : vector<17x96xf32> to vector<17x8xf32>
    %90 = arith.truncf %89 : vector<17x8xf32> to vector<17x8xbf16>
    %91 = vector.extract_strided_slice %69 {offsets = [0, 40], sizes = [17, 8], strides = [1, 1]} : vector<17x96xf32> to vector<17x8xf32>
    %92 = arith.truncf %91 : vector<17x8xf32> to vector<17x8xbf16>
    %93 = vector.extract_strided_slice %69 {offsets = [0, 72], sizes = [17, 8], strides = [1, 1]} : vector<17x96xf32> to vector<17x8xf32>
    %94 = arith.truncf %93 : vector<17x8xf32> to vector<17x8xbf16>
    %cst_37 = arith.constant dense<0.000000e+00> : vector<17x17xf32>
    %95 = tpu.matmul %90, %92, %cst_37 {dimension_numbers = #tpu.dot_dimension_numbers<[1], [1], [0], [0], [0, 0, 1, 0], [], []>} : vector<17x8xbf16>, vector<17x8xbf16>, vector<17x17xf32> -> vector<17x17xf32>
    %cst_38 = arith.constant dense<0xFF800000> : vector<17xf32>
    %96 = vector.multi_reduction <maximumf>, %95, %cst_38 [1] : vector<17x17xf32> to vector<17xf32>
    %97 = vector.shape_cast %96 : vector<17xf32> to vector<17x1xf32>
    %98 = vector.broadcast %97 : vector<17x1xf32> to vector<17x17xf32>
    %99 = arith.subf %95, %98 : vector<17x17xf32>
    %100 = math.exp %99 : vector<17x17xf32>
    %cst_39 = arith.constant dense<0.000000e+00> : vector<17xf32>
    %101 = vector.multi_reduction <add>, %100, %cst_39 [1] : vector<17x17xf32> to vector<17xf32>
    %102 = vector.shape_cast %101 : vector<17xf32> to vector<17x1xf32>
    %103 = tpu.reciprocal %102 {approx = true} : vector<17x1xf32> -> vector<17x1xf32>
    %104 = vector.broadcast %103 : vector<17x1xf32> to vector<17x17xf32>
    %105 = arith.mulf %100, %104 : vector<17x17xf32>
    %106 = arith.truncf %105 : vector<17x17xf32> to vector<17x17xbf16>
    %cst_40 = arith.constant dense<0.000000e+00> : vector<17x8xf32>
    %107 = tpu.matmul %106, %94, %cst_40 {dimension_numbers = #tpu.dot_dimension_numbers<[1], [0], [0], [1], [0, 0, 1, 1], [], []>} : vector<17x17xbf16>, vector<17x8xbf16>, vector<17x8xf32> -> vector<17x8xf32>
    %108 = vector.extract_strided_slice %69 {offsets = [0, 16], sizes = [17, 8], strides = [1, 1]} : vector<17x96xf32> to vector<17x8xf32>
    %109 = arith.truncf %108 : vector<17x8xf32> to vector<17x8xbf16>
    %110 = vector.extract_strided_slice %69 {offsets = [0, 48], sizes = [17, 8], strides = [1, 1]} : vector<17x96xf32> to vector<17x8xf32>
    %111 = arith.truncf %110 : vector<17x8xf32> to vector<17x8xbf16>
    %112 = vector.extract_strided_slice %69 {offsets = [0, 80], sizes = [17, 8], strides = [1, 1]} : vector<17x96xf32> to vector<17x8xf32>
    %113 = arith.truncf %112 : vector<17x8xf32> to vector<17x8xbf16>
    %cst_41 = arith.constant dense<0.000000e+00> : vector<17x17xf32>
    %114 = tpu.matmul %109, %111, %cst_41 {dimension_numbers = #tpu.dot_dimension_numbers<[1], [1], [0], [0], [0, 0, 1, 0], [], []>} : vector<17x8xbf16>, vector<17x8xbf16>, vector<17x17xf32> -> vector<17x17xf32>
    %cst_42 = arith.constant dense<0xFF800000> : vector<17xf32>
    %115 = vector.multi_reduction <maximumf>, %114, %cst_42 [1] : vector<17x17xf32> to vector<17xf32>
    %116 = vector.shape_cast %115 : vector<17xf32> to vector<17x1xf32>
    %117 = vector.broadcast %116 : vector<17x1xf32> to vector<17x17xf32>
    %118 = arith.subf %114, %117 : vector<17x17xf32>
    %119 = math.exp %118 : vector<17x17xf32>
    %cst_43 = arith.constant dense<0.000000e+00> : vector<17xf32>
    %120 = vector.multi_reduction <add>, %119, %cst_43 [1] : vector<17x17xf32> to vector<17xf32>
    %121 = vector.shape_cast %120 : vector<17xf32> to vector<17x1xf32>
    %122 = tpu.reciprocal %121 {approx = true} : vector<17x1xf32> -> vector<17x1xf32>
    %123 = vector.broadcast %122 : vector<17x1xf32> to vector<17x17xf32>
    %124 = arith.mulf %119, %123 : vector<17x17xf32>
    %125 = arith.truncf %124 : vector<17x17xf32> to vector<17x17xbf16>
    %cst_44 = arith.constant dense<0.000000e+00> : vector<17x8xf32>
    %126 = tpu.matmul %125, %113, %cst_44 {dimension_numbers = #tpu.dot_dimension_numbers<[1], [0], [0], [1], [0, 0, 1, 1], [], []>} : vector<17x17xbf16>, vector<17x8xbf16>, vector<17x8xf32> -> vector<17x8xf32>
    %127 = vector.extract_strided_slice %69 {offsets = [0, 24], sizes = [17, 8], strides = [1, 1]} : vector<17x96xf32> to vector<17x8xf32>
    %128 = arith.truncf %127 : vector<17x8xf32> to vector<17x8xbf16>
    %129 = vector.extract_strided_slice %69 {offsets = [0, 56], sizes = [17, 8], strides = [1, 1]} : vector<17x96xf32> to vector<17x8xf32>
    %130 = arith.truncf %129 : vector<17x8xf32> to vector<17x8xbf16>
    %131 = vector.extract_strided_slice %69 {offsets = [0, 88], sizes = [17, 8], strides = [1, 1]} : vector<17x96xf32> to vector<17x8xf32>
    %132 = arith.truncf %131 : vector<17x8xf32> to vector<17x8xbf16>
    %cst_45 = arith.constant dense<0.000000e+00> : vector<17x17xf32>
    %133 = tpu.matmul %128, %130, %cst_45 {dimension_numbers = #tpu.dot_dimension_numbers<[1], [1], [0], [0], [0, 0, 1, 0], [], []>} : vector<17x8xbf16>, vector<17x8xbf16>, vector<17x17xf32> -> vector<17x17xf32>
    %cst_46 = arith.constant dense<0xFF800000> : vector<17xf32>
    %134 = vector.multi_reduction <maximumf>, %133, %cst_46 [1] : vector<17x17xf32> to vector<17xf32>
    %135 = vector.shape_cast %134 : vector<17xf32> to vector<17x1xf32>
    %136 = vector.broadcast %135 : vector<17x1xf32> to vector<17x17xf32>
    %137 = arith.subf %133, %136 : vector<17x17xf32>
    %138 = math.exp %137 : vector<17x17xf32>
    %cst_47 = arith.constant dense<0.000000e+00> : vector<17xf32>
    %139 = vector.multi_reduction <add>, %138, %cst_47 [1] : vector<17x17xf32> to vector<17xf32>
    %140 = vector.shape_cast %139 : vector<17xf32> to vector<17x1xf32>
    %141 = tpu.reciprocal %140 {approx = true} : vector<17x1xf32> -> vector<17x1xf32>
    %142 = vector.broadcast %141 : vector<17x1xf32> to vector<17x17xf32>
    %143 = arith.mulf %138, %142 : vector<17x17xf32>
    %144 = arith.truncf %143 : vector<17x17xf32> to vector<17x17xbf16>
    %cst_48 = arith.constant dense<0.000000e+00> : vector<17x8xf32>
    %145 = tpu.matmul %144, %132, %cst_48 {dimension_numbers = #tpu.dot_dimension_numbers<[1], [0], [0], [1], [0, 0, 1, 1], [], []>} : vector<17x17xbf16>, vector<17x8xbf16>, vector<17x8xf32> -> vector<17x8xf32>
    %146 = tpu.concatenate %88, %107, %126, %145 in 1 : vector<17x8xf32>, vector<17x8xf32>, vector<17x8xf32>, vector<17x8xf32> -> vector<17x32xf32>
    %147 = arith.truncf %146 : vector<17x32xf32> to vector<17x32xbf16>
    %c0_49 = arith.constant 0 : index
    %c0_50 = arith.constant 0 : index
    %c0_51 = arith.constant 0 : index
    %148 = vector.load %arg8[%c0_49, %c0_50, %c0_51] : memref<2x32x32xbf16, #tpu.memory_space<vmem>>, vector<1x32x32xbf16>
    %149 = vector.shape_cast %148 : vector<1x32x32xbf16> to vector<32x32xbf16>
    %cst_52 = arith.constant dense<0.000000e+00> : vector<17x32xf32>
    %150 = tpu.matmul %147, %149, %cst_52 {dimension_numbers = #tpu.dot_dimension_numbers<[1], [0], [0], [1], [0, 0, 1, 1], [], []>} : vector<17x32xbf16>, vector<32x32xbf16>, vector<17x32xf32> -> vector<17x32xf32>
    %c0_53 = arith.constant 0 : index
    %c0_54 = arith.constant 0 : index
    %c0_55 = arith.constant 0 : index
    %151 = vector.load %arg9[%c0_53, %c0_54, %c0_55] : memref<2x1x32xbf16, #tpu.memory_space<vmem>>, vector<1x1x32xbf16>
    %152 = vector.shape_cast %151 : vector<1x1x32xbf16> to vector<1x32xbf16>
    %153 = arith.extf %152 : vector<1x32xbf16> to vector<1x32xf32>
    %154 = vector.broadcast %153 : vector<1x32xf32> to vector<17x32xf32>
    %155 = arith.addf %150, %154 : vector<17x32xf32>
    %156 = arith.addf %32, %155 : vector<17x32xf32>
    %c0_56 = arith.constant 0 : index
    %c0_57 = arith.constant 0 : index
    %c0_58 = arith.constant 0 : index
    %157 = vector.load %arg12[%c0_56, %c0_57, %c0_58] : memref<2x1x32xbf16, #tpu.memory_space<vmem>>, vector<1x1x32xbf16>
    %158 = vector.shape_cast %157 : vector<1x1x32xbf16> to vector<1x32xbf16>
    %c0_59 = arith.constant 0 : index
    %c0_60 = arith.constant 0 : index
    %c0_61 = arith.constant 0 : index
    %159 = vector.load %arg13[%c0_59, %c0_60, %c0_61] : memref<2x1x32xbf16, #tpu.memory_space<vmem>>, vector<1x1x32xbf16>
    %160 = vector.shape_cast %159 : vector<1x1x32xbf16> to vector<1x32xbf16>
    %cst_62 = arith.constant dense<0.000000e+00> : vector<17xf32>
    %161 = vector.multi_reduction <add>, %156, %cst_62 [1] : vector<17x32xf32> to vector<17xf32>
    %162 = vector.shape_cast %161 : vector<17xf32> to vector<17x1xf32>
    %cst_63 = arith.constant 3.200000e+01 : f32
    %163 = vector.broadcast %cst_63 : f32 to vector<17x1xf32>
    %164 = arith.divf %162, %163 : vector<17x1xf32>
    %165 = vector.broadcast %164 : vector<17x1xf32> to vector<17x32xf32>
    %166 = arith.subf %156, %165 : vector<17x32xf32>
    %167 = arith.mulf %166, %166 : vector<17x32xf32>
    %cst_64 = arith.constant dense<0.000000e+00> : vector<17xf32>
    %168 = vector.multi_reduction <add>, %167, %cst_64 [1] : vector<17x32xf32> to vector<17xf32>
    %169 = vector.shape_cast %168 : vector<17xf32> to vector<17x1xf32>
    %cst_65 = arith.constant 3.200000e+01 : f32
    %170 = vector.broadcast %cst_65 : f32 to vector<17x1xf32>
    %171 = arith.divf %169, %170 : vector<17x1xf32>
    %172 = vector.broadcast %164 : vector<17x1xf32> to vector<17x32xf32>
    %173 = arith.subf %156, %172 : vector<17x32xf32>
    %cst_66 = arith.constant 9.99999974E-6 : f32
    %174 = vector.broadcast %cst_66 : f32 to vector<17x1xf32>
    %175 = arith.addf %171, %174 : vector<17x1xf32>
    %176 = math.rsqrt %175 : vector<17x1xf32>
    %177 = vector.broadcast %176 : vector<17x1xf32> to vector<17x32xf32>
    %178 = arith.mulf %173, %177 : vector<17x32xf32>
    %179 = arith.extf %158 : vector<1x32xbf16> to vector<1x32xf32>
    %180 = vector.broadcast %179 : vector<1x32xf32> to vector<17x32xf32>
    %181 = arith.mulf %178, %180 : vector<17x32xf32>
    %182 = arith.extf %160 : vector<1x32xbf16> to vector<1x32xf32>
    %183 = vector.broadcast %182 : vector<1x32xf32> to vector<17x32xf32>
    %184 = arith.addf %181, %183 : vector<17x32xf32>
    %185 = arith.truncf %184 : vector<17x32xf32> to vector<17x32xbf16>
    %c0_67 = arith.constant 0 : index
    %c0_68 = arith.constant 0 : index
    %c0_69 = arith.constant 0 : index
    %186 = vector.load %arg14[%c0_67, %c0_68, %c0_69] : memref<2x32x128xbf16, #tpu.memory_space<vmem>>, vector<1x32x128xbf16>
    %187 = vector.shape_cast %186 : vector<1x32x128xbf16> to vector<32x128xbf16>
    %cst_70 = arith.constant dense<0.000000e+00> : vector<17x128xf32>
    %188 = tpu.matmul %185, %187, %cst_70 {dimension_numbers = #tpu.dot_dimension_numbers<[1], [0], [0], [1], [0, 0, 1, 1], [], []>} : vector<17x32xbf16>, vector<32x128xbf16>, vector<17x128xf32> -> vector<17x128xf32>
    %c0_71 = arith.constant 0 : index
    %c0_72 = arith.constant 0 : index
    %c0_73 = arith.constant 0 : index
    %189 = vector.load %arg15[%c0_71, %c0_72, %c0_73] : memref<2x1x128xbf16, #tpu.memory_space<vmem>>, vector<1x1x128xbf16>
    %190 = vector.shape_cast %189 : vector<1x1x128xbf16> to vector<1x128xbf16>
    %191 = arith.extf %190 : vector<1x128xbf16> to vector<1x128xf32>
    %192 = vector.broadcast %191 : vector<1x128xf32> to vector<17x128xf32>
    %193 = arith.addf %188, %192 : vector<17x128xf32>
    %cst_74 = arith.constant 1.702000e+00 : f32
    %194 = vector.broadcast %cst_74 : f32 to vector<17x128xf32>
    %195 = arith.mulf %194, %193 : vector<17x128xf32>
    %196 = arith.negf %195 : vector<17x128xf32>
    %197 = math.exp %196 : vector<17x128xf32>
    %cst_75 = arith.constant 1.000000e+00 : f32
    %198 = vector.broadcast %cst_75 : f32 to vector<17x128xf32>
    %199 = arith.addf %198, %197 : vector<17x128xf32>
    %200 = arith.divf %198, %199 : vector<17x128xf32>
    %201 = arith.mulf %193, %200 : vector<17x128xf32>
    %202 = arith.truncf %201 : vector<17x128xf32> to vector<17x128xbf16>
    %c0_76 = arith.constant 0 : index
    %c0_77 = arith.constant 0 : index
    %c0_78 = arith.constant 0 : index
    %203 = vector.load %arg16[%c0_76, %c0_77, %c0_78] : memref<2x128x32xbf16, #tpu.memory_space<vmem>>, vector<1x128x32xbf16>
    %204 = vector.shape_cast %203 : vector<1x128x32xbf16> to vector<128x32xbf16>
    %cst_79 = arith.constant dense<0.000000e+00> : vector<17x32xf32>
    %205 = tpu.matmul %202, %204, %cst_79 {dimension_numbers = #tpu.dot_dimension_numbers<[1], [0], [0], [1], [0, 0, 1, 1], [], []>} : vector<17x128xbf16>, vector<128x32xbf16>, vector<17x32xf32> -> vector<17x32xf32>
    %206 = arith.addf %156, %205 : vector<17x32xf32>
    %c0_80 = arith.constant 0 : index
    %c0_81 = arith.constant 0 : index
    %c0_82 = arith.constant 0 : index
    %207 = vector.load %arg17[%c0_80, %c0_81, %c0_82] : memref<2x1x32xbf16, #tpu.memory_space<vmem>>, vector<1x1x32xbf16>
    %208 = vector.shape_cast %207 : vector<1x1x32xbf16> to vector<1x32xbf16>
    %209 = arith.extf %208 : vector<1x32xbf16> to vector<1x32xf32>
    %210 = vector.broadcast %209 : vector<1x32xf32> to vector<17x32xf32>
    %211 = arith.addf %206, %210 : vector<17x32xf32>
    %c1 = arith.constant 1 : index
    %c0_83 = arith.constant 0 : index
    %c0_84 = arith.constant 0 : index
    %212 = vector.load %arg10[%c1, %c0_83, %c0_84] : memref<2x1x32xbf16, #tpu.memory_space<vmem>>, vector<1x1x32xbf16>
    %213 = vector.shape_cast %212 : vector<1x1x32xbf16> to vector<1x32xbf16>
    %c1_85 = arith.constant 1 : index
    %c0_86 = arith.constant 0 : index
    %c0_87 = arith.constant 0 : index
    %214 = vector.load %arg11[%c1_85, %c0_86, %c0_87] : memref<2x1x32xbf16, #tpu.memory_space<vmem>>, vector<1x1x32xbf16>
    %215 = vector.shape_cast %214 : vector<1x1x32xbf16> to vector<1x32xbf16>
    %cst_88 = arith.constant dense<0.000000e+00> : vector<17xf32>
    %216 = vector.multi_reduction <add>, %211, %cst_88 [1] : vector<17x32xf32> to vector<17xf32>
    %217 = vector.shape_cast %216 : vector<17xf32> to vector<17x1xf32>
    %cst_89 = arith.constant 3.200000e+01 : f32
    %218 = vector.broadcast %cst_89 : f32 to vector<17x1xf32>
    %219 = arith.divf %217, %218 : vector<17x1xf32>
    %220 = vector.broadcast %219 : vector<17x1xf32> to vector<17x32xf32>
    %221 = arith.subf %211, %220 : vector<17x32xf32>
    %222 = arith.mulf %221, %221 : vector<17x32xf32>
    %cst_90 = arith.constant dense<0.000000e+00> : vector<17xf32>
    %223 = vector.multi_reduction <add>, %222, %cst_90 [1] : vector<17x32xf32> to vector<17xf32>
    %224 = vector.shape_cast %223 : vector<17xf32> to vector<17x1xf32>
    %cst_91 = arith.constant 3.200000e+01 : f32
    %225 = vector.broadcast %cst_91 : f32 to vector<17x1xf32>
    %226 = arith.divf %224, %225 : vector<17x1xf32>
    %227 = vector.broadcast %219 : vector<17x1xf32> to vector<17x32xf32>
    %228 = arith.subf %211, %227 : vector<17x32xf32>
    %cst_92 = arith.constant 9.99999974E-6 : f32
    %229 = vector.broadcast %cst_92 : f32 to vector<17x1xf32>
    %230 = arith.addf %226, %229 : vector<17x1xf32>
    %231 = math.rsqrt %230 : vector<17x1xf32>
    %232 = vector.broadcast %231 : vector<17x1xf32> to vector<17x32xf32>
    %233 = arith.mulf %228, %232 : vector<17x32xf32>
    %234 = arith.extf %213 : vector<1x32xbf16> to vector<1x32xf32>
    %235 = vector.broadcast %234 : vector<1x32xf32> to vector<17x32xf32>
    %236 = arith.mulf %233, %235 : vector<17x32xf32>
    %237 = arith.extf %215 : vector<1x32xbf16> to vector<1x32xf32>
    %238 = vector.broadcast %237 : vector<1x32xf32> to vector<17x32xf32>
    %239 = arith.addf %236, %238 : vector<17x32xf32>
    %240 = arith.truncf %239 : vector<17x32xf32> to vector<17x32xbf16>
    %c1_93 = arith.constant 1 : index
    %c0_94 = arith.constant 0 : index
    %c0_95 = arith.constant 0 : index
    %241 = vector.load %arg6[%c1_93, %c0_94, %c0_95] : memref<2x32x96xbf16, #tpu.memory_space<vmem>>, vector<1x32x96xbf16>
    %242 = vector.shape_cast %241 : vector<1x32x96xbf16> to vector<32x96xbf16>
    %cst_96 = arith.constant dense<0.000000e+00> : vector<17x96xf32>
    %243 = tpu.matmul %240, %242, %cst_96 {dimension_numbers = #tpu.dot_dimension_numbers<[1], [0], [0], [1], [0, 0, 1, 1], [], []>} : vector<17x32xbf16>, vector<32x96xbf16>, vector<17x96xf32> -> vector<17x96xf32>
    %c1_97 = arith.constant 1 : index
    %c0_98 = arith.constant 0 : index
    %c0_99 = arith.constant 0 : index
    %244 = vector.load %arg7[%c1_97, %c0_98, %c0_99] : memref<2x1x96xbf16, #tpu.memory_space<vmem>>, vector<1x1x96xbf16>
    %245 = vector.shape_cast %244 : vector<1x1x96xbf16> to vector<1x96xbf16>
    %246 = arith.extf %245 : vector<1x96xbf16> to vector<1x96xf32>
    %247 = vector.broadcast %246 : vector<1x96xf32> to vector<17x96xf32>
    %248 = arith.addf %243, %247 : vector<17x96xf32>
    %249 = vector.extract_strided_slice %248 {offsets = [0, 0], sizes = [17, 8], strides = [1, 1]} : vector<17x96xf32> to vector<17x8xf32>
    %250 = arith.truncf %249 : vector<17x8xf32> to vector<17x8xbf16>
    %251 = vector.extract_strided_slice %248 {offsets = [0, 32], sizes = [17, 8], strides = [1, 1]} : vector<17x96xf32> to vector<17x8xf32>
    %252 = arith.truncf %251 : vector<17x8xf32> to vector<17x8xbf16>
    %253 = vector.extract_strided_slice %248 {offsets = [0, 64], sizes = [17, 8], strides = [1, 1]} : vector<17x96xf32> to vector<17x8xf32>
    %254 = arith.truncf %253 : vector<17x8xf32> to vector<17x8xbf16>
    %cst_100 = arith.constant dense<0.000000e+00> : vector<17x17xf32>
    %255 = tpu.matmul %250, %252, %cst_100 {dimension_numbers = #tpu.dot_dimension_numbers<[1], [1], [0], [0], [0, 0, 1, 0], [], []>} : vector<17x8xbf16>, vector<17x8xbf16>, vector<17x17xf32> -> vector<17x17xf32>
    %cst_101 = arith.constant dense<0xFF800000> : vector<17xf32>
    %256 = vector.multi_reduction <maximumf>, %255, %cst_101 [1] : vector<17x17xf32> to vector<17xf32>
    %257 = vector.shape_cast %256 : vector<17xf32> to vector<17x1xf32>
    %258 = vector.broadcast %257 : vector<17x1xf32> to vector<17x17xf32>
    %259 = arith.subf %255, %258 : vector<17x17xf32>
    %260 = math.exp %259 : vector<17x17xf32>
    %cst_102 = arith.constant dense<0.000000e+00> : vector<17xf32>
    %261 = vector.multi_reduction <add>, %260, %cst_102 [1] : vector<17x17xf32> to vector<17xf32>
    %262 = vector.shape_cast %261 : vector<17xf32> to vector<17x1xf32>
    %263 = tpu.reciprocal %262 {approx = true} : vector<17x1xf32> -> vector<17x1xf32>
    %264 = vector.broadcast %263 : vector<17x1xf32> to vector<17x17xf32>
    %265 = arith.mulf %260, %264 : vector<17x17xf32>
    %266 = arith.truncf %265 : vector<17x17xf32> to vector<17x17xbf16>
    %cst_103 = arith.constant dense<0.000000e+00> : vector<17x8xf32>
    %267 = tpu.matmul %266, %254, %cst_103 {dimension_numbers = #tpu.dot_dimension_numbers<[1], [0], [0], [1], [0, 0, 1, 1], [], []>} : vector<17x17xbf16>, vector<17x8xbf16>, vector<17x8xf32> -> vector<17x8xf32>
    %268 = vector.extract_strided_slice %248 {offsets = [0, 8], sizes = [17, 8], strides = [1, 1]} : vector<17x96xf32> to vector<17x8xf32>
    %269 = arith.truncf %268 : vector<17x8xf32> to vector<17x8xbf16>
    %270 = vector.extract_strided_slice %248 {offsets = [0, 40], sizes = [17, 8], strides = [1, 1]} : vector<17x96xf32> to vector<17x8xf32>
    %271 = arith.truncf %270 : vector<17x8xf32> to vector<17x8xbf16>
    %272 = vector.extract_strided_slice %248 {offsets = [0, 72], sizes = [17, 8], strides = [1, 1]} : vector<17x96xf32> to vector<17x8xf32>
    %273 = arith.truncf %272 : vector<17x8xf32> to vector<17x8xbf16>
    %cst_104 = arith.constant dense<0.000000e+00> : vector<17x17xf32>
    %274 = tpu.matmul %269, %271, %cst_104 {dimension_numbers = #tpu.dot_dimension_numbers<[1], [1], [0], [0], [0, 0, 1, 0], [], []>} : vector<17x8xbf16>, vector<17x8xbf16>, vector<17x17xf32> -> vector<17x17xf32>
    %cst_105 = arith.constant dense<0xFF800000> : vector<17xf32>
    %275 = vector.multi_reduction <maximumf>, %274, %cst_105 [1] : vector<17x17xf32> to vector<17xf32>
    %276 = vector.shape_cast %275 : vector<17xf32> to vector<17x1xf32>
    %277 = vector.broadcast %276 : vector<17x1xf32> to vector<17x17xf32>
    %278 = arith.subf %274, %277 : vector<17x17xf32>
    %279 = math.exp %278 : vector<17x17xf32>
    %cst_106 = arith.constant dense<0.000000e+00> : vector<17xf32>
    %280 = vector.multi_reduction <add>, %279, %cst_106 [1] : vector<17x17xf32> to vector<17xf32>
    %281 = vector.shape_cast %280 : vector<17xf32> to vector<17x1xf32>
    %282 = tpu.reciprocal %281 {approx = true} : vector<17x1xf32> -> vector<17x1xf32>
    %283 = vector.broadcast %282 : vector<17x1xf32> to vector<17x17xf32>
    %284 = arith.mulf %279, %283 : vector<17x17xf32>
    %285 = arith.truncf %284 : vector<17x17xf32> to vector<17x17xbf16>
    %cst_107 = arith.constant dense<0.000000e+00> : vector<17x8xf32>
    %286 = tpu.matmul %285, %273, %cst_107 {dimension_numbers = #tpu.dot_dimension_numbers<[1], [0], [0], [1], [0, 0, 1, 1], [], []>} : vector<17x17xbf16>, vector<17x8xbf16>, vector<17x8xf32> -> vector<17x8xf32>
    %287 = vector.extract_strided_slice %248 {offsets = [0, 16], sizes = [17, 8], strides = [1, 1]} : vector<17x96xf32> to vector<17x8xf32>
    %288 = arith.truncf %287 : vector<17x8xf32> to vector<17x8xbf16>
    %289 = vector.extract_strided_slice %248 {offsets = [0, 48], sizes = [17, 8], strides = [1, 1]} : vector<17x96xf32> to vector<17x8xf32>
    %290 = arith.truncf %289 : vector<17x8xf32> to vector<17x8xbf16>
    %291 = vector.extract_strided_slice %248 {offsets = [0, 80], sizes = [17, 8], strides = [1, 1]} : vector<17x96xf32> to vector<17x8xf32>
    %292 = arith.truncf %291 : vector<17x8xf32> to vector<17x8xbf16>
    %cst_108 = arith.constant dense<0.000000e+00> : vector<17x17xf32>
    %293 = tpu.matmul %288, %290, %cst_108 {dimension_numbers = #tpu.dot_dimension_numbers<[1], [1], [0], [0], [0, 0, 1, 0], [], []>} : vector<17x8xbf16>, vector<17x8xbf16>, vector<17x17xf32> -> vector<17x17xf32>
    %cst_109 = arith.constant dense<0xFF800000> : vector<17xf32>
    %294 = vector.multi_reduction <maximumf>, %293, %cst_109 [1] : vector<17x17xf32> to vector<17xf32>
    %295 = vector.shape_cast %294 : vector<17xf32> to vector<17x1xf32>
    %296 = vector.broadcast %295 : vector<17x1xf32> to vector<17x17xf32>
    %297 = arith.subf %293, %296 : vector<17x17xf32>
    %298 = math.exp %297 : vector<17x17xf32>
    %cst_110 = arith.constant dense<0.000000e+00> : vector<17xf32>
    %299 = vector.multi_reduction <add>, %298, %cst_110 [1] : vector<17x17xf32> to vector<17xf32>
    %300 = vector.shape_cast %299 : vector<17xf32> to vector<17x1xf32>
    %301 = tpu.reciprocal %300 {approx = true} : vector<17x1xf32> -> vector<17x1xf32>
    %302 = vector.broadcast %301 : vector<17x1xf32> to vector<17x17xf32>
    %303 = arith.mulf %298, %302 : vector<17x17xf32>
    %304 = arith.truncf %303 : vector<17x17xf32> to vector<17x17xbf16>
    %cst_111 = arith.constant dense<0.000000e+00> : vector<17x8xf32>
    %305 = tpu.matmul %304, %292, %cst_111 {dimension_numbers = #tpu.dot_dimension_numbers<[1], [0], [0], [1], [0, 0, 1, 1], [], []>} : vector<17x17xbf16>, vector<17x8xbf16>, vector<17x8xf32> -> vector<17x8xf32>
    %306 = vector.extract_strided_slice %248 {offsets = [0, 24], sizes = [17, 8], strides = [1, 1]} : vector<17x96xf32> to vector<17x8xf32>
    %307 = arith.truncf %306 : vector<17x8xf32> to vector<17x8xbf16>
    %308 = vector.extract_strided_slice %248 {offsets = [0, 56], sizes = [17, 8], strides = [1, 1]} : vector<17x96xf32> to vector<17x8xf32>
    %309 = arith.truncf %308 : vector<17x8xf32> to vector<17x8xbf16>
    %310 = vector.extract_strided_slice %248 {offsets = [0, 88], sizes = [17, 8], strides = [1, 1]} : vector<17x96xf32> to vector<17x8xf32>
    %311 = arith.truncf %310 : vector<17x8xf32> to vector<17x8xbf16>
    %cst_112 = arith.constant dense<0.000000e+00> : vector<17x17xf32>
    %312 = tpu.matmul %307, %309, %cst_112 {dimension_numbers = #tpu.dot_dimension_numbers<[1], [1], [0], [0], [0, 0, 1, 0], [], []>} : vector<17x8xbf16>, vector<17x8xbf16>, vector<17x17xf32> -> vector<17x17xf32>
    %cst_113 = arith.constant dense<0xFF800000> : vector<17xf32>
    %313 = vector.multi_reduction <maximumf>, %312, %cst_113 [1] : vector<17x17xf32> to vector<17xf32>
    %314 = vector.shape_cast %313 : vector<17xf32> to vector<17x1xf32>
    %315 = vector.broadcast %314 : vector<17x1xf32> to vector<17x17xf32>
    %316 = arith.subf %312, %315 : vector<17x17xf32>
    %317 = math.exp %316 : vector<17x17xf32>
    %cst_114 = arith.constant dense<0.000000e+00> : vector<17xf32>
    %318 = vector.multi_reduction <add>, %317, %cst_114 [1] : vector<17x17xf32> to vector<17xf32>
    %319 = vector.shape_cast %318 : vector<17xf32> to vector<17x1xf32>
    %320 = tpu.reciprocal %319 {approx = true} : vector<17x1xf32> -> vector<17x1xf32>
    %321 = vector.broadcast %320 : vector<17x1xf32> to vector<17x17xf32>
    %322 = arith.mulf %317, %321 : vector<17x17xf32>
    %323 = arith.truncf %322 : vector<17x17xf32> to vector<17x17xbf16>
    %cst_115 = arith.constant dense<0.000000e+00> : vector<17x8xf32>
    %324 = tpu.matmul %323, %311, %cst_115 {dimension_numbers = #tpu.dot_dimension_numbers<[1], [0], [0], [1], [0, 0, 1, 1], [], []>} : vector<17x17xbf16>, vector<17x8xbf16>, vector<17x8xf32> -> vector<17x8xf32>
    %325 = tpu.concatenate %267, %286, %305, %324 in 1 : vector<17x8xf32>, vector<17x8xf32>, vector<17x8xf32>, vector<17x8xf32> -> vector<17x32xf32>
    %326 = arith.truncf %325 : vector<17x32xf32> to vector<17x32xbf16>
    %c1_116 = arith.constant 1 : index
    %c0_117 = arith.constant 0 : index
    %c0_118 = arith.constant 0 : index
    %327 = vector.load %arg8[%c1_116, %c0_117, %c0_118] : memref<2x32x32xbf16, #tpu.memory_space<vmem>>, vector<1x32x32xbf16>
    %328 = vector.shape_cast %327 : vector<1x32x32xbf16> to vector<32x32xbf16>
    %cst_119 = arith.constant dense<0.000000e+00> : vector<17x32xf32>
    %329 = tpu.matmul %326, %328, %cst_119 {dimension_numbers = #tpu.dot_dimension_numbers<[1], [0], [0], [1], [0, 0, 1, 1], [], []>} : vector<17x32xbf16>, vector<32x32xbf16>, vector<17x32xf32> -> vector<17x32xf32>
    %c1_120 = arith.constant 1 : index
    %c0_121 = arith.constant 0 : index
    %c0_122 = arith.constant 0 : index
    %330 = vector.load %arg9[%c1_120, %c0_121, %c0_122] : memref<2x1x32xbf16, #tpu.memory_space<vmem>>, vector<1x1x32xbf16>
    %331 = vector.shape_cast %330 : vector<1x1x32xbf16> to vector<1x32xbf16>
    %332 = arith.extf %331 : vector<1x32xbf16> to vector<1x32xf32>
    %333 = vector.broadcast %332 : vector<1x32xf32> to vector<17x32xf32>
    %334 = arith.addf %329, %333 : vector<17x32xf32>
    %335 = arith.addf %211, %334 : vector<17x32xf32>
    %c1_123 = arith.constant 1 : index
    %c0_124 = arith.constant 0 : index
    %c0_125 = arith.constant 0 : index
    %336 = vector.load %arg12[%c1_123, %c0_124, %c0_125] : memref<2x1x32xbf16, #tpu.memory_space<vmem>>, vector<1x1x32xbf16>
    %337 = vector.shape_cast %336 : vector<1x1x32xbf16> to vector<1x32xbf16>
    %c1_126 = arith.constant 1 : index
    %c0_127 = arith.constant 0 : index
    %c0_128 = arith.constant 0 : index
    %338 = vector.load %arg13[%c1_126, %c0_127, %c0_128] : memref<2x1x32xbf16, #tpu.memory_space<vmem>>, vector<1x1x32xbf16>
    %339 = vector.shape_cast %338 : vector<1x1x32xbf16> to vector<1x32xbf16>
    %cst_129 = arith.constant dense<0.000000e+00> : vector<17xf32>
    %340 = vector.multi_reduction <add>, %335, %cst_129 [1] : vector<17x32xf32> to vector<17xf32>
    %341 = vector.shape_cast %340 : vector<17xf32> to vector<17x1xf32>
    %cst_130 = arith.constant 3.200000e+01 : f32
    %342 = vector.broadcast %cst_130 : f32 to vector<17x1xf32>
    %343 = arith.divf %341, %342 : vector<17x1xf32>
    %344 = vector.broadcast %343 : vector<17x1xf32> to vector<17x32xf32>
    %345 = arith.subf %335, %344 : vector<17x32xf32>
    %346 = arith.mulf %345, %345 : vector<17x32xf32>
    %cst_131 = arith.constant dense<0.000000e+00> : vector<17xf32>
    %347 = vector.multi_reduction <add>, %346, %cst_131 [1] : vector<17x32xf32> to vector<17xf32>
    %348 = vector.shape_cast %347 : vector<17xf32> to vector<17x1xf32>
    %cst_132 = arith.constant 3.200000e+01 : f32
    %349 = vector.broadcast %cst_132 : f32 to vector<17x1xf32>
    %350 = arith.divf %348, %349 : vector<17x1xf32>
    %351 = vector.broadcast %343 : vector<17x1xf32> to vector<17x32xf32>
    %352 = arith.subf %335, %351 : vector<17x32xf32>
    %cst_133 = arith.constant 9.99999974E-6 : f32
    %353 = vector.broadcast %cst_133 : f32 to vector<17x1xf32>
    %354 = arith.addf %350, %353 : vector<17x1xf32>
    %355 = math.rsqrt %354 : vector<17x1xf32>
    %356 = vector.broadcast %355 : vector<17x1xf32> to vector<17x32xf32>
    %357 = arith.mulf %352, %356 : vector<17x32xf32>
    %358 = arith.extf %337 : vector<1x32xbf16> to vector<1x32xf32>
    %359 = vector.broadcast %358 : vector<1x32xf32> to vector<17x32xf32>
    %360 = arith.mulf %357, %359 : vector<17x32xf32>
    %361 = arith.extf %339 : vector<1x32xbf16> to vector<1x32xf32>
    %362 = vector.broadcast %361 : vector<1x32xf32> to vector<17x32xf32>
    %363 = arith.addf %360, %362 : vector<17x32xf32>
    %364 = arith.truncf %363 : vector<17x32xf32> to vector<17x32xbf16>
    %c1_134 = arith.constant 1 : index
    %c0_135 = arith.constant 0 : index
    %c0_136 = arith.constant 0 : index
    %365 = vector.load %arg14[%c1_134, %c0_135, %c0_136] : memref<2x32x128xbf16, #tpu.memory_space<vmem>>, vector<1x32x128xbf16>
    %366 = vector.shape_cast %365 : vector<1x32x128xbf16> to vector<32x128xbf16>
    %cst_137 = arith.constant dense<0.000000e+00> : vector<17x128xf32>
    %367 = tpu.matmul %364, %366, %cst_137 {dimension_numbers = #tpu.dot_dimension_numbers<[1], [0], [0], [1], [0, 0, 1, 1], [], []>} : vector<17x32xbf16>, vector<32x128xbf16>, vector<17x128xf32> -> vector<17x128xf32>
    %c1_138 = arith.constant 1 : index
    %c0_139 = arith.constant 0 : index
    %c0_140 = arith.constant 0 : index
    %368 = vector.load %arg15[%c1_138, %c0_139, %c0_140] : memref<2x1x128xbf16, #tpu.memory_space<vmem>>, vector<1x1x128xbf16>
    %369 = vector.shape_cast %368 : vector<1x1x128xbf16> to vector<1x128xbf16>
    %370 = arith.extf %369 : vector<1x128xbf16> to vector<1x128xf32>
    %371 = vector.broadcast %370 : vector<1x128xf32> to vector<17x128xf32>
    %372 = arith.addf %367, %371 : vector<17x128xf32>
    %cst_141 = arith.constant 1.702000e+00 : f32
    %373 = vector.broadcast %cst_141 : f32 to vector<17x128xf32>
    %374 = arith.mulf %373, %372 : vector<17x128xf32>
    %375 = arith.negf %374 : vector<17x128xf32>
    %376 = math.exp %375 : vector<17x128xf32>
    %cst_142 = arith.constant 1.000000e+00 : f32
    %377 = vector.broadcast %cst_142 : f32 to vector<17x128xf32>
    %378 = arith.addf %377, %376 : vector<17x128xf32>
    %379 = arith.divf %377, %378 : vector<17x128xf32>
    %380 = arith.mulf %372, %379 : vector<17x128xf32>
    %381 = arith.truncf %380 : vector<17x128xf32> to vector<17x128xbf16>
    %c1_143 = arith.constant 1 : index
    %c0_144 = arith.constant 0 : index
    %c0_145 = arith.constant 0 : index
    %382 = vector.load %arg16[%c1_143, %c0_144, %c0_145] : memref<2x128x32xbf16, #tpu.memory_space<vmem>>, vector<1x128x32xbf16>
    %383 = vector.shape_cast %382 : vector<1x128x32xbf16> to vector<128x32xbf16>
    %cst_146 = arith.constant dense<0.000000e+00> : vector<17x32xf32>
    %384 = tpu.matmul %381, %383, %cst_146 {dimension_numbers = #tpu.dot_dimension_numbers<[1], [0], [0], [1], [0, 0, 1, 1], [], []>} : vector<17x128xbf16>, vector<128x32xbf16>, vector<17x32xf32> -> vector<17x32xf32>
    %385 = arith.addf %335, %384 : vector<17x32xf32>
    %c1_147 = arith.constant 1 : index
    %c0_148 = arith.constant 0 : index
    %c0_149 = arith.constant 0 : index
    %386 = vector.load %arg17[%c1_147, %c0_148, %c0_149] : memref<2x1x32xbf16, #tpu.memory_space<vmem>>, vector<1x1x32xbf16>
    %387 = vector.shape_cast %386 : vector<1x1x32xbf16> to vector<1x32xbf16>
    %388 = arith.extf %387 : vector<1x32xbf16> to vector<1x32xf32>
    %389 = vector.broadcast %388 : vector<1x32xf32> to vector<17x32xf32>
    %390 = arith.addf %385, %389 : vector<17x32xf32>
    %391 = vector.extract_strided_slice %390 {offsets = [0, 0], sizes = [1, 32], strides = [1, 1]} : vector<17x32xf32> to vector<1x32xf32>
    %c0_150 = arith.constant 0 : index
    %c0_151 = arith.constant 0 : index
    %392 = vector.load %arg18[%c0_150, %c0_151] : memref<1x32xbf16, #tpu.memory_space<vmem>>, vector<1x32xbf16>
    %c0_152 = arith.constant 0 : index
    %c0_153 = arith.constant 0 : index
    %393 = vector.load %arg19[%c0_152, %c0_153] : memref<1x32xbf16, #tpu.memory_space<vmem>>, vector<1x32xbf16>
    %cst_154 = arith.constant dense<0.000000e+00> : vector<1xf32>
    %394 = vector.multi_reduction <add>, %391, %cst_154 [1] : vector<1x32xf32> to vector<1xf32>
    %395 = vector.shape_cast %394 : vector<1xf32> to vector<1x1xf32>
    %cst_155 = arith.constant 3.200000e+01 : f32
    %396 = vector.broadcast %cst_155 : f32 to vector<1x1xf32>
    %397 = arith.divf %395, %396 : vector<1x1xf32>
    %398 = vector.broadcast %397 : vector<1x1xf32> to vector<1x32xf32>
    %399 = arith.subf %391, %398 : vector<1x32xf32>
    %400 = arith.mulf %399, %399 : vector<1x32xf32>
    %cst_156 = arith.constant dense<0.000000e+00> : vector<1xf32>
    %401 = vector.multi_reduction <add>, %400, %cst_156 [1] : vector<1x32xf32> to vector<1xf32>
    %402 = vector.shape_cast %401 : vector<1xf32> to vector<1x1xf32>
    %cst_157 = arith.constant 3.200000e+01 : f32
    %403 = vector.broadcast %cst_157 : f32 to vector<1x1xf32>
    %404 = arith.divf %402, %403 : vector<1x1xf32>
    %405 = vector.broadcast %397 : vector<1x1xf32> to vector<1x32xf32>
    %406 = arith.subf %391, %405 : vector<1x32xf32>
    %cst_158 = arith.constant 9.99999974E-6 : f32
    %407 = vector.broadcast %cst_158 : f32 to vector<1x1xf32>
    %408 = arith.addf %404, %407 : vector<1x1xf32>
    %409 = math.rsqrt %408 : vector<1x1xf32>
    %410 = vector.broadcast %409 : vector<1x1xf32> to vector<1x32xf32>
    %411 = arith.mulf %406, %410 : vector<1x32xf32>
    %412 = arith.extf %392 : vector<1x32xbf16> to vector<1x32xf32>
    %413 = arith.mulf %411, %412 : vector<1x32xf32>
    %414 = arith.extf %393 : vector<1x32xbf16> to vector<1x32xf32>
    %415 = arith.addf %413, %414 : vector<1x32xf32>
    %416 = arith.truncf %415 : vector<1x32xf32> to vector<1x32xbf16>
    %c0_159 = arith.constant 0 : index
    %c0_160 = arith.constant 0 : index
    %417 = vector.load %arg20[%c0_159, %c0_160] : memref<32x16xbf16, #tpu.memory_space<vmem>>, vector<32x16xbf16>
    %cst_161 = arith.constant dense<0.000000e+00> : vector<1x16xf32>
    %418 = tpu.matmul %416, %417, %cst_161 {dimension_numbers = #tpu.dot_dimension_numbers<[1], [0], [0], [1], [0, 0, 1, 1], [], []>} : vector<1x32xbf16>, vector<32x16xbf16>, vector<1x16xf32> -> vector<1x16xf32>
    %c0_162 = arith.constant 0 : index
    %c0_163 = arith.constant 0 : index
    %419 = vector.load %arg21[%c0_162, %c0_163] : memref<16x32xf32, #tpu.memory_space<vmem>>, vector<16x32xf32>
    %cst_164 = arith.constant dense<0.000000e+00> : vector<1x32xf32>
    %420 = tpu.matmul %418, %419, %cst_164 {dimension_numbers = #tpu.dot_dimension_numbers<[1], [0], [0], [1], [0, 0, 1, 1], [], []>} : vector<1x16xf32>, vector<16x32xf32>, vector<1x32xf32> -> vector<1x32xf32>
    %c0_165 = arith.constant 0 : index
    %c0_166 = arith.constant 0 : index
    %421 = vector.load %arg22[%c0_165, %c0_166] : memref<1x32xf32, #tpu.memory_space<vmem>>, vector<1x32xf32>
    %422 = arith.addf %420, %421 : vector<1x32xf32>
    %cst_167 = arith.constant 0.000000e+00 : f32
    %423 = vector.broadcast %cst_167 : f32 to vector<1x32xf32>
    %424 = arith.maximumf %422, %423 : vector<1x32xf32>
    %c0_168 = arith.constant 0 : index
    %c0_169 = arith.constant 0 : index
    %425 = vector.load %arg23[%c0_168, %c0_169] : memref<32x16xf32, #tpu.memory_space<vmem>>, vector<32x16xf32>
    %cst_170 = arith.constant dense<0.000000e+00> : vector<1x16xf32>
    %426 = tpu.matmul %424, %425, %cst_170 {dimension_numbers = #tpu.dot_dimension_numbers<[1], [0], [0], [1], [0, 0, 1, 1], [], []>} : vector<1x32xf32>, vector<32x16xf32>, vector<1x16xf32> -> vector<1x16xf32>
    %c0_171 = arith.constant 0 : index
    %c0_172 = arith.constant 0 : index
    %427 = vector.load %arg24[%c0_171, %c0_172] : memref<1x16xf32, #tpu.memory_space<vmem>>, vector<1x16xf32>
    %428 = arith.addf %426, %427 : vector<1x16xf32>
    %cst_173 = arith.constant 0.000000e+00 : f32
    %429 = vector.broadcast %cst_173 : f32 to vector<1x16xf32>
    %430 = arith.maximumf %428, %429 : vector<1x16xf32>
    %c0_174 = arith.constant 0 : index
    %c0_175 = arith.constant 0 : index
    %431 = vector.load %arg25[%c0_174, %c0_175] : memref<16x128xf32, #tpu.memory_space<vmem>>, vector<16x128xf32>
    %cst_176 = arith.constant dense<0.000000e+00> : vector<1x128xf32>
    %432 = tpu.matmul %430, %431, %cst_176 {dimension_numbers = #tpu.dot_dimension_numbers<[1], [0], [0], [1], [0, 0, 1, 1], [], []>} : vector<1x16xf32>, vector<16x128xf32>, vector<1x128xf32> -> vector<1x128xf32>
    %c0_177 = arith.constant 0 : index
    %c0_178 = arith.constant 0 : index
    %433 = vector.load %arg26[%c0_177, %c0_178] : memref<1x128xf32, #tpu.memory_space<vmem>>, vector<1x128xf32>
    %434 = arith.addf %432, %433 : vector<1x128xf32>
    %c0_179 = arith.constant 0 : index
    %c0_180 = arith.constant 0 : index
    %c0_181 = arith.constant 0 : index
    %435 = vector.load %arg27[%c0_179, %c0_180, %c0_181] : memref<1x1x128xf32, #tpu.memory_space<vmem>>, vector<1x1x128xf32>
    %436 = vector.shape_cast %435 : vector<1x1x128xf32> to vector<1x128xf32>
    %437 = vector.shape_cast %434 : vector<1x128xf32> to vector<1x1x128xf32>
    tpu.vector_store %arg27[%c0_179, %c0_180, %c0_181], %437 {strides = array<i32>} : memref<1x1x128xf32, #tpu.memory_space<vmem>>, vector<1x1x128xf32>,
    return
  }
  func.func @transform_0(%arg0: i32) -> (i32, i32, i32) {
    %c0_i32 = arith.constant 0 : i32
    %c0_i32_0 = arith.constant 0 : i32
    %c0_i32_1 = arith.constant 0 : i32
    return %arg0, %c0_i32, %c0_i32_0 : i32, i32, i32
  }
  func.func @transform_1(%arg0: i32) -> (i32, i32) {
    %c0_i32 = arith.constant 0 : i32
    %c0_i32_0 = arith.constant 0 : i32
    %c0_i32_1 = arith.constant 0 : i32
    return %c0_i32, %c0_i32_0 : i32, i32
  }
  func.func @transform_2(%arg0: i32) -> (i32, i32) {
    %c0_i32 = arith.constant 0 : i32
    %c0_i32_0 = arith.constant 0 : i32
    %c0_i32_1 = arith.constant 0 : i32
    return %c0_i32, %c0_i32_0 : i32, i32
  }
  func.func @transform_3(%arg0: i32) -> (i32, i32) {
    %c0_i32 = arith.constant 0 : i32
    %c0_i32_0 = arith.constant 0 : i32
    %c0_i32_1 = arith.constant 0 : i32
    return %c0_i32, %c0_i32_0 : i32, i32
  }
  func.func @transform_4(%arg0: i32) -> (i32, i32) {
    %c0_i32 = arith.constant 0 : i32
    %c0_i32_0 = arith.constant 0 : i32
    %c0_i32_1 = arith.constant 0 : i32
    return %c0_i32, %c0_i32_0 : i32, i32
  }
  func.func @transform_5(%arg0: i32) -> (i32, i32, i32) {
    %c0_i32 = arith.constant 0 : i32
    %c0_i32_0 = arith.constant 0 : i32
    %c0_i32_1 = arith.constant 0 : i32
    %c0_i32_2 = arith.constant 0 : i32
    return %c0_i32, %c0_i32_0, %c0_i32_1 : i32, i32, i32
  }
  func.func @transform_6(%arg0: i32) -> (i32, i32, i32) {
    %c0_i32 = arith.constant 0 : i32
    %c0_i32_0 = arith.constant 0 : i32
    %c0_i32_1 = arith.constant 0 : i32
    %c0_i32_2 = arith.constant 0 : i32
    return %c0_i32, %c0_i32_0, %c0_i32_1 : i32, i32, i32
  }
  func.func @transform_7(%arg0: i32) -> (i32, i32, i32) {
    %c0_i32 = arith.constant 0 : i32
    %c0_i32_0 = arith.constant 0 : i32
    %c0_i32_1 = arith.constant 0 : i32
    %c0_i32_2 = arith.constant 0 : i32
    return %c0_i32, %c0_i32_0, %c0_i32_1 : i32, i32, i32
  }
  func.func @transform_8(%arg0: i32) -> (i32, i32, i32) {
    %c0_i32 = arith.constant 0 : i32
    %c0_i32_0 = arith.constant 0 : i32
    %c0_i32_1 = arith.constant 0 : i32
    %c0_i32_2 = arith.constant 0 : i32
    return %c0_i32, %c0_i32_0, %c0_i32_1 : i32, i32, i32
  }
  func.func @transform_9(%arg0: i32) -> (i32, i32, i32) {
    %c0_i32 = arith.constant 0 : i32
    %c0_i32_0 = arith.constant 0 : i32
    %c0_i32_1 = arith.constant 0 : i32
    %c0_i32_2 = arith.constant 0 : i32
    return %c0_i32, %c0_i32_0, %c0_i32_1 : i32, i32, i32
  }
  func.func @transform_10(%arg0: i32) -> (i32, i32, i32) {
    %c0_i32 = arith.constant 0 : i32
    %c0_i32_0 = arith.constant 0 : i32
    %c0_i32_1 = arith.constant 0 : i32
    %c0_i32_2 = arith.constant 0 : i32
    return %c0_i32, %c0_i32_0, %c0_i32_1 : i32, i32, i32
  }
  func.func @transform_11(%arg0: i32) -> (i32, i32, i32) {
    %c0_i32 = arith.constant 0 : i32
    %c0_i32_0 = arith.constant 0 : i32
    %c0_i32_1 = arith.constant 0 : i32
    %c0_i32_2 = arith.constant 0 : i32
    return %c0_i32, %c0_i32_0, %c0_i32_1 : i32, i32, i32
  }
  func.func @transform_12(%arg0: i32) -> (i32, i32, i32) {
    %c0_i32 = arith.constant 0 : i32
    %c0_i32_0 = arith.constant 0 : i32
    %c0_i32_1 = arith.constant 0 : i32
    %c0_i32_2 = arith.constant 0 : i32
    return %c0_i32, %c0_i32_0, %c0_i32_1 : i32, i32, i32
  }
  func.func @transform_13(%arg0: i32) -> (i32, i32, i32) {
    %c0_i32 = arith.constant 0 : i32
    %c0_i32_0 = arith.constant 0 : i32
    %c0_i32_1 = arith.constant 0 : i32
    %c0_i32_2 = arith.constant 0 : i32
    return %c0_i32, %c0_i32_0, %c0_i32_1 : i32, i32, i32
  }
  func.func @transform_14(%arg0: i32) -> (i32, i32, i32) {
    %c0_i32 = arith.constant 0 : i32
    %c0_i32_0 = arith.constant 0 : i32
    %c0_i32_1 = arith.constant 0 : i32
    %c0_i32_2 = arith.constant 0 : i32
    return %c0_i32, %c0_i32_0, %c0_i32_1 : i32, i32, i32
  }
  func.func @transform_15(%arg0: i32) -> (i32, i32, i32) {
    %c0_i32 = arith.constant 0 : i32
    %c0_i32_0 = arith.constant 0 : i32
    %c0_i32_1 = arith.constant 0 : i32
    %c0_i32_2 = arith.constant 0 : i32
    return %c0_i32, %c0_i32_0, %c0_i32_1 : i32, i32, i32
  }
  func.func @transform_16(%arg0: i32) -> (i32, i32, i32) {
    %c0_i32 = arith.constant 0 : i32
    %c0_i32_0 = arith.constant 0 : i32
    %c0_i32_1 = arith.constant 0 : i32
    %c0_i32_2 = arith.constant 0 : i32
    return %c0_i32, %c0_i32_0, %c0_i32_1 : i32, i32, i32
  }
  func.func @transform_17(%arg0: i32) -> (i32, i32) {
    %c0_i32 = arith.constant 0 : i32
    %c0_i32_0 = arith.constant 0 : i32
    %c0_i32_1 = arith.constant 0 : i32
    return %c0_i32, %c0_i32_0 : i32, i32
  }
  func.func @transform_18(%arg0: i32) -> (i32, i32) {
    %c0_i32 = arith.constant 0 : i32
    %c0_i32_0 = arith.constant 0 : i32
    %c0_i32_1 = arith.constant 0 : i32
    return %c0_i32, %c0_i32_0 : i32, i32
  }
  func.func @transform_19(%arg0: i32) -> (i32, i32) {
    %c0_i32 = arith.constant 0 : i32
    %c0_i32_0 = arith.constant 0 : i32
    %c0_i32_1 = arith.constant 0 : i32
    return %c0_i32, %c0_i32_0 : i32, i32
  }
  func.func @transform_20(%arg0: i32) -> (i32, i32) {
    %c0_i32 = arith.constant 0 : i32
    %c0_i32_0 = arith.constant 0 : i32
    %c0_i32_1 = arith.constant 0 : i32
    return %c0_i32, %c0_i32_0 : i32, i32
  }
  func.func @transform_21(%arg0: i32) -> (i32, i32) {
    %c0_i32 = arith.constant 0 : i32
    %c0_i32_0 = arith.constant 0 : i32
    %c0_i32_1 = arith.constant 0 : i32
    return %c0_i32, %c0_i32_0 : i32, i32
  }
  func.func @transform_22(%arg0: i32) -> (i32, i32) {
    %c0_i32 = arith.constant 0 : i32
    %c0_i32_0 = arith.constant 0 : i32
    %c0_i32_1 = arith.constant 0 : i32
    return %c0_i32, %c0_i32_0 : i32, i32
  }
  func.func @transform_23(%arg0: i32) -> (i32, i32) {
    %c0_i32 = arith.constant 0 : i32
    %c0_i32_0 = arith.constant 0 : i32
    %c0_i32_1 = arith.constant 0 : i32
    return %c0_i32, %c0_i32_0 : i32, i32
  }
  func.func @transform_24(%arg0: i32) -> (i32, i32) {
    %c0_i32 = arith.constant 0 : i32
    %c0_i32_0 = arith.constant 0 : i32
    %c0_i32_1 = arith.constant 0 : i32
    return %c0_i32, %c0_i32_0 : i32, i32
  }
  func.func @transform_25(%arg0: i32) -> (i32, i32) {
    %c0_i32 = arith.constant 0 : i32
    %c0_i32_0 = arith.constant 0 : i32
    %c0_i32_1 = arith.constant 0 : i32
    return %c0_i32, %c0_i32_0 : i32, i32
  }
  func.func @transform_26(%arg0: i32) -> (i32, i32, i32) {
    %c0_i32 = arith.constant 0 : i32
    %c0_i32_0 = arith.constant 0 : i32
    %c0_i32_1 = arith.constant 0 : i32
    return %arg0, %c0_i32, %c0_i32_0 : i32, i32, i32
  }
}

</mosaic_0001>

<llo_original>
// kernel: traffic_light_classifier_forward.1
$region0: #{traffic_light_classifier_forward.1}
  #allocation0 [shape = 'u32[]', space=smem, size = 0x4, offset = 0x4, fixed_abs, tag = 'smem constant byte address 0x4 - core index']
  #allocation1 [shape = 'u32[144,128]{1,0:T(1,128)}', space=vmem, size = 0x12000, scoped, tag = 'internal scratch']
  %s0 = inlined_call_operand.vmem [shape: bf16[2,17,192], index: 0, kind: input, shape index: {}]
  %s1 = inlined_call_operand.vmem [shape: bf16[17,32], index: 1, kind: input, shape index: {}]
  %s2 = inlined_call_operand.vmem [shape: bf16[192,32], index: 2, kind: input, shape index: {}]
  %s3 = inlined_call_operand.vmem [shape: bf16[1,32], index: 3, kind: input, shape index: {}]
  %s4 = inlined_call_operand.vmem [shape: bf16[1,32], index: 4, kind: input, shape index: {}]
  %s5 = inlined_call_operand.vmem [shape: bf16[2,32,96], index: 5, kind: input, shape index: {}]
  %s6 = inlined_call_operand.vmem [shape: bf16[2,1,96], index: 6, kind: input, shape index: {}]
  %s7 = inlined_call_operand.vmem [shape: bf16[2,32,32], index: 7, kind: input, shape index: {}]
  %s8 = inlined_call_operand.vmem [shape: bf16[2,1,32], index: 8, kind: input, shape index: {}]
  %s9 = inlined_call_operand.vmem [shape: bf16[2,1,32], index: 9, kind: input, shape index: {}]
  %s10 = inlined_call_operand.vmem [shape: bf16[2,1,32], index: 10, kind: input, shape index: {}]
  %s11 = inlined_call_operand.vmem [shape: bf16[2,1,32], index: 11, kind: input, shape index: {}]
  %s12 = inlined_call_operand.vmem [shape: bf16[2,1,32], index: 12, kind: input, shape index: {}]
  %s13 = inlined_call_operand.vmem [shape: bf16[2,32,128], index: 13, kind: input, shape index: {}]
  %s14 = inlined_call_operand.vmem [shape: bf16[2,1,128], index: 14, kind: input, shape index: {}]
  %s15 = inlined_call_operand.vmem [shape: bf16[2,128,32], index: 15, kind: input, shape index: {}]
  %s16 = inlined_call_operand.vmem [shape: bf16[2,1,32], index: 16, kind: input, shape index: {}]
  %s17 = inlined_call_operand.vmem [shape: bf16[1,32], index: 17, kind: input, shape index: {}]
  %s18 = inlined_call_operand.vmem [shape: bf16[1,32], index: 18, kind: input, shape index: {}]
  %s19 = inlined_call_operand.vmem [shape: bf16[32,16], index: 19, kind: input, shape index: {}]
  %s20 = inlined_call_operand.vmem [shape: f32[16,32], index: 20, kind: input, shape index: {}]
  %s21 = inlined_call_operand.vmem [shape: f32[1,32], index: 21, kind: input, shape index: {}]
  %s22 = inlined_call_operand.vmem [shape: f32[32,16], index: 22, kind: input, shape index: {}]
  %s23 = inlined_call_operand.vmem [shape: f32[1,16], index: 23, kind: input, shape index: {}]
  %s24 = inlined_call_operand.vmem [shape: f32[16,128], index: 24, kind: input, shape index: {}]
  %s25 = inlined_call_operand.vmem [shape: f32[1,128], index: 25, kind: input, shape index: {}]
  %s26 = inlined_call_operand.hbm [shape: f32[2,1,128], index: 26, kind: output, shape index: {}]
  %s27 = sld [smem:[#allocation0]]
  $region137: #{traffic_light_classifier_forward.1} parent=0
    _
  %s29 = ssub.s32 1, %s27
  %s30 = scalar_select 0, %s29, %s27
  $region1: #{traffic_light_classifier_forward.1} parent=0
    #allocation2 [shape = 'u8[1024]{0}', space=vmem, size = 0x400, scoped, tag = 'output window, operand 0']
    #allocation3 [shape = 's32[2]{0}', space=sflag, size = 0x8, scoped, tag = 'scoped memory for traffic_light_classifier_forward.1']
    %31 = vsyncpa [#allocation3], 0
    %s32 = scalar_lea.sflag [#allocation3], 1
    %33 = vsyncpa %s32, 0
    loop: start=0, step=1, limit=4
    $region2: #{traffic_light_classifier_forward.1} parent=1 // loop_pre_header
      _
    $region3: #{traffic_light_classifier_forward.1} parent=1 // loop_header
      %s35 = sphi 0, %s39
      %p36 = scmp.ge.s32.totalorder %s35, 4
      %s45 = sphi 0, %s47
      %s48 = sphi 0, %s45
      %s49 = sphi 0, %s48
      %s65 = sphi 0, %s49
      %s69 = sphi 0, %s69
      %s71 = sphi 0, %s69
      %s72 = sphi 0, %s71
      %s86 = sphi 0, %s72
      %s90 = sphi 0, %s90
      %s92 = sphi 0, %s90
      %s93 = sphi 0, %s92
      %s107 = sphi 0, %s93
      %s111 = sphi 0, %s111
      %s113 = sphi 0, %s111
      %s114 = sphi 0, %s113
      %s128 = sphi 0, %s114
      %s132 = sphi 0, %s132
      %s134 = sphi 0, %s132
      %s135 = sphi 0, %s134
      %s149 = sphi 0, %s135
      %s153 = sphi 0, %s153
      %s155 = sphi 0, %s153
      %s156 = sphi 0, %s155
      %s170 = sphi 0, %s156
      %s174 = sphi 0, %s174
      %s176 = sphi 0, %s174
      %s177 = sphi 0, %s176
      %s191 = sphi 0, %s177
      %s195 = sphi 0, %s195
      %s197 = sphi 0, %s195
      %s198 = sphi 0, %s197
      %s212 = sphi 0, %s198
      %s216 = sphi 0, %s216
      %s218 = sphi 0, %s216
      %s219 = sphi 0, %s218
      %s233 = sphi 0, %s219
      %s237 = sphi 0, %s237
      %s239 = sphi 0, %s237
      %s240 = sphi 0, %s239
      %s254 = sphi 0, %s240
      %s258 = sphi 0, %s258
      %s260 = sphi 0, %s258
      %s261 = sphi 0, %s260
      %s275 = sphi 0, %s261
      %s279 = sphi 0, %s279
      %s281 = sphi 0, %s279
      %s282 = sphi 0, %s281
      %s296 = sphi 0, %s282
      %s300 = sphi 0, %s300
      %s302 = sphi 0, %s300
      %s303 = sphi 0, %s302
      %s317 = sphi 0, %s303
      %s321 = sphi 0, %s321
      %s323 = sphi 0, %s321
      %s324 = sphi 0, %s323
      %s338 = sphi 0, %s324
      %s342 = sphi 0, %s342
      %s344 = sphi 0, %s342
      %s345 = sphi 0, %s344
      %s359 = sphi 0, %s345
      %s363 = sphi 0, %s363
      %s365 = sphi 0, %s363
      %s366 = sphi 0, %s365
      %s380 = sphi 0, %s366
      %s384 = sphi 0, %s384
      %s386 = sphi 0, %s384
      %s387 = sphi 0, %s386
      %s401 = sphi 0, %s387
      %s405 = sphi 0, %s405
      %s407 = sphi 0, %s405
      %s408 = sphi 0, %s407
      %s422 = sphi 0, %s408
      %s426 = sphi 0, %s426
      %s428 = sphi 0, %s426
      %s429 = sphi 0, %s428
      %s443 = sphi 0, %s429
      %s447 = sphi 0, %s447
      %s449 = sphi 0, %s447
      %s450 = sphi 0, %s449
      %s464 = sphi 0, %s450
      %s468 = sphi 0, %s468
      %s470 = sphi 0, %s468
      %s471 = sphi 0, %s470
      %s485 = sphi 0, %s471
      %s489 = sphi 0, %s489
      %s491 = sphi 0, %s489
      %s492 = sphi 0, %s491
      %s506 = sphi 0, %s492
      %s510 = sphi 0, %s510
      %s512 = sphi 0, %s510
      %s513 = sphi 0, %s512
      %s527 = sphi 0, %s513
      %s531 = sphi 0, %s531
      %s533 = sphi 0, %s531
      %s534 = sphi 0, %s533
      %s548 = sphi 0, %s534
      %s552 = sphi 0, %s552
      %s554 = sphi 0, %s552
      %s555 = sphi 0, %s554
      %s569 = sphi 0, %s555
      %s573 = sphi 0, %s573
      %s575 = sphi 0, %s573
      %s576 = sphi 0, %s575
      %s590 = sphi 0, %s576
      %s596 = sphi 0, %s598
      %s599 = sphi 0, %s596
      %s600 = sphi 0, %s599
      %s616 = sphi 0, %s600
    $region4: #{traffic_light_classifier_forward.1} parent=1 // loop_header_branch
      %38 = sbr.rel (%p36) target = $region8
    $region5: #{traffic_light_classifier_forward.1} parent=1 // loop_body
      %s40 = ssub.s32 %s35, 1
      %s41 = ssub.s32 %s35, 2
      %s42 = sadd.s32 %s35, 1
      %s43 = ssub.s32 %s35, %s42
      %p44 = scmp.eq.s32.totalorder %s43, 0
      %s46 = sadd.s32 %s45, 1
      %s47 = scalar_select %p44, %s45, %s46
      %p50 = pneg %p44
      %p51 = scmp.eq.s32.totalorder %s35, 1
      %p52 = por %p50, %p51
      %p53 = scmp.ne.s32.totalorder %s45, %s48
      %p54 = scmp.eq.s32.totalorder %s35, 0
      %p55 = por %p53, %p54
      %p56 = scmp.ne.s32.totalorder %s45, %s48
      %p57 = scmp.eq.s32.totalorder %s40, 1
      %p58 = por %p56, %p57
      %p59 = scmp.ne.s32.totalorder %s48, %s49
      %p60 = scmp.eq.s32.totalorder %s40, 0
      %p61 = por %p59, %p60
      %p62 = scmp.ne.s32.totalorder %s48, %s49
      %p63 = scmp.eq.s32.totalorder %s41, 1
      %p64 = por %p62, %p63
      %p66 = scmp.ne.s32.totalorder %s49, %s65
      %p67 = scmp.eq.s32.totalorder %s41, 0
      %p68 = por %p66, %p67
      %s70 = sadd.s32 %s69, 1
      %p73 = scmp.eq.s32.totalorder %s35, 1
      %p74 = scmp.ne.s32.totalorder %s69, %s71
      %p75 = scmp.eq.s32.totalorder %s35, 0
      %p76 = por %p74, %p75
      %p77 = scmp.ne.s32.totalorder %s69, %s71
      %p78 = scmp.eq.s32.totalorder %s40, 1
      %p79 = por %p77, %p78
      %p80 = scmp.ne.s32.totalorder %s71, %s72
      %p81 = scmp.eq.s32.totalorder %s40, 0
      %p82 = por %p80, %p81
      %p83 = scmp.ne.s32.totalorder %s71, %s72
      %p84 = scmp.eq.s32.totalorder %s41, 1
      %p85 = por %p83, %p84
      %p87 = scmp.ne.s32.totalorder %s72, %s86
      %p88 = scmp.eq.s32.totalorder %s41, 0
      %p89 = por %p87, %p88
      %s91 = sadd.s32 %s90, 1
      %p94 = scmp.eq.s32.totalorder %s35, 1
      %p95 = scmp.ne.s32.totalorder %s90, %s92
      %p96 = scmp.eq.s32.totalorder %s35, 0
      %p97 = por %p95, %p96
      %p98 = scmp.ne.s32.totalorder %s90, %s92
      %p99 = scmp.eq.s32.totalorder %s40, 1
      %p100 = por %p98, %p99
      %p101 = scmp.ne.s32.totalorder %s92, %s93
      %p102 = scmp.eq.s32.totalorder %s40, 0
      %p103 = por %p101, %p102
      %p104 = scmp.ne.s32.totalorder %s92, %s93
      %p105 = scmp.eq.s32.totalorder %s41, 1
      %p106 = por %p104, %p105
      %p108 = scmp.ne.s32.totalorder %s93, %s107
      %p109 = scmp.eq.s32.totalorder %s41, 0
      %p110 = por %p108, %p109
      %s112 = sadd.s32 %s111, 1
      %p115 = scmp.eq.s32.totalorder %s35, 1
      %p116 = scmp.ne.s32.totalorder %s111, %s113
      %p117 = scmp.eq.s32.totalorder %s35, 0
      %p118 = por %p116, %p117
      %p119 = scmp.ne.s32.totalorder %s111, %s113
      %p120 = scmp.eq.s32.totalorder %s40, 1
      %p121 = por %p119, %p120
      %p122 = scmp.ne.s32.totalorder %s113, %s114
      %p123 = scmp.eq.s32.totalorder %s40, 0
      %p124 = por %p122, %p123
      %p125 = scmp.ne.s32.totalorder %s113, %s114
      %p126 = scmp.eq.s32.totalorder %s41, 1
      %p127 = por %p125, %p126
      %p129 = scmp.ne.s32.totalorder %s114, %s128
      %p130 = scmp.eq.s32.totalorder %s41, 0
      %p131 = por %p129, %p130
      %s133 = sadd.s32 %s132, 1
      %p136 = scmp.eq.s32.totalorder %s35, 1
      %p137 = scmp.ne.s32.totalorder %s132, %s134
      %p138 = scmp.eq.s32.totalorder %s35, 0
      %p139 = por %p137, %p138
      %p140 = scmp.ne.s32.totalorder %s132, %s134
      %p141 = scmp.eq.s32.totalorder %s40, 1
      %p142 = por %p140, %p141
      %p143 = scmp.ne.s32.totalorder %s134, %s135
      %p144 = scmp.eq.s32.totalorder %s40, 0
      %p145 = por %p143, %p144
      %p146 = scmp.ne.s32.totalorder %s134, %s135
      %p147 = scmp.eq.s32.totalorder %s41, 1
      %p148 = por %p146, %p147
      %p150 = scmp.ne.s32.totalorder %s135, %s149
      %p151 = scmp.eq.s32.totalorder %s41, 0
      %p152 = por %p150, %p151
      %s154 = sadd.s32 %s153, 1
      %p157 = scmp.eq.s32.totalorder %s35, 1
      %p158 = scmp.ne.s32.totalorder %s153, %s155
      %p159 = scmp.eq.s32.totalorder %s35, 0
      %p160 = por %p158, %p159
      %p161 = scmp.ne.s32.totalorder %s153, %s155
      %p162 = scmp.eq.s32.totalorder %s40, 1
      %p163 = por %p161, %p162
      %p164 = scmp.ne.s32.totalorder %s155, %s156
      %p165 = scmp.eq.s32.totalorder %s40, 0
      %p166 = por %p164, %p165
      %p167 = scmp.ne.s32.totalorder %s155, %s156
      %p168 = scmp.eq.s32.totalorder %s41, 1
      %p169 = por %p167, %p168
      %p171 = scmp.ne.s32.totalorder %s156, %s170
      %p172 = scmp.eq.s32.totalorder %s41, 0
      %p173 = por %p171, %p172
      %s175 = sadd.s32 %s174, 1
      %p178 = scmp.eq.s32.totalorder %s35, 1
      %p179 = scmp.ne.s32.totalorder %s174, %s176
      %p180 = scmp.eq.s32.totalorder %s35, 0
      %p181 = por %p179, %p180
      %p182 = scmp.ne.s32.totalorder %s174, %s176
      %p183 = scmp.eq.s32.totalorder %s40, 1
      %p184 = por %p182, %p183
      %p185 = scmp.ne.s32.totalorder %s176, %s177
      %p186 = scmp.eq.s32.totalorder %s40, 0
      %p187 = por %p185, %p186
      %p188 = scmp.ne.s32.totalorder %s176, %s177
      %p189 = scmp.eq.s32.totalorder %s41, 1
      %p190 = por %p188, %p189
      %p192 = scmp.ne.s32.totalorder %s177, %s191
      %p193 = scmp.eq.s32.totalorder %s41, 0
      %p194 = por %p192, %p193
      %s196 = sadd.s32 %s195, 1
      %p199 = scmp.eq.s32.totalorder %s35, 1
      %p200 = scmp.ne.s32.totalorder %s195, %s197
      %p201 = scmp.eq.s32.totalorder %s35, 0
      %p202 = por %p200, %p201
      %p203 = scmp.ne.s32.totalorder %s195, %s197
      %p204 = scmp.eq.s32.totalorder %s40, 1
      %p205 = por %p203, %p204
      %p206 = scmp.ne.s32.totalorder %s197, %s198
      %p207 = scmp.eq.s32.totalorder %s40, 0
      %p208 = por %p206, %p207
      %p209 = scmp.ne.s32.totalorder %s197, %s198
      %p210 = scmp.eq.s32.totalorder %s41, 1
      %p211 = por %p209, %p210
      %p213 = scmp.ne.s32.totalorder %s198, %s212
      %p214 = scmp.eq.s32.totalorder %s41, 0
      %p215 = por %p213, %p214
      %s217 = sadd.s32 %s216, 1
      %p220 = scmp.eq.s32.totalorder %s35, 1
      %p221 = scmp.ne.s32.totalorder %s216, %s218
      %p222 = scmp.eq.s32.totalorder %s35, 0
      %p223 = por %p221, %p222
      %p224 = scmp.ne.s32.totalorder %s216, %s218
      %p225 = scmp.eq.s32.totalorder %s40, 1
      %p226 = por %p224, %p225
      %p227 = scmp.ne.s32.totalorder %s218, %s219
      %p228 = scmp.eq.s32.totalorder %s40, 0
      %p229 = por %p227, %p228
      %p230 = scmp.ne.s32.totalorder %s218, %s219
      %p231 = scmp.eq.s32.totalorder %s41, 1
      %p232 = por %p230, %p231
      %p234 = scmp.ne.s32.totalorder %s219, %s233
      %p235 = scmp.eq.s32.totalorder %s41, 0
      %p236 = por %p234, %p235
      %s238 = sadd.s32 %s237, 1
      %p241 = scmp.eq.s32.totalorder %s35, 1
      %p242 = scmp.ne.s32.totalorder %s237, %s239
      %p243 = scmp.eq.s32.totalorder %s35, 0
      %p244 = por %p242, %p243
      %p245 = scmp.ne.s32.totalorder %s237, %s239
      %p246 = scmp.eq.s32.totalorder %s40, 1
      %p247 = por %p245, %p246
      %p248 = scmp.ne.s32.totalorder %s239, %s240
      %p249 = scmp.eq.s32.totalorder %s40, 0
      %p250 = por %p248, %p249
      %p251 = scmp.ne.s32.totalorder %s239, %s240
      %p252 = scmp.eq.s32.totalorder %s41, 1
      %p253 = por %p251, %p252
      %p255 = scmp.ne.s32.totalorder %s240, %s254
      %p256 = scmp.eq.s32.totalorder %s41, 0
      %p257 = por %p255, %p256
      %s259 = sadd.s32 %s258, 1
      %p262 = scmp.eq.s32.totalorder %s35, 1
      %p263 = scmp.ne.s32.totalorder %s258, %s260
      %p264 = scmp.eq.s32.totalorder %s35, 0
      %p265 = por %p263, %p264
      %p266 = scmp.ne.s32.totalorder %s258, %s260
      %p267 = scmp.eq.s32.totalorder %s40, 1
      %p268 = por %p266, %p267
      %p269 = scmp.ne.s32.totalorder %s260, %s261
      %p270 = scmp.eq.s32.totalorder %s40, 0
      %p271 = por %p269, %p270
      %p272 = scmp.ne.s32.totalorder %s260, %s261
      %p273 = scmp.eq.s32.totalorder %s41, 1
      %p274 = por %p272, %p273
      %p276 = scmp.ne.s32.totalorder %s261, %s275
      %p277 = scmp.eq.s32.totalorder %s41, 0
      %p278 = por %p276, %p277
      %s280 = sadd.s32 %s279, 1
      %p283 = scmp.eq.s32.totalorder %s35, 1
      %p284 = scmp.ne.s32.totalorder %s279, %s281
      %p285 = scmp.eq.s32.totalorder %s35, 0
      %p286 = por %p284, %p285
      %p287 = scmp.ne.s32.totalorder %s279, %s281
      %p288 = scmp.eq.s32.totalorder %s40, 1
      %p289 = por %p287, %p288
      %p290 = scmp.ne.s32.totalorder %s281, %s282
      %p291 = scmp.eq.s32.totalorder %s40, 0
      %p292 = por %p290, %p291
      %p293 = scmp.ne.s32.totalorder %s281, %s282
      %p294 = scmp.eq.s32.totalorder %s41, 1
      %p295 = por %p293, %p294
      %p297 = scmp.ne.s32.totalorder %s282, %s296
      %p298 = scmp.eq.s32.totalorder %s41, 0
      %p299 = por %p297, %p298
      %s301 = sadd.s32 %s300, 1
      %p304 = scmp.eq.s32.totalorder %s35, 1
      %p305 = scmp.ne.s32.totalorder %s300, %s302
      %p306 = scmp.eq.s32.totalorder %s35, 0
      %p307 = por %p305, %p306
      %p308 = scmp.ne.s32.totalorder %s300, %s302
      %p309 = scmp.eq.s32.totalorder %s40, 1
      %p310 = por %p308, %p309
      %p311 = scmp.ne.s32.totalorder %s302, %s303
      %p312 = scmp.eq.s32.totalorder %s40, 0
      %p313 = por %p311, %p312
      %p314 = scmp.ne.s32.totalorder %s302, %s303
      %p315 = scmp.eq.s32.totalorder %s41, 1
      %p316 = por %p314, %p315
      %p318 = scmp.ne.s32.totalorder %s303, %s317
      %p319 = scmp.eq.s32.totalorder %s41, 0
      %p320 = por %p318, %p319
      %s322 = sadd.s32 %s321, 1
      %p325 = scmp.eq.s32.totalorder %s35, 1
      %p326 = scmp.ne.s32.totalorder %s321, %s323
      %p327 = scmp.eq.s32.totalorder %s35, 0
      %p328 = por %p326, %p327
      %p329 = scmp.ne.s32.totalorder %s321, %s323
      %p330 = scmp.eq.s32.totalorder %s40, 1
      %p331 = por %p329, %p330
      %p332 = scmp.ne.s32.totalorder %s323, %s324
      %p333 = scmp.eq.s32.totalorder %s40, 0
      %p334 = por %p332, %p333
      %p335 = scmp.ne.s32.totalorder %s323, %s324
      %p336 = scmp.eq.s32.totalorder %s41, 1
      %p337 = por %p335, %p336
      %p339 = scmp.ne.s32.totalorder %s324, %s338
      %p340 = scmp.eq.s32.totalorder %s41, 0
      %p341 = por %p339, %p340
      %s343 = sadd.s32 %s342, 1
      %p346 = scmp.eq.s32.totalorder %s35, 1
      %p347 = scmp.ne.s32.totalorder %s342, %s344
      %p348 = scmp.eq.s32.totalorder %s35, 0
      %p349 = por %p347, %p348
      %p350 = scmp.ne.s32.totalorder %s342, %s344
      %p351 = scmp.eq.s32.totalorder %s40, 1
      %p352 = por %p350, %p351
      %p353 = scmp.ne.s32.totalorder %s344, %s345
      %p354 = scmp.eq.s32.totalorder %s40, 0
      %p355 = por %p353, %p354
      %p356 = scmp.ne.s32.totalorder %s344, %s345
      %p357 = scmp.eq.s32.totalorder %s41, 1
      %p358 = por %p356, %p357
      %p360 = scmp.ne.s32.totalorder %s345, %s359
      %p361 = scmp.eq.s32.totalorder %s41, 0
      %p362 = por %p360, %p361
      %s364 = sadd.s32 %s363, 1
      %p367 = scmp.eq.s32.totalorder %s35, 1
      %p368 = scmp.ne.s32.totalorder %s363, %s365
      %p369 = scmp.eq.s32.totalorder %s35, 0
      %p370 = por %p368, %p369
      %p371 = scmp.ne.s32.totalorder %s363, %s365
      %p372 = scmp.eq.s32.totalorder %s40, 1
      %p373 = por %p371, %p372
      %p374 = scmp.ne.s32.totalorder %s365, %s366
      %p375 = scmp.eq.s32.totalorder %s40, 0
      %p376 = por %p374, %p375
      %p377 = scmp.ne.s32.totalorder %s365, %s366
      %p378 = scmp.eq.s32.totalorder %s41, 1
      %p379 = por %p377, %p378
      %p381 = scmp.ne.s32.totalorder %s366, %s380
      %p382 = scmp.eq.s32.totalorder %s41, 0
      %p383 = por %p381, %p382
      %s385 = sadd.s32 %s384, 1
      %p388 = scmp.eq.s32.totalorder %s35, 1
      %p389 = scmp.ne.s32.totalorder %s384, %s386
      %p390 = scmp.eq.s32.totalorder %s35, 0
      %p391 = por %p389, %p390
      %p392 = scmp.ne.s32.totalorder %s384, %s386
      %p393 = scmp.eq.s32.totalorder %s40, 1
      %p394 = por %p392, %p393
      %p395 = scmp.ne.s32.totalorder %s386, %s387
      %p396 = scmp.eq.s32.totalorder %s40, 0
      %p397 = por %p395, %p396
      %p398 = scmp.ne.s32.totalorder %s386, %s387
      %p399 = scmp.eq.s32.totalorder %s41, 1
      %p400 = por %p398, %p399
      %p402 = scmp.ne.s32.totalorder %s387, %s401
      %p403 = scmp.eq.s32.totalorder %s41, 0
      %p404 = por %p402, %p403
      %s406 = sadd.s32 %s405, 1
      %p409 = scmp.eq.s32.totalorder %s35, 1
      %p410 = scmp.ne.s32.totalorder %s405, %s407
      %p411 = scmp.eq.s32.totalorder %s35, 0
      %p412 = por %p410, %p411
      %p413 = scmp.ne.s32.totalorder %s405, %s407
      %p414 = scmp.eq.s32.totalorder %s40, 1
      %p415 = por %p413, %p414
      %p416 = scmp.ne.s32.totalorder %s407, %s408
      %p417 = scmp.eq.s32.totalorder %s40, 0
      %p418 = por %p416, %p417
      %p419 = scmp.ne.s32.totalorder %s407, %s408
      %p420 = scmp.eq.s32.totalorder %s41, 1
      %p421 = por %p419, %p420
      %p423 = scmp.ne.s32.totalorder %s408, %s422
      %p424 = scmp.eq.s32.totalorder %s41, 0
      %p425 = por %p423, %p424
      %s427 = sadd.s32 %s426, 1
      %p430 = scmp.eq.s32.totalorder %s35, 1
      %p431 = scmp.ne.s32.totalorder %s426, %s428
      %p432 = scmp.eq.s32.totalorder %s35, 0
      %p433 = por %p431, %p432
      %p434 = scmp.ne.s32.totalorder %s426, %s428
      %p435 = scmp.eq.s32.totalorder %s40, 1
      %p436 = por %p434, %p435
      %p437 = scmp.ne.s32.totalorder %s428, %s429
      %p438 = scmp.eq.s32.totalorder %s40, 0
      %p439 = por %p437, %p438
      %p440 = scmp.ne.s32.totalorder %s428, %s429
      %p441 = scmp.eq.s32.totalorder %s41, 1
      %p442 = por %p440, %p441
      %p444 = scmp.ne.s32.totalorder %s429, %s443
      %p445 = scmp.eq.s32.totalorder %s41, 0
      %p446 = por %p444, %p445
      %s448 = sadd.s32 %s447, 1
      %p451 = scmp.eq.s32.totalorder %s35, 1
      %p452 = scmp.ne.s32.totalorder %s447, %s449
      %p453 = scmp.eq.s32.totalorder %s35, 0
      %p454 = por %p452, %p453
      %p455 = scmp.ne.s32.totalorder %s447, %s449
      %p456 = scmp.eq.s32.totalorder %s40, 1
      %p457 = por %p455, %p456
      %p458 = scmp.ne.s32.totalorder %s449, %s450
      %p459 = scmp.eq.s32.totalorder %s40, 0
      %p460 = por %p458, %p459
      %p461 = scmp.ne.s32.totalorder %s449, %s450
      %p462 = scmp.eq.s32.totalorder %s41, 1
      %p463 = por %p461, %p462
      %p465 = scmp.ne.s32.totalorder %s450, %s464
      %p466 = scmp.eq.s32.totalorder %s41, 0
      %p467 = por %p465, %p466
      %s469 = sadd.s32 %s468, 1
      %p472 = scmp.eq.s32.totalorder %s35, 1
      %p473 = scmp.ne.s32.totalorder %s468, %s470
      %p474 = scmp.eq.s32.totalorder %s35, 0
      %p475 = por %p473, %p474
      %p476 = scmp.ne.s32.totalorder %s468, %s470
      %p477 = scmp.eq.s32.totalorder %s40, 1
      %p478 = por %p476, %p477
      %p479 = scmp.ne.s32.totalorder %s470, %s471
      %p480 = scmp.eq.s32.totalorder %s40, 0
      %p481 = por %p479, %p480
      %p482 = scmp.ne.s32.totalorder %s470, %s471
      %p483 = scmp.eq.s32.totalorder %s41, 1
      %p484 = por %p482, %p483
      %p486 = scmp.ne.s32.totalorder %s471, %s485
      %p487 = scmp.eq.s32.totalorder %s41, 0
      %p488 = por %p486, %p487
      %s490 = sadd.s32 %s489, 1
      %p493 = scmp.eq.s32.totalorder %s35, 1
      %p494 = scmp.ne.s32.totalorder %s489, %s491
      %p495 = scmp.eq.s32.totalorder %s35, 0
      %p496 = por %p494, %p495
      %p497 = scmp.ne.s32.totalorder %s489, %s491
      %p498 = scmp.eq.s32.totalorder %s40, 1
      %p499 = por %p497, %p498
      %p500 = scmp.ne.s32.totalorder %s491, %s492
      %p501 = scmp.eq.s32.totalorder %s40, 0
      %p502 = por %p500, %p501
      %p503 = scmp.ne.s32.totalorder %s491, %s492
      %p504 = scmp.eq.s32.totalorder %s41, 1
      %p505 = por %p503, %p504
      %p507 = scmp.ne.s32.totalorder %s492, %s506
      %p508 = scmp.eq.s32.totalorder %s41, 0
      %p509 = por %p507, %p508
      %s511 = sadd.s32 %s510, 1
      %p514 = scmp.eq.s32.totalorder %s35, 1
      %p515 = scmp.ne.s32.totalorder %s510, %s512
      %p516 = scmp.eq.s32.totalorder %s35, 0
      %p517 = por %p515, %p516
      %p518 = scmp.ne.s32.totalorder %s510, %s512
      %p519 = scmp.eq.s32.totalorder %s40, 1
      %p520 = por %p518, %p519
      %p521 = scmp.ne.s32.totalorder %s512, %s513
      %p522 = scmp.eq.s32.totalorder %s40, 0
      %p523 = por %p521, %p522
      %p524 = scmp.ne.s32.totalorder %s512, %s513
      %p525 = scmp.eq.s32.totalorder %s41, 1
      %p526 = por %p524, %p525
      %p528 = scmp.ne.s32.totalorder %s513, %s527
      %p529 = scmp.eq.s32.totalorder %s41, 0
      %p530 = por %p528, %p529
      %s532 = sadd.s32 %s531, 1
      %p535 = scmp.eq.s32.totalorder %s35, 1
      %p536 = scmp.ne.s32.totalorder %s531, %s533
      %p537 = scmp.eq.s32.totalorder %s35, 0
      %p538 = por %p536, %p537
      %p539 = scmp.ne.s32.totalorder %s531, %s533
      %p540 = scmp.eq.s32.totalorder %s40, 1
      %p541 = por %p539, %p540
      %p542 = scmp.ne.s32.totalorder %s533, %s534
      %p543 = scmp.eq.s32.totalorder %s40, 0
      %p544 = por %p542, %p543
      %p545 = scmp.ne.s32.totalorder %s533, %s534
      %p546 = scmp.eq.s32.totalorder %s41, 1
      %p547 = por %p545, %p546
      %p549 = scmp.ne.s32.totalorder %s534, %s548
      %p550 = scmp.eq.s32.totalorder %s41, 0
      %p551 = por %p549, %p550
      %s553 = sadd.s32 %s552, 1
      %p556 = scmp.eq.s32.totalorder %s35, 1
      %p557 = scmp.ne.s32.totalorder %s552, %s554
      %p558 = scmp.eq.s32.totalorder %s35, 0
      %p559 = por %p557, %p558
      %p560 = scmp.ne.s32.totalorder %s552, %s554
      %p561 = scmp.eq.s32.totalorder %s40, 1
      %p562 = por %p560, %p561
      %p563 = scmp.ne.s32.totalorder %s554, %s555
      %p564 = scmp.eq.s32.totalorder %s40, 0
      %p565 = por %p563, %p564
      %p566 = scmp.ne.s32.totalorder %s554, %s555
      %p567 = scmp.eq.s32.totalorder %s41, 1
      %p568 = por %p566, %p567
      %p570 = scmp.ne.s32.totalorder %s555, %s569
      %p571 = scmp.eq.s32.totalorder %s41, 0
      %p572 = por %p570, %p571
      %s574 = sadd.s32 %s573, 1
      %p577 = scmp.eq.s32.totalorder %s35, 1
      %p578 = scmp.ne.s32.totalorder %s573, %s575
      %p579 = scmp.eq.s32.totalorder %s35, 0
      %p580 = por %p578, %p579
      %p581 = scmp.ne.s32.totalorder %s573, %s575
      %p582 = scmp.eq.s32.totalorder %s40, 1
      %p583 = por %p581, %p582
      %p584 = scmp.ne.s32.totalorder %s575, %s576
      %p585 = scmp.eq.s32.totalorder %s40, 0
      %p586 = por %p584, %p585
      %p587 = scmp.ne.s32.totalorder %s575, %s576
      %p588 = scmp.eq.s32.totalorder %s41, 1
      %p589 = por %p587, %p588
      %p591 = scmp.ne.s32.totalorder %s576, %s590
      %p592 = scmp.eq.s32.totalorder %s41, 0
      %p593 = por %p591, %p592
      %s594 = ssub.s32 %s35, %s42
      %p595 = scmp.eq.s32.totalorder %s594, 0
      %s597 = sadd.s32 %s596, 1
      %s598 = scalar_select %p595, %s596, %s597
      %p601 = pneg %p595
      %p602 = scmp.eq.s32.totalorder %s35, 1
      %p603 = por %p601, %p602
      %p604 = scmp.ne.s32.totalorder %s596, %s599
      %p605 = scmp.eq.s32.totalorder %s35, 0
      %p606 = por %p604, %p605
      %p607 = scmp.ne.s32.totalorder %s596, %s599
      %p608 = scmp.eq.s32.totalorder %s40, 1
      %p609 = por %p607, %p608
      %p610 = scmp.ne.s32.totalorder %s599, %s600
      %p611 = scmp.eq.s32.totalorder %s40, 0
      %p612 = por %p610, %p611
      %p613 = scmp.ne.s32.totalorder %s599, %s600
      %p614 = scmp.eq.s32.totalorder %s41, 1
      %p615 = por %p613, %p614
      %p617 = scmp.ne.s32.totalorder %s600, %s616
      %p618 = scmp.eq.s32.totalorder %s41, 0
      %p619 = por %p617, %p618
      %p620 = scmp.le.s32.totalorder 1, %s35
      %p621 = scmp.lt.s32.totalorder %s35, 3
      %p622 = pnand %p620, %p621
      %p623 = pneg %p622
      // Predicated region
      $region9: #{traffic_light_classifier_forward.1} parent=5 // pred_check
        _
      $region10: #{traffic_light_classifier_forward.1} parent=5 // pred_check_branch
        %625 = sbr.rel (%p622) target = $region12
      $region11: #{traffic_light_classifier_forward.1} parent=5 // pred_region
        %s626 = ssub.s32 %s35, 1
        // Predicated region
        $region13: #{traffic_light_classifier_forward.1} parent=11 // pred_check
          %p627 = pneg %p82
        $region14: #{traffic_light_classifier_forward.1} parent=11 // pred_check_branch
          %629 = sbr.rel (%p627) target = $region16
        $region15: #{traffic_light_classifier_forward.1} parent=11 // pred_region
          _
        $region16: #{traffic_light_classifier_forward.1} parent=11 // pred_fallthru
          _
        // Predicated region
        $region17: #{traffic_light_classifier_forward.1} parent=11 // pred_check
          %p630 = pneg %p103
        $region18: #{traffic_light_classifier_forward.1} parent=11 // pred_check_branch
          %632 = sbr.rel (%p630) target = $region20
        $region19: #{traffic_light_classifier_forward.1} parent=11 // pred_region
          _
        $region20: #{traffic_light_classifier_forward.1} parent=11 // pred_fallthru
          _
        // Predicated region
        $region21: #{traffic_light_classifier_forward.1} parent=11 // pred_check
          %p633 = pneg %p124
        $region22: #{traffic_light_classifier_forward.1} parent=11 // pred_check_branch
          %635 = sbr.rel (%p633) target = $region24
        $region23: #{traffic_light_classifier_forward.1} parent=11 // pred_region
          _
        $region24: #{traffic_light_classifier_forward.1} parent=11 // pred_fallthru
          _
        // Predicated region
        $region25: #{traffic_light_classifier_forward.1} parent=11 // pred_check
          %p636 = pneg %p145
        $region26: #{traffic_light_classifier_forward.1} parent=11 // pred_check_branch
          %638 = sbr.rel (%p636) target = $region28
        $region27: #{traffic_light_classifier_forward.1} parent=11 // pred_region
          _
        $region28: #{traffic_light_classifier_forward.1} parent=11 // pred_fallthru
          _
        // Predicated region
        $region29: #{traffic_light_classifier_forward.1} parent=11 // pred_check
          %p639 = pneg %p166
        $region30: #{traffic_light_classifier_forward.1} parent=11 // pred_check_branch
          %641 = sbr.rel (%p639) target = $region32
        $region31: #{traffic_light_classifier_forward.1} parent=11 // pred_region
          _
        $region32: #{traffic_light_classifier_forward.1} parent=11 // pred_fallthru
          _
        // Predicated region
        $region33: #{traffic_light_classifier_forward.1} parent=11 // pred_check
          %p642 = pneg %p187
        $region34: #{traffic_light_classifier_forward.1} parent=11 // pred_check_branch
          %644 = sbr.rel (%p642) target = $region36
        $region35: #{traffic_light_classifier_forward.1} parent=11 // pred_region
          _
        $region36: #{traffic_light_classifier_forward.1} parent=11 // pred_fallthru
          _
        // Predicated region
        $region37: #{traffic_light_classifier_forward.1} parent=11 // pred_check
          %p645 = pneg %p208
        $region38: #{traffic_light_classifier_forward.1} parent=11 // pred_check_branch
          %647 = sbr.rel (%p645) target = $region40
        $region39: #{traffic_light_classifier_forward.1} parent=11 // pred_region
          _
        $region40: #{traffic_light_classifier_forward.1} parent=11 // pred_fallthru
          _
        // Predicated region
        $region41: #{traffic_light_classifier_forward.1} parent=11 // pred_check
          %p648 = pneg %p229
        $region42: #{traffic_light_classifier_forward.1} parent=11 // pred_check_branch
          %650 = sbr.rel (%p648) target = $region44
        $region43: #{traffic_light_classifier_forward.1} parent=11 // pred_region
          _
        $region44: #{traffic_light_classifier_forward.1} parent=11 // pred_fallthru
          _
        // Predicated region
        $region45: #{traffic_light_classifier_forward.1} parent=11 // pred_check
          %p651 = pneg %p250
        $region46: #{traffic_light_classifier_forward.1} parent=11 // pred_check_branch
          %653 = sbr.rel (%p651) target = $region48
        $region47: #{traffic_light_classifier_forward.1} parent=11 // pred_region
          _
        $region48: #{traffic_light_classifier_forward.1} parent=11 // pred_fallthru
          _
        // Predicated region
        $region49: #{traffic_light_classifier_forward.1} parent=11 // pred_check
          %p654 = pneg %p271
        $region50: #{traffic_light_classifier_forward.1} parent=11 // pred_check_branch
          %656 = sbr.rel (%p654) target = $region52
        $region51: #{traffic_light_classifier_forward.1} parent=11 // pred_region
          _
        $region52: #{traffic_light_classifier_forward.1} parent=11 // pred_fallthru
          _
        // Predicated region
        $region53: #{traffic_light_classifier_forward.1} parent=11 // pred_check
          %p657 = pneg %p292
        $region54: #{traffic_light_classifier_forward.1} parent=11 // pred_check_branch
          %659 = sbr.rel (%p657) target = $region56
        $region55: #{traffic_light_classifier_forward.1} parent=11 // pred_region
          _
        $region56: #{traffic_light_classifier_forward.1} parent=11 // pred_fallthru
          _
        // Predicated region
        $region57: #{traffic_light_classifier_forward.1} parent=11 // pred_check
          %p660 = pneg %p313
        $region58: #{traffic_light_classifier_forward.1} parent=11 // pred_check_branch
          %662 = sbr.rel (%p660) target = $region60
        $region59: #{traffic_light_classifier_forward.1} parent=11 // pred_region
          _
        $region60: #{traffic_light_classifier_forward.1} parent=11 // pred_fallthru
          _
        // Predicated region
        $region61: #{traffic_light_classifier_forward.1} parent=11 // pred_check
          %p663 = pneg %p334
        $region62: #{traffic_light_classifier_forward.1} parent=11 // pred_check_branch
          %665 = sbr.rel (%p663) target = $region64
        $region63: #{traffic_light_classifier_forward.1} parent=11 // pred_region
          _
        $region64: #{traffic_light_classifier_forward.1} parent=11 // pred_fallthru
          _
        // Predicated region
        $region65: #{traffic_light_classifier_forward.1} parent=11 // pred_check
          %p666 = pneg %p355
        $region66: #{traffic_light_classifier_forward.1} parent=11 // pred_check_branch
          %668 = sbr.rel (%p666) target = $region68
        $region67: #{traffic_light_classifier_forward.1} parent=11 // pred_region
          _
        $region68: #{traffic_light_classifier_forward.1} parent=11 // pred_fallthru
          _
        // Predicated region
        $region69: #{traffic_light_classifier_forward.1} parent=11 // pred_check
          %p669 = pneg %p376
        $region70: #{traffic_light_classifier_forward.1} parent=11 // pred_check_branch
          %671 = sbr.rel (%p669) target = $region72
        $region71: #{traffic_light_classifier_forward.1} parent=11 // pred_region
          _
        $region72: #{traffic_light_classifier_forward.1} parent=11 // pred_fallthru
          _
        // Predicated region
        $region73: #{traffic_light_classifier_forward.1} parent=11 // pred_check
          %p672 = pneg %p397
        $region74: #{traffic_light_classifier_forward.1} parent=11 // pred_check_branch
          %674 = sbr.rel (%p672) target = $region76
        $region75: #{traffic_light_classifier_forward.1} parent=11 // pred_region
          _
        $region76: #{traffic_light_classifier_forward.1} parent=11 // pred_fallthru
          _
        // Predicated region
        $region77: #{traffic_light_classifier_forward.1} parent=11 // pred_check
          %p675 = pneg %p418
        $region78: #{traffic_light_classifier_forward.1} parent=11 // pred_check_branch
          %677 = sbr.rel (%p675) target = $region80
        $region79: #{traffic_light_classifier_forward.1} parent=11 // pred_region
          _
        $region80: #{traffic_light_classifier_forward.1} parent=11 // pred_fallthru
          _
        // Predicated region
        $region81: #{traffic_light_classifier_forward.1} parent=11 // pred_check
          %p678 = pneg %p439
        $region82: #{traffic_light_classifier_forward.1} parent=11 // pred_check_branch
          %680 = sbr.rel (%p678) target = $region84
        $region83: #{traffic_light_classifier_forward.1} parent=11 // pred_region
          _
        $region84: #{traffic_light_classifier_forward.1} parent=11 // pred_fallthru
          _
        // Predicated region
        $region85: #{traffic_light_classifier_forward.1} parent=11 // pred_check
          %p681 = pneg %p460
        $region86: #{traffic_light_classifier_forward.1} parent=11 // pred_check_branch
          %683 = sbr.rel (%p681) target = $region88
        $region87: #{traffic_light_classifier_forward.1} parent=11 // pred_region
          _
        $region88: #{traffic_light_classifier_forward.1} parent=11 // pred_fallthru
          _
        // Predicated region
        $region89: #{traffic_light_classifier_forward.1} parent=11 // pred_check
          %p684 = pneg %p481
        $region90: #{traffic_light_classifier_forward.1} parent=11 // pred_check_branch
          %686 = sbr.rel (%p684) target = $region92
        $region91: #{traffic_light_classifier_forward.1} parent=11 // pred_region
          _
        $region92: #{traffic_light_classifier_forward.1} parent=11 // pred_fallthru
          _
        // Predicated region
        $region93: #{traffic_light_classifier_forward.1} parent=11 // pred_check
          %p687 = pneg %p502
        $region94: #{traffic_light_classifier_forward.1} parent=11 // pred_check_branch
          %689 = sbr.rel (%p687) target = $region96
        $region95: #{traffic_light_classifier_forward.1} parent=11 // pred_region
          _
        $region96: #{traffic_light_classifier_forward.1} parent=11 // pred_fallthru
          _
        // Predicated region
        $region97: #{traffic_light_classifier_forward.1} parent=11 // pred_check
          %p690 = pneg %p523
        $region98: #{traffic_light_classifier_forward.1} parent=11 // pred_check_branch
          %692 = sbr.rel (%p690) target = $region100
        $region99: #{traffic_light_classifier_forward.1} parent=11 // pred_region
          _
        $region100: #{traffic_light_classifier_forward.1} parent=11 // pred_fallthru
          _
        // Predicated region
        $region101: #{traffic_light_classifier_forward.1} parent=11 // pred_check
          %p693 = pneg %p544
        $region102: #{traffic_light_classifier_forward.1} parent=11 // pred_check_branch
          %695 = sbr.rel (%p693) target = $region104
        $region103: #{traffic_light_classifier_forward.1} parent=11 // pred_region
          _
        $region104: #{traffic_light_classifier_forward.1} parent=11 // pred_fallthru
          _
        // Predicated region
        $region105: #{traffic_light_classifier_forward.1} parent=11 // pred_check
          %p696 = pneg %p565
        $region106: #{traffic_light_classifier_forward.1} parent=11 // pred_check_branch
          %698 = sbr.rel (%p696) target = $region108
        $region107: #{traffic_light_classifier_forward.1} parent=11 // pred_region
          _
        $region108: #{traffic_light_classifier_forward.1} parent=11 // pred_fallthru
          _
        // Predicated region
        $region109: #{traffic_light_classifier_forward.1} parent=11 // pred_check
          %p699 = pneg %p586
        $region110: #{traffic_light_classifier_forward.1} parent=11 // pred_check_branch
          %701 = sbr.rel (%p699) target = $region112
        $region111: #{traffic_light_classifier_forward.1} parent=11 // pred_region
          _
        $region112: #{traffic_light_classifier_forward.1} parent=11 // pred_fallthru
          _
      $region12: #{traffic_light_classifier_forward.1} parent=5 // pred_fallthru
        _
      %p702 = scmp.lt.s32.totalorder %s35, 2
      // Predicated region
      $region113: #{traffic_light_classifier_forward.1} parent=5 // pred_check
        %p703 = pneg %p702
      $region114: #{traffic_light_classifier_forward.1} parent=5 // pred_check_branch
        %705 = sbr.rel (%p703) target = $region116
      $region115: #{traffic_light_classifier_forward.1} parent=5 // pred_region
        // Predicated region
        $region117: #{traffic_light_classifier_forward.1} parent=115 // pred_check
          %p706 = pneg %p55
        $region118: #{traffic_light_classifier_forward.1} parent=115 // pred_check_branch
          %708 = sbr.rel (%p706) target = $region120
        $region119: #{traffic_light_classifier_forward.1} parent=115 // pred_region
          %p709 = scmp.lt.s32.totalorder %s35, 1
          %s710 = scalar_select %p709, %s35, 1
          %s711 = smul.addr %s710, 6
          %s712 = smul.addr %s711, 4
          %s713 = scalar_lea.vmem %s0, %s712
        $region120: #{traffic_light_classifier_forward.1} parent=115 // pred_fallthru
          _
      $region116: #{traffic_light_classifier_forward.1} parent=5 // pred_fallthru
        _
      %p714 = scmp.le.s32.totalorder 1, %s35
      %p715 = scmp.lt.s32.totalorder %s35, 3
      %p716 = pnand %p714, %p715
      %p717 = pneg %p716
      // Predicated region
      $region121: #{traffic_light_classifier_forward.1} parent=5 // pred_check
        _
      $region122: #{traffic_light_classifier_forward.1} parent=5 // pred_check_branch
        %719 = sbr.rel (%p716) target = $region124
      $region123: #{traffic_light_classifier_forward.1} parent=5 // pred_region
        %s720 = ssub.s32 %s35, 1
        %p721 = scmp.lt.s32.totalorder %s40, 1
        %s722 = scalar_select %p721, %s40, 1
        %s723 = smul.addr %s722, 6
        %s724 = smul.addr %s723, 4
        %s725 = scalar_lea.vmem %s0, %s724
        %p726 = pneg %p61
        %p727 = pneg %p58
        %p728 = pneg %p82
        %p729 = pneg %p79
        %p730 = pneg %p103
        %p731 = pneg %p100
        %p732 = pneg %p124
        %p733 = pneg %p121
        %p734 = pneg %p145
        %p735 = pneg %p142
        %p736 = pneg %p166
        %p737 = pneg %p163
        %p738 = pneg %p187
        %p739 = pneg %p184
        %p740 = pneg %p208
        %p741 = pneg %p205
        %p742 = pneg %p229
        %p743 = pneg %p226
        %p744 = pneg %p250
        %p745 = pneg %p247
        %p746 = pneg %p271
        %p747 = pneg %p268
        %p748 = pneg %p292
        %p749 = pneg %p289
        %p750 = pneg %p313
        %p751 = pneg %p310
        %p752 = pneg %p334
        %p753 = pneg %p331
        %p754 = pneg %p355
        %p755 = pneg %p352
        %p756 = pneg %p376
        %p757 = pneg %p373
        %p758 = pneg %p397
        %p759 = pneg %p394
        %p760 = pneg %p418
        %p761 = pneg %p415
        %p762 = pneg %p439
        %p763 = pneg %p436
        %p764 = pneg %p460
        %p765 = pneg %p457
        %p766 = pneg %p481
        %p767 = pneg %p478
        %p768 = pneg %p502
        %p769 = pneg %p499
        %p770 = pneg %p523
        %p771 = pneg %p520
        %p772 = pneg %p544
        %p773 = pneg %p541
        %p774 = pneg %p565
        %p775 = pneg %p562
        %p776 = pneg %p586
        %p777 = pneg %p583
        %p778 = pneg %p612
        %p779 = pneg %p609
        %s780 = sand.u32 %s599, 1
        %s781 = scalar_lea.sflag [#allocation3], %s780
        %s782 = sand.u32 %s599, 1
        %s783 = scalar_lea.vmem [#allocation2], %s782
        %p784 = scmp.lt.s32.totalorder %s40, 1
        %s785 = scalar_select %p784, %s40, 1
        %s786 = smul.addr %s785, 6
        %s787 = smul.addr %s786, 4
        %s788 = scalar_lea.vmem %s0, %s787
        %v790 = vld [vmem:[%s788] sm:$0xff]
        %v791 = vld [vmem:[%s788 + $0x8] sm:$0xff]
        %v792 = vld [vmem:[%s788 + $0x10] sm:$0x11]
        %v793 = vld [vmem:[%s2] sm:$0xf]
        %v794 = vld [vmem:[%s2 + $0x4] sm:$0xf]
        %v795 = vld [vmem:[%s2 + $0x8] sm:$0xf]
        %v796 = vld [vmem:[%s2 + $0xc] sm:$0xf]
        %v797 = vld [vmem:[%s2 + $0x10] sm:$0xf]
        %v798 = vld [vmem:[%s2 + $0x14] sm:$0xf]
        %v799 = vld [vmem:[%s2 + $0x18] sm:$0xf]
        %v800 = vld [vmem:[%s2 + $0x1c] sm:$0xf]
        %v801 = vld [vmem:[%s2 + $0x20] sm:$0xf]
        %v802 = vld [vmem:[%s2 + $0x24] sm:$0xf]
        %v803 = vld [vmem:[%s2 + $0x28] sm:$0xf]
        %v804 = vld [vmem:[%s2 + $0x2c] sm:$0xf]
        %v805 = vld [vmem:[%s2 + $0x30] sm:$0xf]
        %v806 = vld [vmem:[%s2 + $0x34] sm:$0xf]
        %v807 = vld [vmem:[%s2 + $0x38] sm:$0xf]
        %v808 = vld [vmem:[%s2 + $0x3c] sm:$0xf]
        %v809 = vld [vmem:[%s2 + $0x40] sm:$0xf]
        %v810 = vld [vmem:[%s2 + $0x44] sm:$0xf]
        %v811 = vld [vmem:[%s2 + $0x48] sm:$0xf]
        %v812 = vld [vmem:[%s2 + $0x4c] sm:$0xf]
        %v813 = vld [vmem:[%s2 + $0x50] sm:$0xf]
        %v814 = vld [vmem:[%s2 + $0x54] sm:$0xf]
        %v815 = vld [vmem:[%s2 + $0x58] sm:$0xf]
        %v816 = vld [vmem:[%s2 + $0x5c] sm:$0xf]
        %v817 = vld [vmem:[%s1] sm:$0xf]
        %v818 = vld [vmem:[%s1 + $0x4] sm:$0xf]
        %v819 = vld [vmem:[%s1 + $0x8] sm:$0x1]
        %v820 = vunpack.c.l.bf16 %v817
        %v821 = vunpack.c.l.bf16 %v818
        %v822 = vunpack.c.l.bf16 %v819
        %v826 = vunpack.c.l.b16 %v790
        %v827 = vunpack.c.h.b16 %v790
        %v828 = vunpack.c.l.b16 %v791
        %v829 = vunpack.c.h.b16 %v791
        %v830 = vunpack.c.l.b16 %v792
        %v831 = vunpack.c.h.b16 %v792
        %v832 = vpack.c.b16 %v828, %v826
        %v833 = vpack.c.b16 %v829, %v827
        %v834 = vpack.c.b16 %v830, %v830
        %v835 = vpack.c.b16 %v831, %v831
        %v862 = vunpack.c.l.b16 %v793
        %v863 = vunpack.c.l.b16 %v794
        %v864 = vunpack.c.l.b16 %v795
        %v865 = vunpack.c.l.b16 %v796
        %v866 = vunpack.c.l.b16 %v797
        %v867 = vunpack.c.l.b16 %v798
        %v868 = vunpack.c.l.b16 %v799
        %v869 = vunpack.c.l.b16 %v800
        %v870 = vunpack.c.l.b16 %v801
        %v871 = vunpack.c.l.b16 %v802
        %v872 = vunpack.c.l.b16 %v803
        %v873 = vunpack.c.l.b16 %v804
        %v874 = vunpack.c.l.b16 %v805
        %v875 = vunpack.c.l.b16 %v806
        %v876 = vunpack.c.l.b16 %v807
        %v877 = vunpack.c.l.b16 %v808
        %v878 = vunpack.c.l.b16 %v809
        %v879 = vunpack.c.l.b16 %v810
        %v880 = vunpack.c.l.b16 %v811
        %v881 = vunpack.c.l.b16 %v812
        %v882 = vunpack.c.l.b16 %v813
        %v883 = vunpack.c.l.b16 %v814
        %v884 = vunpack.c.l.b16 %v815
        %v885 = vunpack.c.l.b16 %v816
        %v886 = vpack.c.b16 %v863, %v862
        %v887 = vpack.c.b16 %v865, %v864
        %v888 = vpack.c.b16 %v867, %v866
        %v889 = vpack.c.b16 %v869, %v868
        %v890 = vpack.c.b16 %v871, %v870
        %v891 = vpack.c.b16 %v873, %v872
        %v892 = vpack.c.b16 %v875, %v874
        %v893 = vpack.c.b16 %v877, %v876
        %v894 = vpack.c.b16 %v879, %v878
        %v895 = vpack.c.b16 %v881, %v880
        %v896 = vpack.c.b16 %v883, %v882
        %v897 = vpack.c.b16 %v885, %v884
        %vm910 = vcmask 523264
        %v912 = vsel %vm910, %v833, 0
        %v915 = vsel %vm910, %v835, 0
        %917 = vmatprep.subr.bf16.mxu0 0
        %918 = vmatpush1.bf16.msra.mxu0 %v886
        %919 = vmatprep.subr.bf16.mxu0 0
        %920 = vmatpush1.bf16.msra.mxu0 %v887
        %921 = vmatprep.subr.bf16.mxu0 0
        %922 = vmatpush1.bf16.msra.mxu0 %v888
        %923 = vmatprep.subr.bf16.mxu0 0
        %924 = vmatpush1.bf16.msra.mxu0 %v889
        %925 = vmatprep.subr.bf16.mxu0 0
        %926 = vmatpush1.bf16.msra.mxu0 %v890
        %927 = vmatprep.subr.bf16.mxu0 0
        %928 = vmatpush1.bf16.msra.mxu0 %v891
        %929 = vmatprep.subr.bf16.mxu0 0
        %930 = vmatpush1.bf16.msra.mxu0 %v892
        %931 = vmatprep.subr.bf16.mxu0 0
        %932 = vmatpush1.bf16.msra.mxu0 %v893
        %933 = vmatprep.subr.bf16.mxu0 0
        %934 = vmatpush1.bf16.msra.mxu0 %v894
        %935 = vmatprep.subr.bf16.mxu0 0
        %936 = vmatpush1.bf16.msra.mxu0 %v895
        %937 = vmatprep.subr.bf16.mxu0 0
        %938 = vmatpush1.bf16.msra.mxu0 %v896
        %939 = vmatprep.subr.bf16.mxu0 0
        %940 = vmatpush1.bf16.msra.mxu0 %v897
        %941 = vmatprep.subr.bf16.mxu0 0
        %942 = vmatpush1.bf16.msra.mxu0 0
        %943 = vmatprep.subr.bf16.mxu0 0
        %944 = vmatpush1.bf16.msra.mxu0 0
        %945 = vmatprep.subr.bf16.mxu0 0
        %946 = vmatpush1.bf16.msra.mxu0 0
        %947 = vmatprep.subr.bf16.mxu0 0
        %948 = vmatpush1.bf16.msra.mxu0 0
        %949 = vmatprep.mubr.bf16.mxu0 %v912
        %950 = vmatmul.mubr.bf16.gmra.mrb[0].mxu0 %v832
        %v951 = vpop.f32.mrb[0].mxu0
        %v952 = vadd.f32 %v820, %v951
        %v953 = vpop.f32.mrb[0].mxu0
        %v954 = vpop.f32.mrb[0].mxu0
        %v955 = vadd.f32 %v821, %v954
        %v956 = vpop.f32.mrb[0].mxu0
        %957 = vmatprep.mubr.bf16.mxu0 %v915
        %958 = vmatmul.mubr.bf16.gmra.mrb[0].mxu0 %v834
        %v959 = vpop.f32.mrb[0].mxu0
        %v960 = vadd.f32 %v822, %v959
        %v961 = vpop.f32.mrb[0].mxu0
        %v962 = vpop.f32.mrb[0].mxu0
        %v963 = vpop.f32.mrb[0].mxu0
        %964 = vdwg.mxu0
        %v965 = vld [vmem:[%s3] sm:$0x1]
        %v966 = vld [vmem:[%s4] sm:$0x1]
        %vm967 = vcmask 261120
        %v968 = vsel %vm967, %v952, 0.0
        %969 = vadd.xlane.f32.xlu0 %v968
        %v970 = vpop.xlane.xlu0 %969
        %v971 = vsel %vm967, %v955, 0.0
        %972 = vadd.xlane.f32.xlu0 %v971
        %v973 = vpop.xlane.xlu0 %972
        %vm974 = vcmask 253952
        %v975 = vsel %vm974, %v960, 0.0
        %976 = vadd.xlane.f32.xlu0 %v975
        %v977 = vpop.xlane.xlu0 %976
        %v978 = vrcp.pop 32.0
        %v979 = vmul.f32 %v970, %v978
        %v980 = vmul.f32 %v973, %v978
        %v981 = vmul.f32 %v977, %v978
        %v982 = vsub.f32 %v952, %v979
        %v983 = vsub.f32 %v955, %v980
        %v984 = vsub.f32 %v960, %v981
        %v985 = vmul.f32 %v982, %v982
        %v986 = vmul.f32 %v983, %v983
        %v987 = vmul.f32 %v984, %v984
        %v988 = vsel %vm967, %v985, 0.0
        %989 = vadd.xlane.f32.xlu0 %v988
        %v990 = vpop.xlane.xlu0 %989
        %v991 = vsel %vm967, %v986, 0.0
        %992 = vadd.xlane.f32.xlu0 %v991
        %v993 = vpop.xlane.xlu0 %992
        %v994 = vsel %vm974, %v987, 0.0
        %995 = vadd.xlane.f32.xlu0 %v994
        %v996 = vpop.xlane.xlu0 %995
        %v997 = vmul.f32 %v990, %v978
        %v998 = vmul.f32 %v993, %v978
        %v999 = vmul.f32 %v996, %v978
        %v1000 = vadd.f32 %v997, 1e-05
        %v1001 = vadd.f32 %v998, 1e-05
        %v1002 = vadd.f32 %v999, 1e-05
        %v1003 = vrsqrt.pop %v1000
        %v1004 = vrsqrt.pop %v1001
        %v1005 = vrsqrt.pop %v1002
        %v1006 = vmul.f32 %v982, %v1003
        %v1007 = vmul.f32 %v983, %v1004
        %v1008 = vmul.f32 %v984, %v1005
        %v1009 = vunpack.c.l.bf16 %v965
        %v1010 = vlaneseq
        %v1011 = vshrl.u32 %v1010, 7
        %v1012 = vsub.s32 0, %v1011
        %v1013 = vrot.slane %v1009, %v1012
        %v1014 = vmul.f32 %v1006, %v1013
        %v1015 = vmul.f32 %v1007, %v1013
        %v1016 = vmul.f32 %v1008, %v1013
        %v1017 = vunpack.c.l.bf16 %v966
        %v1018 = vlaneseq
        %v1019 = vshrl.u32 %v1018, 7
        %v1020 = vsub.s32 0, %v1019
        %v1021 = vrot.slane %v1017, %v1020
        %v1022 = vadd.f32 %v1014, %v1021
        %v1023 = vadd.f32 %v1015, %v1021
        %v1024 = vadd.f32 %v1016, %v1021
        %v1025 = vld [vmem:[%s9] sm:$0x1]
        %v1026 = vld [vmem:[%s10] sm:$0x1]
        %v1027 = vsel %vm967, %v1022, 0.0
        %1028 = vadd.xlane.f32.xlu0 %v1027
        %v1029 = vpop.xlane.xlu0 %1028
        %v1030 = vsel %vm967, %v1023, 0.0
        %1031 = vadd.xlane.f32.xlu0 %v1030
        %v1032 = vpop.xlane.xlu0 %1031
        %v1033 = vsel %vm974, %v1024, 0.0
        %1034 = vadd.xlane.f32.xlu0 %v1033
        %v1035 = vpop.xlane.xlu0 %1034
        %v1036 = vmul.f32 %v1029, %v978
        %v1037 = vmul.f32 %v1032, %v978
        %v1038 = vmul.f32 %v1035, %v978
        %v1039 = vsub.f32 %v1022, %v1036
        %v1040 = vsub.f32 %v1023, %v1037
        %v1041 = vsub.f32 %v1024, %v1038
        %v1042 = vmul.f32 %v1039, %v1039
        %v1043 = vmul.f32 %v1040, %v1040
        %v1044 = vmul.f32 %v1041, %v1041
        %v1045 = vsel %vm967, %v1042, 0.0
        %1046 = vadd.xlane.f32.xlu0 %v1045
        %v1047 = vpop.xlane.xlu0 %1046
        %v1048 = vsel %vm967, %v1043, 0.0
        %1049 = vadd.xlane.f32.xlu0 %v1048
        %v1050 = vpop.xlane.xlu0 %1049
        %v1051 = vsel %vm974, %v1044, 0.0
        %1052 = vadd.xlane.f32.xlu0 %v1051
        %v1053 = vpop.xlane.xlu0 %1052
        %v1054 = vmul.f32 %v1047, %v978
        %v1055 = vmul.f32 %v1050, %v978
        %v1056 = vmul.f32 %v1053, %v978
        %v1057 = vadd.f32 %v1054, 1e-05
        %v1058 = vadd.f32 %v1055, 1e-05
        %v1059 = vadd.f32 %v1056, 1e-05
        %v1060 = vrsqrt.pop %v1057
        %v1061 = vrsqrt.pop %v1058
        %v1062 = vrsqrt.pop %v1059
        %v1063 = vmul.f32 %v1039, %v1060
        %v1064 = vmul.f32 %v1040, %v1061
        %v1065 = vmul.f32 %v1041, %v1062
        %v1066 = vunpack.c.l.bf16 %v1025
        %v1067 = vlaneseq
        %v1068 = vshrl.u32 %v1067, 7
        %v1069 = vsub.s32 0, %v1068
        %v1070 = vrot.slane %v1066, %v1069
        %v1071 = vmul.f32 %v1063, %v1070
        %v1072 = vmul.f32 %v1064, %v1070
        %v1073 = vmul.f32 %v1065, %v1070
        %v1074 = vunpack.c.l.bf16 %v1026
        %v1075 = vlaneseq
        %v1076 = vshrl.u32 %v1075, 7
        %v1077 = vsub.s32 0, %v1076
        %v1078 = vrot.slane %v1074, %v1077
        %v1079 = vadd.f32 %v1071, %v1078
        %v1080 = vadd.f32 %v1072, %v1078
        %v1081 = vadd.f32 %v1073, %v1078
        %v1082 = vpack.c.bf16 %v1080, %v1079
        %v1083 = vpack.c.bf16 %v1081, %v1081
        %v1084 = vld [vmem:[%s5] sm:$0xf]
        %v1085 = vld [vmem:[%s5 + $0x4] sm:$0xf]
        %v1086 = vld [vmem:[%s5 + $0x8] sm:$0xf]
        %v1087 = vld [vmem:[%s5 + $0xc] sm:$0xf]
        %v1088 = vld [vmem:[%s6] sm:$0x1]
        %v1089 = vunpack.c.l.bf16 %v1088
        %v1090 = vlaneseq
        %v1091 = vshrl.u32 %v1090, 7
        %v1092 = vsub.s32 0, %v1091
        %v1093 = vrot.slane %v1089, %v1092
        %v1098 = vunpack.c.l.b16 %v1084
        %v1099 = vunpack.c.l.b16 %v1085
        %v1100 = vunpack.c.l.b16 %v1086
        %v1101 = vunpack.c.l.b16 %v1087
        %v1102 = vpack.c.b16 %v1099, %v1098
        %v1103 = vpack.c.b16 %v1101, %v1100
        %v1107 = vsel %vm967, %v1082, 0
        %v1110 = vsel %vm967, %v1083, 0
        %1112 = vmatprep.subr.bf16.mxu0 0
        %1113 = vmatpush1.bf16.msra.mxu0 %v1102
        %1114 = vmatprep.subr.bf16.mxu0 0
        %1115 = vmatpush1.bf16.msra.mxu0 %v1103
        %1116 = vmatprep.subr.bf16.mxu0 0
        %1117 = vmatpush1.bf16.msra.mxu0 0
        %1118 = vmatprep.subr.bf16.mxu0 0
        %1119 = vmatpush1.bf16.msra.mxu0 0
        %1120 = vmatprep.subr.bf16.mxu0 0
        %1121 = vmatpush1.bf16.msra.mxu0 0
        %1122 = vmatprep.subr.bf16.mxu0 0
        %1123 = vmatpush1.bf16.msra.mxu0 0
        %1124 = vmatprep.subr.bf16.mxu0 0
        %1125 = vmatpush1.bf16.msra.mxu0 0
        %1126 = vmatprep.subr.bf16.mxu0 0
        %1127 = vmatpush1.bf16.msra.mxu0 0
        %1128 = vmatprep.subr.bf16.mxu0 0
        %1129 = vmatpush1.bf16.msra.mxu0 0
        %1130 = vmatprep.subr.bf16.mxu0 0
        %1131 = vmatpush1.bf16.msra.mxu0 0
        %1132 = vmatprep.subr.bf16.mxu0 0
        %1133 = vmatpush1.bf16.msra.mxu0 0
        %1134 = vmatprep.subr.bf16.mxu0 0
        %1135 = vmatpush1.bf16.msra.mxu0 0
        %1136 = vmatprep.subr.bf16.mxu0 0
        %1137 = vmatpush1.bf16.msra.mxu0 0
        %1138 = vmatprep.subr.bf16.mxu0 0
        %1139 = vmatpush1.bf16.msra.mxu0 0
        %1140 = vmatprep.subr.bf16.mxu0 0
        %1141 = vmatpush1.bf16.msra.mxu0 0
        %1142 = vmatprep.subr.bf16.mxu0 0
        %1143 = vmatpush1.bf16.msra.mxu0 0
        %1144 = vmatprep.mubr.bf16.mxu0 0
        %1145 = vmatmul.mubr.bf16.gmra.mrb[0].mxu0 %v1107
        %v1146 = vpop.f32.mrb[0].mxu0
        %v1147 = vadd.f32 %v1093, %v1146
        %v1148 = vpop.f32.mrb[0].mxu0
        %v1149 = vpop.f32.mrb[0].mxu0
        %v1150 = vadd.f32 %v1093, %v1149
        %v1151 = vpop.f32.mrb[0].mxu0
        %1152 = vmatprep.mubr.bf16.mxu0 0
        %1153 = vmatmul.mubr.bf16.gmra.mrb[0].mxu0 %v1110
        %v1154 = vpop.f32.mrb[0].mxu0
        %v1155 = vadd.f32 %v1093, %v1154
        %v1156 = vpop.f32.mrb[0].mxu0
        %v1157 = vpop.f32.mrb[0].mxu0
        %v1158 = vpop.f32.mrb[0].mxu0
        %1159 = vdwg.mxu0
        %v1160 = vpack.c.bf16 %v1150, %v1147
        %v1161 = vpack.c.bf16 %v1155, %v1155
        %1164 = vrot.lane.b32.xlu0 %v1160, 96
        %v1165 = vpop.permute.xlu0 %1164
        %1166 = vrot.lane.b32.xlu0 %v1161, 96
        %v1167 = vpop.permute.xlu0 %1166
        %vm1168 = vcmask 64512
        %v1170 = vsel %vm1168, %v1160, 0
        %v1173 = vsel %vm1168, %v1161, 0
        %v1176 = vsel %vm1168, %v1165, 0
        %v1179 = vsel %vm1168, %v1167, 0
        %1181 = vmatprep.subr.bf16.mxu0 0
        %1182 = vmatpush1.bf16.xpose.msra.mxu0 %v1176
        %1183 = vmatprep.subr.bf16.mxu0 0
        %1184 = vmatpush1.bf16.xpose.msra.mxu0 %v1179
        %1185 = vmatprep.subr.bf16.mxu0 0
        %1186 = vmatpush1.bf16.xpose.msra.mxu0 0
        %1187 = vmatprep.subr.bf16.mxu0 0
        %1188 = vmatpush1.bf16.xpose.msra.mxu0 0
        %1189 = vmatprep.subr.bf16.mxu0 0
        %1190 = vmatpush1.bf16.xpose.msra.mxu0 0
        %1191 = vmatprep.subr.bf16.mxu0 0
        %1192 = vmatpush1.bf16.xpose.msra.mxu0 0
        %1193 = vmatprep.subr.bf16.mxu0 0
        %1194 = vmatpush1.bf16.xpose.msra.mxu0 0
        %1195 = vmatprep.subr.bf16.mxu0 0
        %1196 = vmatpush1.bf16.xpose.msra.mxu0 0
        %1197 = vmatprep.subr.bf16.mxu0 0
        %1198 = vmatpush1.bf16.xpose.msra.mxu0 0
        %1199 = vmatprep.subr.bf16.mxu0 0
        %1200 = vmatpush1.bf16.xpose.msra.mxu0 0
        %1201 = vmatprep.subr.bf16.mxu0 0
        %1202 = vmatpush1.bf16.xpose.msra.mxu0 0
        %1203 = vmatprep.subr.bf16.mxu0 0
        %1204 = vmatpush1.bf16.xpose.msra.mxu0 0
        %1205 = vmatprep.subr.bf16.mxu0 0
        %1206 = vmatpush1.bf16.xpose.msra.mxu0 0
        %1207 = vmatprep.subr.bf16.mxu0 0
        %1208 = vmatpush1.bf16.xpose.msra.mxu0 0
        %1209 = vmatprep.subr.bf16.mxu0 0
        %1210 = vmatpush1.bf16.xpose.msra.mxu0 0
        %1211 = vmatprep.subr.bf16.mxu0 0
        %1212 = vmatpush1.bf16.xpose.msra.mxu0 0
        %1213 = vmatprep.mubr.bf16.mxu0 0
        %1214 = vmatmul.mubr.bf16.gmra.mrb[0].mxu0 %v1170
        %v1215 = vpop.f32.mrb[0].mxu0
        %v1216 = vadd.f32 0.0, %v1215
        %v1217 = vpop.f32.mrb[0].mxu0
        %v1218 = vpop.f32.mrb[0].mxu0
        %v1219 = vadd.f32 0.0, %v1218
        %v1220 = vpop.f32.mrb[0].mxu0
        %1221 = vmatprep.mubr.bf16.mxu0 0
        %1222 = vmatmul.mubr.bf16.gmra.mrb[0].mxu0 %v1173
        %v1223 = vpop.f32.mrb[0].mxu0
        %v1224 = vadd.f32 0.0, %v1223
        %v1225 = vpop.f32.mrb[0].mxu0
        %v1226 = vpop.f32.mrb[0].mxu0
        %v1227 = vpop.f32.mrb[0].mxu0
        %1228 = vdwg.mxu0
        %vm1229 = vcmask 138240
        %v1230 = vsel %vm1229, %v1216, -inf
        %1231 = vmax.xlane.f32.xlu0 %v1230
        %v1232 = vpop.xlane.xlu0 %1231
        %v1233 = vsel %vm1229, %v1219, -inf
        %1234 = vmax.xlane.f32.xlu0 %v1233
        %v1235 = vpop.xlane.xlu0 %1234
        %vm1236 = vcmask 131072
        %v1237 = vsel %vm1236, %v1224, -inf
        %1238 = vmax.xlane.f32.xlu0 %v1237
        %v1239 = vpop.xlane.xlu0 %1238
        %v1240 = vsub.f32 %v1216, %v1232
        %v1241 = vsub.f32 %v1219, %v1235
        %v1242 = vsub.f32 %v1224, %v1239
        %v1243 = vmul.f32 %v1240, 1.442695
        %v1244 = vpow.pop %v1243
        %v1245 = vmul.f32 %v1241, 1.442695
        %v1246 = vpow.pop %v1245
        %v1247 = vmul.f32 %v1242, 1.442695
        %v1248 = vpow.pop %v1247
        %v1249 = vsel %vm1229, %v1244, 0.0
        %1250 = vadd.xlane.f32.xlu0 %v1249
        %v1251 = vpop.xlane.xlu0 %1250
        %v1252 = vsel %vm1229, %v1246, 0.0
        %1253 = vadd.xlane.f32.xlu0 %v1252
        %v1254 = vpop.xlane.xlu0 %1253
        %v1255 = vsel %vm1236, %v1248, 0.0
        %1256 = vadd.xlane.f32.xlu0 %v1255
        %v1257 = vpop.xlane.xlu0 %1256
        %v1258 = vrcp.pop %v1251
        %v1259 = vrcp.pop %v1254
        %v1260 = vrcp.pop %v1257
        %v1261 = vmul.f32 %v1244, %v1258
        %v1262 = vmul.f32 %v1246, %v1259
        %v1263 = vmul.f32 %v1248, %v1260
        %v1264 = vpack.c.bf16 %v1262, %v1261
        %v1265 = vpack.c.bf16 %v1263, %v1263
        %1266 = vrot.lane.b32.xlu0 %v1160, 64
        %v1267 = vpop.permute.xlu0 %1266
        %1268 = vrot.lane.b32.xlu0 %v1161, 64
        %v1269 = vpop.permute.xlu0 %1268
        %v1272 = vsel %vm1229, %v1264, 0
        %v1275 = vsel %vm1229, %v1265, 0
        %vm1277 = vcmask 1040384
        %v1278 = vsel 0, 4294967295, 65535
        %v1279 = vsel %vm1277, %v1278, 0
        %v1281 = vand.u32 %v1269, %v1279
        %1283 = vmatprep.subr.bf16.mxu0 0
        %1284 = vmatpush1.bf16.msra.mxu0 %v1267
        %1285 = vmatprep.subr.bf16.mxu0 0
        %1286 = vmatpush1.bf16.msra.mxu0 %v1281
        %1287 = vmatprep.subr.bf16.mxu0 0
        %1288 = vmatpush1.bf16.msra.mxu0 0
        %1289 = vmatprep.subr.bf16.mxu0 0
        %1290 = vmatpush1.bf16.msra.mxu0 0
        %1291 = vmatprep.subr.bf16.mxu0 0
        %1292 = vmatpush1.bf16.msra.mxu0 0
        %1293 = vmatprep.subr.bf16.mxu0 0
        %1294 = vmatpush1.bf16.msra.mxu0 0
        %1295 = vmatprep.subr.bf16.mxu0 0
        %1296 = vmatpush1.bf16.msra.mxu0 0
        %1297 = vmatprep.subr.bf16.mxu0 0
        %1298 = vmatpush1.bf16.msra.mxu0 0
        %1299 = vmatprep.subr.bf16.mxu0 0
        %1300 = vmatpush1.bf16.msra.mxu0 0
        %1301 = vmatprep.subr.bf16.mxu0 0
        %1302 = vmatpush1.bf16.msra.mxu0 0
        %1303 = vmatprep.subr.bf16.mxu0 0
        %1304 = vmatpush1.bf16.msra.mxu0 0
        %1305 = vmatprep.subr.bf16.mxu0 0
        %1306 = vmatpush1.bf16.msra.mxu0 0
        %1307 = vmatprep.subr.bf16.mxu0 0
        %1308 = vmatpush1.bf16.msra.mxu0 0
        %1309 = vmatprep.subr.bf16.mxu0 0
        %1310 = vmatpush1.bf16.msra.mxu0 0
        %1311 = vmatprep.subr.bf16.mxu0 0
        %1312 = vmatpush1.bf16.msra.mxu0 0
        %1313 = vmatprep.subr.bf16.mxu0 0
        %1314 = vmatpush1.bf16.msra.mxu0 0
        %1315 = vmatprep.mubr.bf16.mxu0 0
        %1316 = vmatmul.mubr.bf16.gmra.mrb[0].mxu0 %v1272
        %v1317 = vpop.f32.mrb[0].mxu0
        %v1318 = vadd.f32 0.0, %v1317
        %v1319 = vpop.f32.mrb[0].mxu0
        %v1320 = vpop.f32.mrb[0].mxu0
        %v1321 = vadd.f32 0.0, %v1320
        %v1322 = vpop.f32.mrb[0].mxu0
        %1323 = vmatprep.mubr.bf16.mxu0 0
        %1324 = vmatmul.mubr.bf16.gmra.mrb[0].mxu0 %v1275
        %v1325 = vpop.f32.mrb[0].mxu0
        %v1326 = vadd.f32 0.0, %v1325
        %v1327 = vpop.f32.mrb[0].mxu0
        %v1328 = vpop.f32.mrb[0].mxu0
        %v1329 = vpop.f32.mrb[0].mxu0
        %1330 = vdwg.mxu0
        %1331 = vrot.lane.b32.xlu0 %v1160, 120
        %v1332 = vpop.permute.xlu0 %1331
        %1333 = vrot.lane.b32.xlu0 %v1161, 120
        %v1334 = vpop.permute.xlu0 %1333
        %1335 = vrot.lane.b32.xlu0 %v1160, 88
        %v1336 = vpop.permute.xlu0 %1335
        %1337 = vrot.lane.b32.xlu0 %v1161, 88
        %v1338 = vpop.permute.xlu0 %1337
        %v1340 = vsel %vm1168, %v1332, 0
        %v1343 = vsel %vm1168, %v1334, 0
        %v1346 = vsel %vm1168, %v1336, 0
        %v1349 = vsel %vm1168, %v1338, 0
        %1351 = vmatprep.subr.bf16.mxu0 0
        %1352 = vmatpush1.bf16.xpose.msra.mxu0 %v1346
        %1353 = vmatprep.subr.bf16.mxu0 0
        %1354 = vmatpush1.bf16.xpose.msra.mxu0 %v1349
        %1355 = vmatprep.subr.bf16.mxu0 0
        %1356 = vmatpush1.bf16.xpose.msra.mxu0 0
        %1357 = vmatprep.subr.bf16.mxu0 0
        %1358 = vmatpush1.bf16.xpose.msra.mxu0 0
        %1359 = vmatprep.subr.bf16.mxu0 0
        %1360 = vmatpush1.bf16.xpose.msra.mxu0 0
        %1361 = vmatprep.subr.bf16.mxu0 0
        %1362 = vmatpush1.bf16.xpose.msra.mxu0 0
        %1363 = vmatprep.subr.bf16.mxu0 0
        %1364 = vmatpush1.bf16.xpose.msra.mxu0 0
        %1365 = vmatprep.subr.bf16.mxu0 0
        %1366 = vmatpush1.bf16.xpose.msra.mxu0 0
        %1367 = vmatprep.subr.bf16.mxu0 0
        %1368 = vmatpush1.bf16.xpose.msra.mxu0 0
        %1369 = vmatprep.subr.bf16.mxu0 0
        %1370 = vmatpush1.bf16.xpose.msra.mxu0 0
        %1371 = vmatprep.subr.bf16.mxu0 0
        %1372 = vmatpush1.bf16.xpose.msra.mxu0 0
        %1373 = vmatprep.subr.bf16.mxu0 0
        %1374 = vmatpush1.bf16.xpose.msra.mxu0 0
        %1375 = vmatprep.subr.bf16.mxu0 0
        %1376 = vmatpush1.bf16.xpose.msra.mxu0 0
        %1377 = vmatprep.subr.bf16.mxu0 0
        %1378 = vmatpush1.bf16.xpose.msra.mxu0 0
        %1379 = vmatprep.subr.bf16.mxu0 0
        %1380 = vmatpush1.bf16.xpose.msra.mxu0 0
        %1381 = vmatprep.subr.bf16.mxu0 0
        %1382 = vmatpush1.bf16.xpose.msra.mxu0 0
        %1383 = vmatprep.mubr.bf16.mxu0 0
        %1384 = vmatmul.mubr.bf16.gmra.mrb[0].mxu0 %v1340
        %v1385 = vpop.f32.mrb[0].mxu0
        %v1386 = vadd.f32 0.0, %v1385
        %v1387 = vpop.f32.mrb[0].mxu0
        %v1388 = vpop.f32.mrb[0].mxu0
        %v1389 = vadd.f32 0.0, %v1388
        %v1390 = vpop.f32.mrb[0].mxu0
        %1391 = vmatprep.mubr.bf16.mxu0 0
        %1392 = vmatmul.mubr.bf16.gmra.mrb[0].mxu0 %v1343
        %v1393 = vpop.f32.mrb[0].mxu0
        %v1394 = vadd.f32 0.0, %v1393
        %v1395 = vpop.f32.mrb[0].mxu0
        %v1396 = vpop.f32.mrb[0].mxu0
        %v1397 = vpop.f32.mrb[0].mxu0
        %1398 = vdwg.mxu0
        %v1399 = vsel %vm1229, %v1386, -inf
        %1400 = vmax.xlane.f32.xlu0 %v1399
        %v1401 = vpop.xlane.xlu0 %1400
        %v1402 = vsel %vm1229, %v1389, -inf
        %1403 = vmax.xlane.f32.xlu0 %v1402
        %v1404 = vpop.xlane.xlu0 %1403
        %v1405 = vsel %vm1236, %v1394, -inf
        %1406 = vmax.xlane.f32.xlu0 %v1405
        %v1407 = vpop.xlane.xlu0 %1406
        %v1408 = vsub.f32 %v1386, %v1401
        %v1409 = vsub.f32 %v1389, %v1404
        %v1410 = vsub.f32 %v1394, %v1407
        %v1411 = vmul.f32 %v1408, 1.442695
        %v1412 = vpow.pop %v1411
        %v1413 = vmul.f32 %v1409, 1.442695
        %v1414 = vpow.pop %v1413
        %v1415 = vmul.f32 %v1410, 1.442695
        %v1416 = vpow.pop %v1415
        %v1417 = vsel %vm1229, %v1412, 0.0
        %1418 = vadd.xlane.f32.xlu0 %v1417
        %v1419 = vpop.xlane.xlu0 %1418
        %v1420 = vsel %vm1229, %v1414, 0.0
        %1421 = vadd.xlane.f32.xlu0 %v1420
        %v1422 = vpop.xlane.xlu0 %1421
        %v1423 = vsel %vm1236, %v1416, 0.0
        %1424 = vadd.xlane.f32.xlu0 %v1423
        %v1425 = vpop.xlane.xlu0 %1424
        %v1426 = vrcp.pop %v1419
        %v1427 = vrcp.pop %v1422
        %v1428 = vrcp.pop %v1425
        %v1429 = vmul.f32 %v1412, %v1426
        %v1430 = vmul.f32 %v1414, %v1427
        %v1431 = vmul.f32 %v1416, %v1428
        %v1432 = vpack.c.bf16 %v1430, %v1429
        %v1433 = vpack.c.bf16 %v1431, %v1431
        %1434 = vrot.lane.b32.xlu0 %v1160, 56
        %v1435 = vpop.permute.xlu0 %1434
        %1436 = vrot.lane.b32.xlu0 %v1161, 56
        %v1437 = vpop.permute.xlu0 %1436
        %v1440 = vsel %vm1229, %v1432, 0
        %v1443 = vsel %vm1229, %v1433, 0
        %v1446 = vand.u32 %v1437, %v1279
        %1448 = vmatprep.subr.bf16.mxu0 0
        %1449 = vmatpush1.bf16.msra.mxu0 %v1435
        %1450 = vmatprep.subr.bf16.mxu0 0
        %1451 = vmatpush1.bf16.msra.mxu0 %v1446
        %1452 = vmatprep.subr.bf16.mxu0 0
        %1453 = vmatpush1.bf16.msra.mxu0 0
        %1454 = vmatprep.subr.bf16.mxu0 0
        %1455 = vmatpush1.bf16.msra.mxu0 0
        %1456 = vmatprep.subr.bf16.mxu0 0
        %1457 = vmatpush1.bf16.msra.mxu0 0
        %1458 = vmatprep.subr.bf16.mxu0 0
        %1459 = vmatpush1.bf16.msra.mxu0 0
        %1460 = vmatprep.subr.bf16.mxu0 0
        %1461 = vmatpush1.bf16.msra.mxu0 0
        %1462 = vmatprep.subr.bf16.mxu0 0
        %1463 = vmatpush1.bf16.msra.mxu0 0
        %1464 = vmatprep.subr.bf16.mxu0 0
        %1465 = vmatpush1.bf16.msra.mxu0 0
        %1466 = vmatprep.subr.bf16.mxu0 0
        %1467 = vmatpush1.bf16.msra.mxu0 0
        %1468 = vmatprep.subr.bf16.mxu0 0
        %1469 = vmatpush1.bf16.msra.mxu0 0
        %1470 = vmatprep.subr.bf16.mxu0 0
        %1471 = vmatpush1.bf16.msra.mxu0 0
        %1472 = vmatprep.subr.bf16.mxu0 0
        %1473 = vmatpush1.bf16.msra.mxu0 0
        %1474 = vmatprep.subr.bf16.mxu0 0
        %1475 = vmatpush1.bf16.msra.mxu0 0
        %1476 = vmatprep.subr.bf16.mxu0 0
        %1477 = vmatpush1.bf16.msra.mxu0 0
        %1478 = vmatprep.subr.bf16.mxu0 0
        %1479 = vmatpush1.bf16.msra.mxu0 0
        %1480 = vmatprep.mubr.bf16.mxu0 0
        %1481 = vmatmul.mubr.bf16.gmra.mrb[0].mxu0 %v1440
        %v1482 = vpop.f32.mrb[0].mxu0
        %v1483 = vadd.f32 0.0, %v1482
        %v1484 = vpop.f32.mrb[0].mxu0
        %v1485 = vpop.f32.mrb[0].mxu0
        %v1486 = vadd.f32 0.0, %v1485
        %v1487 = vpop.f32.mrb[0].mxu0
        %1488 = vmatprep.mubr.bf16.mxu0 0
        %1489 = vmatmul.mubr.bf16.gmra.mrb[0].mxu0 %v1443
        %v1490 = vpop.f32.mrb[0].mxu0
        %v1491 = vadd.f32 0.0, %v1490
        %v1492 = vpop.f32.mrb[0].mxu0
        %v1493 = vpop.f32.mrb[0].mxu0
        %v1494 = vpop.f32.mrb[0].mxu0
        %1495 = vdwg.mxu0
        %1496 = vrot.lane.b32.xlu0 %v1160, 112
        %v1497 = vpop.permute.xlu0 %1496
        %1498 = vrot.lane.b32.xlu0 %v1161, 112
        %v1499 = vpop.permute.xlu0 %1498
        %1500 = vrot.lane.b32.xlu0 %v1160, 80
        %v1501 = vpop.permute.xlu0 %1500
        %1502 = vrot.lane.b32.xlu0 %v1161, 80
        %v1503 = vpop.permute.xlu0 %1502
        %v1505 = vsel %vm1168, %v1497, 0
        %v1508 = vsel %vm1168, %v1499, 0
        %v1511 = vsel %vm1168, %v1501, 0
        %v1514 = vsel %vm1168, %v1503, 0
        %1516 = vmatprep.subr.bf16.mxu0 0
        %1517 = vmatpush1.bf16.xpose.msra.mxu0 %v1511
        %1518 = vmatprep.subr.bf16.mxu0 0
        %1519 = vmatpush1.bf16.xpose.msra.mxu0 %v1514
        %1520 = vmatprep.subr.bf16.mxu0 0
        %1521 = vmatpush1.bf16.xpose.msra.mxu0 0
        %1522 = vmatprep.subr.bf16.mxu0 0
        %1523 = vmatpush1.bf16.xpose.msra.mxu0 0
        %1524 = vmatprep.subr.bf16.mxu0 0
        %1525 = vmatpush1.bf16.xpose.msra.mxu0 0
        %1526 = vmatprep.subr.bf16.mxu0 0
        %1527 = vmatpush1.bf16.xpose.msra.mxu0 0
        %1528 = vmatprep.subr.bf16.mxu0 0
        %1529 = vmatpush1.bf16.xpose.msra.mxu0 0
        %1530 = vmatprep.subr.bf16.mxu0 0
        %1531 = vmatpush1.bf16.xpose.msra.mxu0 0
        %1532 = vmatprep.subr.bf16.mxu0 0
        %1533 = vmatpush1.bf16.xpose.msra.mxu0 0
        %1534 = vmatprep.subr.bf16.mxu0 0
        %1535 = vmatpush1.bf16.xpose.msra.mxu0 0
        %1536 = vmatprep.subr.bf16.mxu0 0
        %1537 = vmatpush1.bf16.xpose.msra.mxu0 0
        %1538 = vmatprep.subr.bf16.mxu0 0
        %1539 = vmatpush1.bf16.xpose.msra.mxu0 0
        %1540 = vmatprep.subr.bf16.mxu0 0
        %1541 = vmatpush1.bf16.xpose.msra.mxu0 0
        %1542 = vmatprep.subr.bf16.mxu0 0
        %1543 = vmatpush1.bf16.xpose.msra.mxu0 0
        %1544 = vmatprep.subr.bf16.mxu0 0
        %1545 = vmatpush1.bf16.xpose.msra.mxu0 0
        %1546 = vmatprep.subr.bf16.mxu0 0
        %1547 = vmatpush1.bf16.xpose.msra.mxu0 0
        %1548 = vmatprep.mubr.bf16.mxu0 0
        %1549 = vmatmul.mubr.bf16.gmra.mrb[0].mxu0 %v1505
        %v1550 = vpop.f32.mrb[0].mxu0
        %v1551 = vadd.f32 0.0, %v1550
        %v1552 = vpop.f32.mrb[0].mxu0
        %v1553 = vpop.f32.mrb[0].mxu0
        %v1554 = vadd.f32 0.0, %v1553
        %v1555 = vpop.f32.mrb[0].mxu0
        %1556 = vmatprep.mubr.bf16.mxu0 0
        %1557 = vmatmul.mubr.bf16.gmra.mrb[0].mxu0 %v1508
        %v1558 = vpop.f32.mrb[0].mxu0
        %v1559 = vadd.f32 0.0, %v1558
        %v1560 = vpop.f32.mrb[0].mxu0
        %v1561 = vpop.f32.mrb[0].mxu0
        %v1562 = vpop.f32.mrb[0].mxu0
        %1563 = vdwg.mxu0
        %v1564 = vsel %vm1229, %v1551, -inf
        %1565 = vmax.xlane.f32.xlu0 %v1564
        %v1566 = vpop.xlane.xlu0 %1565
        %v1567 = vsel %vm1229, %v1554, -inf
        %1568 = vmax.xlane.f32.xlu0 %v1567
        %v1569 = vpop.xlane.xlu0 %1568
        %v1570 = vsel %vm1236, %v1559, -inf
        %1571 = vmax.xlane.f32.xlu0 %v1570
        %v1572 = vpop.xlane.xlu0 %1571
        %v1573 = vsub.f32 %v1551, %v1566
        %v1574 = vsub.f32 %v1554, %v1569
        %v1575 = vsub.f32 %v1559, %v1572
        %v1576 = vmul.f32 %v1573, 1.442695
        %v1577 = vpow.pop %v1576
        %v1578 = vmul.f32 %v1574, 1.442695
        %v1579 = vpow.pop %v1578
        %v1580 = vmul.f32 %v1575, 1.442695
        %v1581 = vpow.pop %v1580
        %v1582 = vsel %vm1229, %v1577, 0.0
        %1583 = vadd.xlane.f32.xlu0 %v1582
        %v1584 = vpop.xlane.xlu0 %1583
        %v1585 = vsel %vm1229, %v1579, 0.0
        %1586 = vadd.xlane.f32.xlu0 %v1585
        %v1587 = vpop.xlane.xlu0 %1586
        %v1588 = vsel %vm1236, %v1581, 0.0
        %1589 = vadd.xlane.f32.xlu0 %v1588
        %v1590 = vpop.xlane.xlu0 %1589
        %v1591 = vrcp.pop %v1584
        %v1592 = vrcp.pop %v1587
        %v1593 = vrcp.pop %v1590
        %v1594 = vmul.f32 %v1577, %v1591
        %v1595 = vmul.f32 %v1579, %v1592
        %v1596 = vmul.f32 %v1581, %v1593
        %v1597 = vpack.c.bf16 %v1595, %v1594
        %v1598 = vpack.c.bf16 %v1596, %v1596
        %1599 = vrot.lane.b32.xlu0 %v1160, 48
        %v1600 = vpop.permute.xlu0 %1599
        %1601 = vrot.lane.b32.xlu0 %v1161, 48
        %v1602 = vpop.permute.xlu0 %1601
        %v1605 = vsel %vm1229, %v1597, 0
        %v1608 = vsel %vm1229, %v1598, 0
        %v1611 = vand.u32 %v1602, %v1279
        %1613 = vmatprep.subr.bf16.mxu0 0
        %1614 = vmatpush1.bf16.msra.mxu0 %v1600
        %1615 = vmatprep.subr.bf16.mxu0 0
        %1616 = vmatpush1.bf16.msra.mxu0 %v1611
        %1617 = vmatprep.subr.bf16.mxu0 0
        %1618 = vmatpush1.bf16.msra.mxu0 0
        %1619 = vmatprep.subr.bf16.mxu0 0
        %1620 = vmatpush1.bf16.msra.mxu0 0
        %1621 = vmatprep.subr.bf16.mxu0 0
        %1622 = vmatpush1.bf16.msra.mxu0 0
        %1623 = vmatprep.subr.bf16.mxu0 0
        %1624 = vmatpush1.bf16.msra.mxu0 0
        %1625 = vmatprep.subr.bf16.mxu0 0
        %1626 = vmatpush1.bf16.msra.mxu0 0
        %1627 = vmatprep.subr.bf16.mxu0 0
        %1628 = vmatpush1.bf16.msra.mxu0 0
        %1629 = vmatprep.subr.bf16.mxu0 0
        %1630 = vmatpush1.bf16.msra.mxu0 0
        %1631 = vmatprep.subr.bf16.mxu0 0
        %1632 = vmatpush1.bf16.msra.mxu0 0
        %1633 = vmatprep.subr.bf16.mxu0 0
        %1634 = vmatpush1.bf16.msra.mxu0 0
        %1635 = vmatprep.subr.bf16.mxu0 0
        %1636 = vmatpush1.bf16.msra.mxu0 0
        %1637 = vmatprep.subr.bf16.mxu0 0
        %1638 = vmatpush1.bf16.msra.mxu0 0
        %1639 = vmatprep.subr.bf16.mxu0 0
        %1640 = vmatpush1.bf16.msra.mxu0 0
        %1641 = vmatprep.subr.bf16.mxu0 0
        %1642 = vmatpush1.bf16.msra.mxu0 0
        %1643 = vmatprep.subr.bf16.mxu0 0
        %1644 = vmatpush1.bf16.msra.mxu0 0
        %1645 = vmatprep.mubr.bf16.mxu0 0
        %1646 = vmatmul.mubr.bf16.gmra.mrb[0].mxu0 %v1605
        %v1647 = vpop.f32.mrb[0].mxu0
        %v1648 = vadd.f32 0.0, %v1647
        %v1649 = vpop.f32.mrb[0].mxu0
        %v1650 = vpop.f32.mrb[0].mxu0
        %v1651 = vadd.f32 0.0, %v1650
        %v1652 = vpop.f32.mrb[0].mxu0
        %1653 = vmatprep.mubr.bf16.mxu0 0
        %1654 = vmatmul.mubr.bf16.gmra.mrb[0].mxu0 %v1608
        %v1655 = vpop.f32.mrb[0].mxu0
        %v1656 = vadd.f32 0.0, %v1655
        %v1657 = vpop.f32.mrb[0].mxu0
        %v1658 = vpop.f32.mrb[0].mxu0
        %v1659 = vpop.f32.mrb[0].mxu0
        %1660 = vdwg.mxu0
        %1661 = vrot.lane.b32.xlu0 %v1160, 104
        %v1662 = vpop.permute.xlu0 %1661
        %1663 = vrot.lane.b32.xlu0 %v1161, 104
        %v1664 = vpop.permute.xlu0 %1663
        %1665 = vrot.lane.b32.xlu0 %v1160, 72
        %v1666 = vpop.permute.xlu0 %1665
        %1667 = vrot.lane.b32.xlu0 %v1161, 72
        %v1668 = vpop.permute.xlu0 %1667
        %v1670 = vsel %vm1168, %v1662, 0
        %v1673 = vsel %vm1168, %v1664, 0
        %v1676 = vsel %vm1168, %v1666, 0
        %v1679 = vsel %vm1168, %v1668, 0
        %1681 = vmatprep.subr.bf16.mxu0 0
        %1682 = vmatpush1.bf16.xpose.msra.mxu0 %v1676
        %1683 = vmatprep.subr.bf16.mxu0 0
        %1684 = vmatpush1.bf16.xpose.msra.mxu0 %v1679
        %1685 = vmatprep.subr.bf16.mxu0 0
        %1686 = vmatpush1.bf16.xpose.msra.mxu0 0
        %1687 = vmatprep.subr.bf16.mxu0 0
        %1688 = vmatpush1.bf16.xpose.msra.mxu0 0
        %1689 = vmatprep.subr.bf16.mxu0 0
        %1690 = vmatpush1.bf16.xpose.msra.mxu0 0
        %1691 = vmatprep.subr.bf16.mxu0 0
        %1692 = vmatpush1.bf16.xpose.msra.mxu0 0
        %1693 = vmatprep.subr.bf16.mxu0 0
        %1694 = vmatpush1.bf16.xpose.msra.mxu0 0
        %1695 = vmatprep.subr.bf16.mxu0 0
        %1696 = vmatpush1.bf16.xpose.msra.mxu0 0
        %1697 = vmatprep.subr.bf16.mxu0 0
        %1698 = vmatpush1.bf16.xpose.msra.mxu0 0
        %1699 = vmatprep.subr.bf16.mxu0 0
        %1700 = vmatpush1.bf16.xpose.msra.mxu0 0
        %1701 = vmatprep.subr.bf16.mxu0 0
        %1702 = vmatpush1.bf16.xpose.msra.mxu0 0
        %1703 = vmatprep.subr.bf16.mxu0 0
        %1704 = vmatpush1.bf16.xpose.msra.mxu0 0
        %1705 = vmatprep.subr.bf16.mxu0 0
        %1706 = vmatpush1.bf16.xpose.msra.mxu0 0
        %1707 = vmatprep.subr.bf16.mxu0 0
        %1708 = vmatpush1.bf16.xpose.msra.mxu0 0
        %1709 = vmatprep.subr.bf16.mxu0 0
        %1710 = vmatpush1.bf16.xpose.msra.mxu0 0
        %1711 = vmatprep.subr.bf16.mxu0 0
        %1712 = vmatpush1.bf16.xpose.msra.mxu0 0
        %1713 = vmatprep.mubr.bf16.mxu0 0
        %1714 = vmatmul.mubr.bf16.gmra.mrb[0].mxu0 %v1670
        %v1715 = vpop.f32.mrb[0].mxu0
        %v1716 = vadd.f32 0.0, %v1715
        %v1717 = vpop.f32.mrb[0].mxu0
        %v1718 = vpop.f32.mrb[0].mxu0
        %v1719 = vadd.f32 0.0, %v1718
        %v1720 = vpop.f32.mrb[0].mxu0
        %1721 = vmatprep.mubr.bf16.mxu0 0
        %1722 = vmatmul.mubr.bf16.gmra.mrb[0].mxu0 %v1673
        %v1723 = vpop.f32.mrb[0].mxu0
        %v1724 = vadd.f32 0.0, %v1723
        %v1725 = vpop.f32.mrb[0].mxu0
        %v1726 = vpop.f32.mrb[0].mxu0
        %v1727 = vpop.f32.mrb[0].mxu0
        %1728 = vdwg.mxu0
        %v1729 = vsel %vm1229, %v1716, -inf
        %1730 = vmax.xlane.f32.xlu0 %v1729
        %v1731 = vpop.xlane.xlu0 %1730
        %v1732 = vsel %vm1229, %v1719, -inf
        %1733 = vmax.xlane.f32.xlu0 %v1732
        %v1734 = vpop.xlane.xlu0 %1733
        %v1735 = vsel %vm1236, %v1724, -inf
        %1736 = vmax.xlane.f32.xlu0 %v1735
        %v1737 = vpop.xlane.xlu0 %1736
        %v1738 = vsub.f32 %v1716, %v1731
        %v1739 = vsub.f32 %v1719, %v1734
        %v1740 = vsub.f32 %v1724, %v1737
        %v1741 = vmul.f32 %v1738, 1.442695
        %v1742 = vpow.pop %v1741
        %v1743 = vmul.f32 %v1739, 1.442695
        %v1744 = vpow.pop %v1743
        %v1745 = vmul.f32 %v1740, 1.442695
        %v1746 = vpow.pop %v1745
        %v1747 = vsel %vm1229, %v1742, 0.0
        %1748 = vadd.xlane.f32.xlu0 %v1747
        %v1749 = vpop.xlane.xlu0 %1748
        %v1750 = vsel %vm1229, %v1744, 0.0
        %1751 = vadd.xlane.f32.xlu0 %v1750
        %v1752 = vpop.xlane.xlu0 %1751
        %v1753 = vsel %vm1236, %v1746, 0.0
        %1754 = vadd.xlane.f32.xlu0 %v1753
        %v1755 = vpop.xlane.xlu0 %1754
        %v1756 = vrcp.pop %v1749
        %v1757 = vrcp.pop %v1752
        %v1758 = vrcp.pop %v1755
        %v1759 = vmul.f32 %v1742, %v1756
        %v1760 = vmul.f32 %v1744, %v1757
        %v1761 = vmul.f32 %v1746, %v1758
        %v1762 = vpack.c.bf16 %v1760, %v1759
        %v1763 = vpack.c.bf16 %v1761, %v1761
        %1764 = vrot.lane.b32.xlu0 %v1160, 40
        %v1765 = vpop.permute.xlu0 %1764
        %1766 = vrot.lane.b32.xlu0 %v1161, 40
        %v1767 = vpop.permute.xlu0 %1766
        %v1770 = vsel %vm1229, %v1762, 0
        %v1773 = vsel %vm1229, %v1763, 0
        %v1776 = vand.u32 %v1767, %v1279
        %1778 = vmatprep.subr.bf16.mxu0 0
        %1779 = vmatpush1.bf16.msra.mxu0 %v1765
        %1780 = vmatprep.subr.bf16.mxu0 0
        %1781 = vmatpush1.bf16.msra.mxu0 %v1776
        %1782 = vmatprep.subr.bf16.mxu0 0
        %1783 = vmatpush1.bf16.msra.mxu0 0
        %1784 = vmatprep.subr.bf16.mxu0 0
        %1785 = vmatpush1.bf16.msra.mxu0 0
        %1786 = vmatprep.subr.bf16.mxu0 0
        %1787 = vmatpush1.bf16.msra.mxu0 0
        %1788 = vmatprep.subr.bf16.mxu0 0
        %1789 = vmatpush1.bf16.msra.mxu0 0
        %1790 = vmatprep.subr.bf16.mxu0 0
        %1791 = vmatpush1.bf16.msra.mxu0 0
        %1792 = vmatprep.subr.bf16.mxu0 0
        %1793 = vmatpush1.bf16.msra.mxu0 0
        %1794 = vmatprep.subr.bf16.mxu0 0
        %1795 = vmatpush1.bf16.msra.mxu0 0
        %1796 = vmatprep.subr.bf16.mxu0 0
        %1797 = vmatpush1.bf16.msra.mxu0 0
        %1798 = vmatprep.subr.bf16.mxu0 0
        %1799 = vmatpush1.bf16.msra.mxu0 0
        %1800 = vmatprep.subr.bf16.mxu0 0
        %1801 = vmatpush1.bf16.msra.mxu0 0
        %1802 = vmatprep.subr.bf16.mxu0 0
        %1803 = vmatpush1.bf16.msra.mxu0 0
        %1804 = vmatprep.subr.bf16.mxu0 0
        %1805 = vmatpush1.bf16.msra.mxu0 0
        %1806 = vmatprep.subr.bf16.mxu0 0
        %1807 = vmatpush1.bf16.msra.mxu0 0
        %1808 = vmatprep.subr.bf16.mxu0 0
        %1809 = vmatpush1.bf16.msra.mxu0 0
        %1810 = vmatprep.mubr.bf16.mxu0 0
        %1811 = vmatmul.mubr.bf16.gmra.mrb[0].mxu0 %v1770
        %v1812 = vpop.f32.mrb[0].mxu0
        %v1813 = vadd.f32 0.0, %v1812
        %v1814 = vpop.f32.mrb[0].mxu0
        %v1815 = vpop.f32.mrb[0].mxu0
        %v1816 = vadd.f32 0.0, %v1815
        %v1817 = vpop.f32.mrb[0].mxu0
        %1818 = vmatprep.mubr.bf16.mxu0 0
        %1819 = vmatmul.mubr.bf16.gmra.mrb[0].mxu0 %v1773
        %v1820 = vpop.f32.mrb[0].mxu0
        %v1821 = vadd.f32 0.0, %v1820
        %v1822 = vpop.f32.mrb[0].mxu0
        %v1823 = vpop.f32.mrb[0].mxu0
        %v1824 = vpop.f32.mrb[0].mxu0
        %1825 = vdwg.mxu0
        %1829 = vrot.lane.b32.xlu0 %v1483, 8
        %v1830 = vpop.permute.xlu0 %1829
        %1831 = vrot.lane.b32.xlu0 %v1486, 8
        %v1832 = vpop.permute.xlu0 %1831
        %1833 = vrot.lane.b32.xlu0 %v1491, 8
        %v1834 = vpop.permute.xlu0 %1833
        %1841 = vrot.lane.b32.xlu0 %v1648, 16
        %v1842 = vpop.permute.xlu0 %1841
        %1843 = vrot.lane.b32.xlu0 %v1651, 16
        %v1844 = vpop.permute.xlu0 %1843
        %1845 = vrot.lane.b32.xlu0 %v1656, 16
        %v1846 = vpop.permute.xlu0 %1845
        %1853 = vrot.lane.b32.xlu0 %v1813, 24
        %v1854 = vpop.permute.xlu0 %1853
        %1855 = vrot.lane.b32.xlu0 %v1816, 24
        %v1856 = vpop.permute.xlu0 %1855
        %1857 = vrot.lane.b32.xlu0 %v1821, 24
        %v1858 = vpop.permute.xlu0 %1857
        %v1862 = vsel %vm1168, %v1318, %v1830
        %v1863 = vsel %vm1168, %v1321, %v1832
        %v1864 = vsel %vm1168, %v1326, %v1834
        %vm1865 = vcmask 130048
        %v1866 = vsel %vm1865, %v1862, %v1842
        %v1867 = vsel %vm1865, %v1863, %v1844
        %v1868 = vsel %vm1865, %v1864, %v1846
        %vm1869 = vcmask 195584
        %v1870 = vsel %vm1869, %v1866, %v1854
        %v1871 = vsel %vm1869, %v1867, %v1856
        %v1872 = vsel %vm1869, %v1868, %v1858
        %v1873 = vpack.c.bf16 %v1871, %v1870
        %v1874 = vpack.c.bf16 %v1872, %v1872
        %v1875 = vld [vmem:[%s7] sm:$0xf]
        %v1876 = vld [vmem:[%s7 + $0x4] sm:$0xf]
        %v1877 = vld [vmem:[%s7 + $0x8] sm:$0xf]
        %v1878 = vld [vmem:[%s7 + $0xc] sm:$0xf]
        %v1879 = vld [vmem:[%s8] sm:$0x1]
        %v1880 = vunpack.c.l.bf16 %v1879
        %v1881 = vlaneseq
        %v1882 = vshrl.u32 %v1881, 7
        %v1883 = vsub.s32 0, %v1882
        %v1884 = vrot.slane %v1880, %v1883
        %v1889 = vunpack.c.l.b16 %v1875
        %v1890 = vunpack.c.l.b16 %v1876
        %v1891 = vunpack.c.l.b16 %v1877
        %v1892 = vunpack.c.l.b16 %v1878
        %v1893 = vpack.c.b16 %v1890, %v1889
        %v1894 = vpack.c.b16 %v1892, %v1891
        %v1898 = vsel %vm967, %v1873, 0
        %v1901 = vsel %vm967, %v1874, 0
        %1903 = vmatprep.subr.bf16.mxu0 0
        %1904 = vmatpush1.bf16.msra.mxu0 %v1893
        %1905 = vmatprep.subr.bf16.mxu0 0
        %1906 = vmatpush1.bf16.msra.mxu0 %v1894
        %1907 = vmatprep.subr.bf16.mxu0 0
        %1908 = vmatpush1.bf16.msra.mxu0 0
        %1909 = vmatprep.subr.bf16.mxu0 0
        %1910 = vmatpush1.bf16.msra.mxu0 0
        %1911 = vmatprep.subr.bf16.mxu0 0
        %1912 = vmatpush1.bf16.msra.mxu0 0
        %1913 = vmatprep.subr.bf16.mxu0 0
        %1914 = vmatpush1.bf16.msra.mxu0 0
        %1915 = vmatprep.subr.bf16.mxu0 0
        %1916 = vmatpush1.bf16.msra.mxu0 0
        %1917 = vmatprep.subr.bf16.mxu0 0
        %1918 = vmatpush1.bf16.msra.mxu0 0
        %1919 = vmatprep.subr.bf16.mxu0 0
        %1920 = vmatpush1.bf16.msra.mxu0 0
        %1921 = vmatprep.subr.bf16.mxu0 0
        %1922 = vmatpush1.bf16.msra.mxu0 0
        %1923 = vmatprep.subr.bf16.mxu0 0
        %1924 = vmatpush1.bf16.msra.mxu0 0
        %1925 = vmatprep.subr.bf16.mxu0 0
        %1926 = vmatpush1.bf16.msra.mxu0 0
        %1927 = vmatprep.subr.bf16.mxu0 0
        %1928 = vmatpush1.bf16.msra.mxu0 0
        %1929 = vmatprep.subr.bf16.mxu0 0
        %1930 = vmatpush1.bf16.msra.mxu0 0
        %1931 = vmatprep.subr.bf16.mxu0 0
        %1932 = vmatpush1.bf16.msra.mxu0 0
        %1933 = vmatprep.subr.bf16.mxu0 0
        %1934 = vmatpush1.bf16.msra.mxu0 0
        %1935 = vmatprep.mubr.bf16.mxu0 0
        %1936 = vmatmul.mubr.bf16.gmra.mrb[0].mxu0 %v1898
        %v1937 = vpop.f32.mrb[0].mxu0
        %v1938 = vadd.f32 %v1884, %v1937
        %v1939 = vpop.f32.mrb[0].mxu0
        %v1940 = vpop.f32.mrb[0].mxu0
        %v1941 = vadd.f32 %v1884, %v1940
        %v1942 = vpop.f32.mrb[0].mxu0
        %1943 = vmatprep.mubr.bf16.mxu0 0
        %1944 = vmatmul.mubr.bf16.gmra.mrb[0].mxu0 %v1901
        %v1945 = vpop.f32.mrb[0].mxu0
        %v1946 = vadd.f32 %v1884, %v1945
        %v1947 = vpop.f32.mrb[0].mxu0
        %v1948 = vpop.f32.mrb[0].mxu0
        %v1949 = vpop.f32.mrb[0].mxu0
        %1950 = vdwg.mxu0
        %v1951 = vadd.f32 %v1022, %v1938
        %v1952 = vadd.f32 %v1023, %v1941
        %v1953 = vadd.f32 %v1024, %v1946
        %v1954 = vld [vmem:[%s11] sm:$0x1]
        %v1955 = vld [vmem:[%s12] sm:$0x1]
        %v1956 = vsel %vm967, %v1951, 0.0
        %1957 = vadd.xlane.f32.xlu0 %v1956
        %v1958 = vpop.xlane.xlu0 %1957
        %v1959 = vsel %vm967, %v1952, 0.0
        %1960 = vadd.xlane.f32.xlu0 %v1959
        %v1961 = vpop.xlane.xlu0 %1960
        %v1962 = vsel %vm974, %v1953, 0.0
        %1963 = vadd.xlane.f32.xlu0 %v1962
        %v1964 = vpop.xlane.xlu0 %1963
        %v1965 = vmul.f32 %v1958, %v978
        %v1966 = vmul.f32 %v1961, %v978
        %v1967 = vmul.f32 %v1964, %v978
        %v1968 = vsub.f32 %v1951, %v1965
        %v1969 = vsub.f32 %v1952, %v1966
        %v1970 = vsub.f32 %v1953, %v1967
        %v1971 = vmul.f32 %v1968, %v1968
        %v1972 = vmul.f32 %v1969, %v1969
        %v1973 = vmul.f32 %v1970, %v1970
        %v1974 = vsel %vm967, %v1971, 0.0
        %1975 = vadd.xlane.f32.xlu0 %v1974
        %v1976 = vpop.xlane.xlu0 %1975
        %v1977 = vsel %vm967, %v1972, 0.0
        %1978 = vadd.xlane.f32.xlu0 %v1977
        %v1979 = vpop.xlane.xlu0 %1978
        %v1980 = vsel %vm974, %v1973, 0.0
        %1981 = vadd.xlane.f32.xlu0 %v1980
        %v1982 = vpop.xlane.xlu0 %1981
        %v1983 = vmul.f32 %v1976, %v978
        %v1984 = vmul.f32 %v1979, %v978
        %v1985 = vmul.f32 %v1982, %v978
        %v1986 = vadd.f32 %v1983, 1e-05
        %v1987 = vadd.f32 %v1984, 1e-05
        %v1988 = vadd.f32 %v1985, 1e-05
        %v1989 = vrsqrt.pop %v1986
        %v1990 = vrsqrt.pop %v1987
        %v1991 = vrsqrt.pop %v1988
        %v1992 = vmul.f32 %v1968, %v1989
        %v1993 = vmul.f32 %v1969, %v1990
        %v1994 = vmul.f32 %v1970, %v1991
        %v1995 = vunpack.c.l.bf16 %v1954
        %v1996 = vlaneseq
        %v1997 = vshrl.u32 %v1996, 7
        %v1998 = vsub.s32 0, %v1997
        %v1999 = vrot.slane %v1995, %v1998
        %v2000 = vmul.f32 %v1992, %v1999
        %v2001 = vmul.f32 %v1993, %v1999
        %v2002 = vmul.f32 %v1994, %v1999
        %v2003 = vunpack.c.l.bf16 %v1955
        %v2004 = vlaneseq
        %v2005 = vshrl.u32 %v2004, 7
        %v2006 = vsub.s32 0, %v2005
        %v2007 = vrot.slane %v2003, %v2006
        %v2008 = vadd.f32 %v2000, %v2007
        %v2009 = vadd.f32 %v2001, %v2007
        %v2010 = vadd.f32 %v2002, %v2007
        %v2011 = vpack.c.bf16 %v2009, %v2008
        %v2012 = vpack.c.bf16 %v2010, %v2010
        %v2013 = vld [vmem:[%s13] sm:$0xf]
        %v2014 = vld [vmem:[%s13 + $0x4] sm:$0xf]
        %v2015 = vld [vmem:[%s13 + $0x8] sm:$0xf]
        %v2016 = vld [vmem:[%s13 + $0xc] sm:$0xf]
        %v2017 = vld [vmem:[%s14] sm:$0x1]
        %v2018 = vunpack.c.l.bf16 %v2017
        %v2019 = vlaneseq
        %v2020 = vshrl.u32 %v2019, 7
        %v2021 = vsub.s32 0, %v2020
        %v2022 = vrot.slane %v2018, %v2021
        %v2027 = vunpack.c.l.b16 %v2013
        %v2028 = vunpack.c.l.b16 %v2014
        %v2029 = vunpack.c.l.b16 %v2015
        %v2030 = vunpack.c.l.b16 %v2016
        %v2031 = vpack.c.b16 %v2028, %v2027
        %v2032 = vpack.c.b16 %v2030, %v2029
        %v2036 = vsel %vm967, %v2011, 0
        %v2039 = vsel %vm967, %v2012, 0
        %2041 = vmatprep.subr.bf16.mxu0 0
        %2042 = vmatpush1.bf16.msra.mxu0 %v2031
        %2043 = vmatprep.subr.bf16.mxu0 0
        %2044 = vmatpush1.bf16.msra.mxu0 %v2032
        %2045 = vmatprep.subr.bf16.mxu0 0
        %2046 = vmatpush1.bf16.msra.mxu0 0
        %2047 = vmatprep.subr.bf16.mxu0 0
        %2048 = vmatpush1.bf16.msra.mxu0 0
        %2049 = vmatprep.subr.bf16.mxu0 0
        %2050 = vmatpush1.bf16.msra.mxu0 0
        %2051 = vmatprep.subr.bf16.mxu0 0
        %2052 = vmatpush1.bf16.msra.mxu0 0
        %2053 = vmatprep.subr.bf16.mxu0 0
        %2054 = vmatpush1.bf16.msra.mxu0 0
        %2055 = vmatprep.subr.bf16.mxu0 0
        %2056 = vmatpush1.bf16.msra.mxu0 0
        %2057 = vmatprep.subr.bf16.mxu0 0
        %2058 = vmatpush1.bf16.msra.mxu0 0
        %2059 = vmatprep.subr.bf16.mxu0 0
        %2060 = vmatpush1.bf16.msra.mxu0 0
        %2061 = vmatprep.subr.bf16.mxu0 0
        %2062 = vmatpush1.bf16.msra.mxu0 0
        %2063 = vmatprep.subr.bf16.mxu0 0
        %2064 = vmatpush1.bf16.msra.mxu0 0
        %2065 = vmatprep.subr.bf16.mxu0 0
        %2066 = vmatpush1.bf16.msra.mxu0 0
        %2067 = vmatprep.subr.bf16.mxu0 0
        %2068 = vmatpush1.bf16.msra.mxu0 0
        %2069 = vmatprep.subr.bf16.mxu0 0
        %2070 = vmatpush1.bf16.msra.mxu0 0
        %2071 = vmatprep.subr.bf16.mxu0 0
        %2072 = vmatpush1.bf16.msra.mxu0 0
        %2073 = vmatprep.mubr.bf16.mxu0 0
        %2074 = vmatmul.mubr.bf16.gmra.mrb[0].mxu0 %v2036
        %v2075 = vpop.f32.mrb[0].mxu0
        %v2076 = vadd.f32 %v2022, %v2075
        %v2077 = vpop.f32.mrb[0].mxu0
        %v2078 = vpop.f32.mrb[0].mxu0
        %v2079 = vadd.f32 %v2022, %v2078
        %v2080 = vpop.f32.mrb[0].mxu0
        %2081 = vmatprep.mubr.bf16.mxu0 0
        %2082 = vmatmul.mubr.bf16.gmra.mrb[0].mxu0 %v2039
        %v2083 = vpop.f32.mrb[0].mxu0
        %v2084 = vadd.f32 %v2022, %v2083
        %v2085 = vpop.f32.mrb[0].mxu0
        %v2086 = vpop.f32.mrb[0].mxu0
        %v2087 = vpop.f32.mrb[0].mxu0
        %2088 = vdwg.mxu0
        %v2089 = vmul.f32 %v2076, 1.702
        %v2090 = vmul.f32 %v2079, 1.702
        %v2091 = vmul.f32 %v2084, 1.702
        %v2092 = vxor.u32 %v2089, 2147483648
        %v2093 = vxor.u32 %v2090, 2147483648
        %v2094 = vxor.u32 %v2091, 2147483648
        %v2095 = vmul.f32 %v2092, 1.442695
        %v2096 = vpow.pop %v2095
        %v2097 = vmul.f32 %v2093, 1.442695
        %v2098 = vpow.pop %v2097
        %v2099 = vmul.f32 %v2094, 1.442695
        %v2100 = vpow.pop %v2099
        %v2101 = vadd.f32 %v2096, 1.0
        %v2102 = vadd.f32 %v2098, 1.0
        %v2103 = vadd.f32 %v2100, 1.0
        %v2104 = vrcp.pop %v2101
        %v2105 = vmul.f32 1.0, %v2104
        %v2106 = vrcp.pop %v2102
        %v2107 = vmul.f32 1.0, %v2106
        %v2108 = vrcp.pop %v2103
        %v2109 = vmul.f32 1.0, %v2108
        %v2110 = vmul.f32 %v2076, %v2105
        %v2111 = vmul.f32 %v2079, %v2107
        %v2112 = vmul.f32 %v2084, %v2109
        %v2113 = vpack.c.bf16 %v2111, %v2110
        %v2114 = vpack.c.bf16 %v2112, %v2112
        %v2115 = vld [vmem:[%s15] sm:$0xf]
        %v2116 = vld [vmem:[%s15 + $0x4] sm:$0xf]
        %v2117 = vld [vmem:[%s15 + $0x8] sm:$0xf]
        %v2118 = vld [vmem:[%s15 + $0xc] sm:$0xf]
        %v2119 = vld [vmem:[%s15 + $0x10] sm:$0xf]
        %v2120 = vld [vmem:[%s15 + $0x14] sm:$0xf]
        %v2121 = vld [vmem:[%s15 + $0x18] sm:$0xf]
        %v2122 = vld [vmem:[%s15 + $0x1c] sm:$0xf]
        %v2123 = vld [vmem:[%s15 + $0x20] sm:$0xf]
        %v2124 = vld [vmem:[%s15 + $0x24] sm:$0xf]
        %v2125 = vld [vmem:[%s15 + $0x28] sm:$0xf]
        %v2126 = vld [vmem:[%s15 + $0x2c] sm:$0xf]
        %v2127 = vld [vmem:[%s15 + $0x30] sm:$0xf]
        %v2128 = vld [vmem:[%s15 + $0x34] sm:$0xf]
        %v2129 = vld [vmem:[%s15 + $0x38] sm:$0xf]
        %v2130 = vld [vmem:[%s15 + $0x3c] sm:$0xf]
        %v2147 = vunpack.c.l.b16 %v2115
        %v2148 = vunpack.c.l.b16 %v2116
        %v2149 = vunpack.c.l.b16 %v2117
        %v2150 = vunpack.c.l.b16 %v2118
        %v2151 = vunpack.c.l.b16 %v2119
        %v2152 = vunpack.c.l.b16 %v2120
        %v2153 = vunpack.c.l.b16 %v2121
        %v2154 = vunpack.c.l.b16 %v2122
        %v2155 = vunpack.c.l.b16 %v2123
        %v2156 = vunpack.c.l.b16 %v2124
        %v2157 = vunpack.c.l.b16 %v2125
        %v2158 = vunpack.c.l.b16 %v2126
        %v2159 = vunpack.c.l.b16 %v2127
        %v2160 = vunpack.c.l.b16 %v2128
        %v2161 = vunpack.c.l.b16 %v2129
        %v2162 = vunpack.c.l.b16 %v2130
        %v2163 = vpack.c.b16 %v2148, %v2147
        %v2164 = vpack.c.b16 %v2150, %v2149
        %v2165 = vpack.c.b16 %v2152, %v2151
        %v2166 = vpack.c.b16 %v2154, %v2153
        %v2167 = vpack.c.b16 %v2156, %v2155
        %v2168 = vpack.c.b16 %v2158, %v2157
        %v2169 = vpack.c.b16 %v2160, %v2159
        %v2170 = vpack.c.b16 %v2162, %v2161
        %2179 = vmatprep.subr.bf16.mxu0 0
        %2180 = vmatpush1.bf16.msra.mxu0 %v2163
        %2181 = vmatprep.subr.bf16.mxu0 0
        %2182 = vmatpush1.bf16.msra.mxu0 %v2164
        %2183 = vmatprep.subr.bf16.mxu0 0
        %2184 = vmatpush1.bf16.msra.mxu0 %v2165
        %2185 = vmatprep.subr.bf16.mxu0 0
        %2186 = vmatpush1.bf16.msra.mxu0 %v2166
        %2187 = vmatprep.subr.bf16.mxu0 0
        %2188 = vmatpush1.bf16.msra.mxu0 %v2167
        %2189 = vmatprep.subr.bf16.mxu0 0
        %2190 = vmatpush1.bf16.msra.mxu0 %v2168
        %2191 = vmatprep.subr.bf16.mxu0 0
        %2192 = vmatpush1.bf16.msra.mxu0 %v2169
        %2193 = vmatprep.subr.bf16.mxu0 0
        %2194 = vmatpush1.bf16.msra.mxu0 %v2170
        %2195 = vmatprep.subr.bf16.mxu0 0
        %2196 = vmatpush1.bf16.msra.mxu0 0
        %2197 = vmatprep.subr.bf16.mxu0 0
        %2198 = vmatpush1.bf16.msra.mxu0 0
        %2199 = vmatprep.subr.bf16.mxu0 0
        %2200 = vmatpush1.bf16.msra.mxu0 0
        %2201 = vmatprep.subr.bf16.mxu0 0
        %2202 = vmatpush1.bf16.msra.mxu0 0
        %2203 = vmatprep.subr.bf16.mxu0 0
        %2204 = vmatpush1.bf16.msra.mxu0 0
        %2205 = vmatprep.subr.bf16.mxu0 0
        %2206 = vmatpush1.bf16.msra.mxu0 0
        %2207 = vmatprep.subr.bf16.mxu0 0
        %2208 = vmatpush1.bf16.msra.mxu0 0
        %2209 = vmatprep.subr.bf16.mxu0 0
        %2210 = vmatpush1.bf16.msra.mxu0 0
        %2211 = vmatprep.mubr.bf16.mxu0 0
        %2212 = vmatmul.mubr.bf16.gmra.mrb[0].mxu0 %v2113
        %v2213 = vpop.f32.mrb[0].mxu0
        %v2214 = vadd.f32 0.0, %v2213
        %v2215 = vpop.f32.mrb[0].mxu0
        %v2216 = vpop.f32.mrb[0].mxu0
        %v2217 = vadd.f32 0.0, %v2216
        %v2218 = vpop.f32.mrb[0].mxu0
        %2219 = vmatprep.mubr.bf16.mxu0 0
        %2220 = vmatmul.mubr.bf16.gmra.mrb[0].mxu0 %v2114
        %v2221 = vpop.f32.mrb[0].mxu0
        %v2222 = vadd.f32 0.0, %v2221
        %v2223 = vpop.f32.mrb[0].mxu0
        %v2224 = vpop.f32.mrb[0].mxu0
        %v2225 = vpop.f32.mrb[0].mxu0
        %2226 = vdwg.mxu0
        %v2227 = vadd.f32 %v1951, %v2214
        %v2228 = vadd.f32 %v1952, %v2217
        %v2229 = vadd.f32 %v1953, %v2222
        %v2230 = vld [vmem:[%s16] sm:$0x1]
        %v2231 = vunpack.c.l.bf16 %v2230
        %v2232 = vlaneseq
        %v2233 = vshrl.u32 %v2232, 7
        %v2234 = vsub.s32 0, %v2233
        %v2235 = vrot.slane %v2231, %v2234
        %v2236 = vadd.f32 %v2227, %v2235
        %v2237 = vadd.f32 %v2228, %v2235
        %v2238 = vadd.f32 %v2229, %v2235
        %s2239 = scalar_lea.vmem %s9, 1
        %v2240 = vld [vmem:[%s2239] sm:$0x1]
        %s2241 = scalar_lea.vmem %s10, 1
        %v2242 = vld [vmem:[%s2241] sm:$0x1]
        %v2243 = vsel %vm967, %v2236, 0.0
        %2244 = vadd.xlane.f32.xlu0 %v2243
        %v2245 = vpop.xlane.xlu0 %2244
        %v2246 = vsel %vm967, %v2237, 0.0
        %2247 = vadd.xlane.f32.xlu0 %v2246
        %v2248 = vpop.xlane.xlu0 %2247
        %v2249 = vsel %vm974, %v2238, 0.0
        %2250 = vadd.xlane.f32.xlu0 %v2249
        %v2251 = vpop.xlane.xlu0 %2250
        %v2252 = vmul.f32 %v2245, %v978
        %v2253 = vmul.f32 %v2248, %v978
        %v2254 = vmul.f32 %v2251, %v978
        %v2255 = vsub.f32 %v2236, %v2252
        %v2256 = vsub.f32 %v2237, %v2253
        %v2257 = vsub.f32 %v2238, %v2254
        %v2258 = vmul.f32 %v2255, %v2255
        %v2259 = vmul.f32 %v2256, %v2256
        %v2260 = vmul.f32 %v2257, %v2257
        %v2261 = vsel %vm967, %v2258, 0.0
        %2262 = vadd.xlane.f32.xlu0 %v2261
        %v2263 = vpop.xlane.xlu0 %2262
        %v2264 = vsel %vm967, %v2259, 0.0
        %2265 = vadd.xlane.f32.xlu0 %v2264
        %v2266 = vpop.xlane.xlu0 %2265
        %v2267 = vsel %vm974, %v2260, 0.0
        %2268 = vadd.xlane.f32.xlu0 %v2267
        %v2269 = vpop.xlane.xlu0 %2268
        %v2270 = vmul.f32 %v2263, %v978
        %v2271 = vmul.f32 %v2266, %v978
        %v2272 = vmul.f32 %v2269, %v978
        %v2273 = vadd.f32 %v2270, 1e-05
        %v2274 = vadd.f32 %v2271, 1e-05
        %v2275 = vadd.f32 %v2272, 1e-05
        %v2276 = vrsqrt.pop %v2273
        %v2277 = vrsqrt.pop %v2274
        %v2278 = vrsqrt.pop %v2275
        %v2279 = vmul.f32 %v2255, %v2276
        %v2280 = vmul.f32 %v2256, %v2277
        %v2281 = vmul.f32 %v2257, %v2278
        %v2282 = vunpack.c.l.bf16 %v2240
        %v2283 = vlaneseq
        %v2284 = vshrl.u32 %v2283, 7
        %v2285 = vsub.s32 0, %v2284
        %v2286 = vrot.slane %v2282, %v2285
        %v2287 = vmul.f32 %v2279, %v2286
        %v2288 = vmul.f32 %v2280, %v2286
        %v2289 = vmul.f32 %v2281, %v2286
        %v2290 = vunpack.c.l.bf16 %v2242
        %v2291 = vlaneseq
        %v2292 = vshrl.u32 %v2291, 7
        %v2293 = vsub.s32 0, %v2292
        %v2294 = vrot.slane %v2290, %v2293
        %v2295 = vadd.f32 %v2287, %v2294
        %v2296 = vadd.f32 %v2288, %v2294
        %v2297 = vadd.f32 %v2289, %v2294
        %v2298 = vpack.c.bf16 %v2296, %v2295
        %v2299 = vpack.c.bf16 %v2297, %v2297
        %s2300 = scalar_lea.vmem %s5, 16
        %v2301 = vld [vmem:[%s2300] sm:$0xf]
        %v2302 = vld [vmem:[%s2300 + $0x4] sm:$0xf]
        %v2303 = vld [vmem:[%s2300 + $0x8] sm:$0xf]
        %v2304 = vld [vmem:[%s2300 + $0xc] sm:$0xf]
        %s2305 = scalar_lea.vmem %s6, 1
        %v2306 = vld [vmem:[%s2305] sm:$0x1]
        %v2307 = vunpack.c.l.bf16 %v2306
        %v2308 = vlaneseq
        %v2309 = vshrl.u32 %v2308, 7
        %v2310 = vsub.s32 0, %v2309
        %v2311 = vrot.slane %v2307, %v2310
        %v2316 = vunpack.c.l.b16 %v2301
        %v2317 = vunpack.c.l.b16 %v2302
        %v2318 = vunpack.c.l.b16 %v2303
        %v2319 = vunpack.c.l.b16 %v2304
        %v2320 = vpack.c.b16 %v2317, %v2316
        %v2321 = vpack.c.b16 %v2319, %v2318
        %v2325 = vsel %vm967, %v2298, 0
        %v2328 = vsel %vm967, %v2299, 0
        %2330 = vmatprep.subr.bf16.mxu0 0
        %2331 = vmatpush1.bf16.msra.mxu0 %v2320
        %2332 = vmatprep.subr.bf16.mxu0 0
        %2333 = vmatpush1.bf16.msra.mxu0 %v2321
        %2334 = vmatprep.subr.bf16.mxu0 0
        %2335 = vmatpush1.bf16.msra.mxu0 0
        %2336 = vmatprep.subr.bf16.mxu0 0
        %2337 = vmatpush1.bf16.msra.mxu0 0
        %2338 = vmatprep.subr.bf16.mxu0 0
        %2339 = vmatpush1.bf16.msra.mxu0 0
        %2340 = vmatprep.subr.bf16.mxu0 0
        %2341 = vmatpush1.bf16.msra.mxu0 0
        %2342 = vmatprep.subr.bf16.mxu0 0
        %2343 = vmatpush1.bf16.msra.mxu0 0
        %2344 = vmatprep.subr.bf16.mxu0 0
        %2345 = vmatpush1.bf16.msra.mxu0 0
        %2346 = vmatprep.subr.bf16.mxu0 0
        %2347 = vmatpush1.bf16.msra.mxu0 0
        %2348 = vmatprep.subr.bf16.mxu0 0
        %2349 = vmatpush1.bf16.msra.mxu0 0
        %2350 = vmatprep.subr.bf16.mxu0 0
        %2351 = vmatpush1.bf16.msra.mxu0 0
        %2352 = vmatprep.subr.bf16.mxu0 0
        %2353 = vmatpush1.bf16.msra.mxu0 0
        %2354 = vmatprep.subr.bf16.mxu0 0
        %2355 = vmatpush1.bf16.msra.mxu0 0
        %2356 = vmatprep.subr.bf16.mxu0 0
        %2357 = vmatpush1.bf16.msra.mxu0 0
        %2358 = vmatprep.subr.bf16.mxu0 0
        %2359 = vmatpush1.bf16.msra.mxu0 0
        %2360 = vmatprep.subr.bf16.mxu0 0
        %2361 = vmatpush1.bf16.msra.mxu0 0
        %2362 = vmatprep.mubr.bf16.mxu0 0
        %2363 = vmatmul.mubr.bf16.gmra.mrb[0].mxu0 %v2325
        %v2364 = vpop.f32.mrb[0].mxu0
        %v2365 = vadd.f32 %v2311, %v2364
        %v2366 = vpop.f32.mrb[0].mxu0
        %v2367 = vpop.f32.mrb[0].mxu0
        %v2368 = vadd.f32 %v2311, %v2367
        %v2369 = vpop.f32.mrb[0].mxu0
        %2370 = vmatprep.mubr.bf16.mxu0 0
        %2371 = vmatmul.mubr.bf16.gmra.mrb[0].mxu0 %v2328
        %v2372 = vpop.f32.mrb[0].mxu0
        %v2373 = vadd.f32 %v2311, %v2372
        %v2374 = vpop.f32.mrb[0].mxu0
        %v2375 = vpop.f32.mrb[0].mxu0
        %v2376 = vpop.f32.mrb[0].mxu0
        %2377 = vdwg.mxu0
        %v2378 = vpack.c.bf16 %v2368, %v2365
        %v2379 = vpack.c.bf16 %v2373, %v2373
        %2382 = vrot.lane.b32.xlu0 %v2378, 96
        %v2383 = vpop.permute.xlu0 %2382
        %2384 = vrot.lane.b32.xlu0 %v2379, 96
        %v2385 = vpop.permute.xlu0 %2384
        %v2387 = vsel %vm1168, %v2378, 0
        %v2390 = vsel %vm1168, %v2379, 0
        %v2393 = vsel %vm1168, %v2383, 0
        %v2396 = vsel %vm1168, %v2385, 0
        %2398 = vmatprep.subr.bf16.mxu0 0
        %2399 = vmatpush1.bf16.xpose.msra.mxu0 %v2393
        %2400 = vmatprep.subr.bf16.mxu0 0
        %2401 = vmatpush1.bf16.xpose.msra.mxu0 %v2396
        %2402 = vmatprep.subr.bf16.mxu0 0
        %2403 = vmatpush1.bf16.xpose.msra.mxu0 0
        %2404 = vmatprep.subr.bf16.mxu0 0
        %2405 = vmatpush1.bf16.xpose.msra.mxu0 0
        %2406 = vmatprep.subr.bf16.mxu0 0
        %2407 = vmatpush1.bf16.xpose.msra.mxu0 0
        %2408 = vmatprep.subr.bf16.mxu0 0
        %2409 = vmatpush1.bf16.xpose.msra.mxu0 0
        %2410 = vmatprep.subr.bf16.mxu0 0
        %2411 = vmatpush1.bf16.xpose.msra.mxu0 0
        %2412 = vmatprep.subr.bf16.mxu0 0
        %2413 = vmatpush1.bf16.xpose.msra.mxu0 0
        %2414 = vmatprep.subr.bf16.mxu0 0
        %2415 = vmatpush1.bf16.xpose.msra.mxu0 0
        %2416 = vmatprep.subr.bf16.mxu0 0
        %2417 = vmatpush1.bf16.xpose.msra.mxu0 0
        %2418 = vmatprep.subr.bf16.mxu0 0
        %2419 = vmatpush1.bf16.xpose.msra.mxu0 0
        %2420 = vmatprep.subr.bf16.mxu0 0
        %2421 = vmatpush1.bf16.xpose.msra.mxu0 0
        %2422 = vmatprep.subr.bf16.mxu0 0
        %2423 = vmatpush1.bf16.xpose.msra.mxu0 0
        %2424 = vmatprep.subr.bf16.mxu0 0
        %2425 = vmatpush1.bf16.xpose.msra.mxu0 0
        %2426 = vmatprep.subr.bf16.mxu0 0
        %2427 = vmatpush1.bf16.xpose.msra.mxu0 0
        %2428 = vmatprep.subr.bf16.mxu0 0
        %2429 = vmatpush1.bf16.xpose.msra.mxu0 0
        %2430 = vmatprep.mubr.bf16.mxu0 0
        %2431 = vmatmul.mubr.bf16.gmra.mrb[0].mxu0 %v2387
        %v2432 = vpop.f32.mrb[0].mxu0
        %v2433 = vadd.f32 0.0, %v2432
        %v2434 = vpop.f32.mrb[0].mxu0
        %v2435 = vpop.f32.mrb[0].mxu0
        %v2436 = vadd.f32 0.0, %v2435
        %v2437 = vpop.f32.mrb[0].mxu0
        %2438 = vmatprep.mubr.bf16.mxu0 0
        %2439 = vmatmul.mubr.bf16.gmra.mrb[0].mxu0 %v2390
        %v2440 = vpop.f32.mrb[0].mxu0
        %v2441 = vadd.f32 0.0, %v2440
        %v2442 = vpop.f32.mrb[0].mxu0
        %v2443 = vpop.f32.mrb[0].mxu0
        %v2444 = vpop.f32.mrb[0].mxu0
        %2445 = vdwg.mxu0
        %v2446 = vsel %vm1229, %v2433, -inf
        %2447 = vmax.xlane.f32.xlu0 %v2446
        %v2448 = vpop.xlane.xlu0 %2447
        %v2449 = vsel %vm1229, %v2436, -inf
        %2450 = vmax.xlane.f32.xlu0 %v2449
        %v2451 = vpop.xlane.xlu0 %2450
        %v2452 = vsel %vm1236, %v2441, -inf
        %2453 = vmax.xlane.f32.xlu0 %v2452
        %v2454 = vpop.xlane.xlu0 %2453
        %v2455 = vsub.f32 %v2433, %v2448
        %v2456 = vsub.f32 %v2436, %v2451
        %v2457 = vsub.f32 %v2441, %v2454
        %v2458 = vmul.f32 %v2455, 1.442695
        %v2459 = vpow.pop %v2458
        %v2460 = vmul.f32 %v2456, 1.442695
        %v2461 = vpow.pop %v2460
        %v2462 = vmul.f32 %v2457, 1.442695
        %v2463 = vpow.pop %v2462
        %v2464 = vsel %vm1229, %v2459, 0.0
        %2465 = vadd.xlane.f32.xlu0 %v2464
        %v2466 = vpop.xlane.xlu0 %2465
        %v2467 = vsel %vm1229, %v2461, 0.0
        %2468 = vadd.xlane.f32.xlu0 %v2467
        %v2469 = vpop.xlane.xlu0 %2468
        %v2470 = vsel %vm1236, %v2463, 0.0
        %2471 = vadd.xlane.f32.xlu0 %v2470
        %v2472 = vpop.xlane.xlu0 %2471
        %v2473 = vrcp.pop %v2466
        %v2474 = vrcp.pop %v2469
        %v2475 = vrcp.pop %v2472
        %v2476 = vmul.f32 %v2459, %v2473
        %v2477 = vmul.f32 %v2461, %v2474
        %v2478 = vmul.f32 %v2463, %v2475
        %v2479 = vpack.c.bf16 %v2477, %v2476
        %v2480 = vpack.c.bf16 %v2478, %v2478
        %2481 = vrot.lane.b32.xlu0 %v2378, 64
        %v2482 = vpop.permute.xlu0 %2481
        %2483 = vrot.lane.b32.xlu0 %v2379, 64
        %v2484 = vpop.permute.xlu0 %2483
        %v2487 = vsel %vm1229, %v2479, 0
        %v2490 = vsel %vm1229, %v2480, 0
        %v2493 = vand.u32 %v2484, %v1279
        %2495 = vmatprep.subr.bf16.mxu0 0
        %2496 = vmatpush1.bf16.msra.mxu0 %v2482
        %2497 = vmatprep.subr.bf16.mxu0 0
        %2498 = vmatpush1.bf16.msra.mxu0 %v2493
        %2499 = vmatprep.subr.bf16.mxu0 0
        %2500 = vmatpush1.bf16.msra.mxu0 0
        %2501 = vmatprep.subr.bf16.mxu0 0
        %2502 = vmatpush1.bf16.msra.mxu0 0
        %2503 = vmatprep.subr.bf16.mxu0 0
        %2504 = vmatpush1.bf16.msra.mxu0 0
        %2505 = vmatprep.subr.bf16.mxu0 0
        %2506 = vmatpush1.bf16.msra.mxu0 0
        %2507 = vmatprep.subr.bf16.mxu0 0
        %2508 = vmatpush1.bf16.msra.mxu0 0
        %2509 = vmatprep.subr.bf16.mxu0 0
        %2510 = vmatpush1.bf16.msra.mxu0 0
        %2511 = vmatprep.subr.bf16.mxu0 0
        %2512 = vmatpush1.bf16.msra.mxu0 0
        %2513 = vmatprep.subr.bf16.mxu0 0
        %2514 = vmatpush1.bf16.msra.mxu0 0
        %2515 = vmatprep.subr.bf16.mxu0 0
        %2516 = vmatpush1.bf16.msra.mxu0 0
        %2517 = vmatprep.subr.bf16.mxu0 0
        %2518 = vmatpush1.bf16.msra.mxu0 0
        %2519 = vmatprep.subr.bf16.mxu0 0
        %2520 = vmatpush1.bf16.msra.mxu0 0
        %2521 = vmatprep.subr.bf16.mxu0 0
        %2522 = vmatpush1.bf16.msra.mxu0 0
        %2523 = vmatprep.subr.bf16.mxu0 0
        %2524 = vmatpush1.bf16.msra.mxu0 0
        %2525 = vmatprep.subr.bf16.mxu0 0
        %2526 = vmatpush1.bf16.msra.mxu0 0
        %2527 = vmatprep.mubr.bf16.mxu0 0
        %2528 = vmatmul.mubr.bf16.gmra.mrb[0].mxu0 %v2487
        %v2529 = vpop.f32.mrb[0].mxu0
        %v2530 = vadd.f32 0.0, %v2529
        %v2531 = vpop.f32.mrb[0].mxu0
        %v2532 = vpop.f32.mrb[0].mxu0
        %v2533 = vadd.f32 0.0, %v2532
        %v2534 = vpop.f32.mrb[0].mxu0
        %2535 = vmatprep.mubr.bf16.mxu0 0
        %2536 = vmatmul.mubr.bf16.gmra.mrb[0].mxu0 %v2490
        %v2537 = vpop.f32.mrb[0].mxu0
        %v2538 = vadd.f32 0.0, %v2537
        %v2539 = vpop.f32.mrb[0].mxu0
        %v2540 = vpop.f32.mrb[0].mxu0
        %v2541 = vpop.f32.mrb[0].mxu0
        %2542 = vdwg.mxu0
        %2543 = vrot.lane.b32.xlu0 %v2378, 120
        %v2544 = vpop.permute.xlu0 %2543
        %2545 = vrot.lane.b32.xlu0 %v2379, 120
        %v2546 = vpop.permute.xlu0 %2545
        %2547 = vrot.lane.b32.xlu0 %v2378, 88
        %v2548 = vpop.permute.xlu0 %2547
        %2549 = vrot.lane.b32.xlu0 %v2379, 88
        %v2550 = vpop.permute.xlu0 %2549
        %v2552 = vsel %vm1168, %v2544, 0
        %v2555 = vsel %vm1168, %v2546, 0
        %v2558 = vsel %vm1168, %v2548, 0
        %v2561 = vsel %vm1168, %v2550, 0
        %2563 = vmatprep.subr.bf16.mxu0 0
        %2564 = vmatpush1.bf16.xpose.msra.mxu0 %v2558
        %2565 = vmatprep.subr.bf16.mxu0 0
        %2566 = vmatpush1.bf16.xpose.msra.mxu0 %v2561
        %2567 = vmatprep.subr.bf16.mxu0 0
        %2568 = vmatpush1.bf16.xpose.msra.mxu0 0
        %2569 = vmatprep.subr.bf16.mxu0 0
        %2570 = vmatpush1.bf16.xpose.msra.mxu0 0
        %2571 = vmatprep.subr.bf16.mxu0 0
        %2572 = vmatpush1.bf16.xpose.msra.mxu0 0
        %2573 = vmatprep.subr.bf16.mxu0 0
        %2574 = vmatpush1.bf16.xpose.msra.mxu0 0
        %2575 = vmatprep.subr.bf16.mxu0 0
        %2576 = vmatpush1.bf16.xpose.msra.mxu0 0
        %2577 = vmatprep.subr.bf16.mxu0 0
        %2578 = vmatpush1.bf16.xpose.msra.mxu0 0
        %2579 = vmatprep.subr.bf16.mxu0 0
        %2580 = vmatpush1.bf16.xpose.msra.mxu0 0
        %2581 = vmatprep.subr.bf16.mxu0 0
        %2582 = vmatpush1.bf16.xpose.msra.mxu0 0
        %2583 = vmatprep.subr.bf16.mxu0 0
        %2584 = vmatpush1.bf16.xpose.msra.mxu0 0
        %2585 = vmatprep.subr.bf16.mxu0 0
        %2586 = vmatpush1.bf16.xpose.msra.mxu0 0
        %2587 = vmatprep.subr.bf16.mxu0 0
        %2588 = vmatpush1.bf16.xpose.msra.mxu0 0
        %2589 = vmatprep.subr.bf16.mxu0 0
        %2590 = vmatpush1.bf16.xpose.msra.mxu0 0
        %2591 = vmatprep.subr.bf16.mxu0 0
        %2592 = vmatpush1.bf16.xpose.msra.mxu0 0
        %2593 = vmatprep.subr.bf16.mxu0 0
        %2594 = vmatpush1.bf16.xpose.msra.mxu0 0
        %2595 = vmatprep.mubr.bf16.mxu0 0
        %2596 = vmatmul.mubr.bf16.gmra.mrb[0].mxu0 %v2552
        %v2597 = vpop.f32.mrb[0].mxu0
        %v2598 = vadd.f32 0.0, %v2597
        %v2599 = vpop.f32.mrb[0].mxu0
        %v2600 = vpop.f32.mrb[0].mxu0
        %v2601 = vadd.f32 0.0, %v2600
        %v2602 = vpop.f32.mrb[0].mxu0
        %2603 = vmatprep.mubr.bf16.mxu0 0
        %2604 = vmatmul.mubr.bf16.gmra.mrb[0].mxu0 %v2555
        %v2605 = vpop.f32.mrb[0].mxu0
        %v2606 = vadd.f32 0.0, %v2605
        %v2607 = vpop.f32.mrb[0].mxu0
        %v2608 = vpop.f32.mrb[0].mxu0
        %v2609 = vpop.f32.mrb[0].mxu0
        %2610 = vdwg.mxu0
        %v2611 = vsel %vm1229, %v2598, -inf
        %2612 = vmax.xlane.f32.xlu0 %v2611
        %v2613 = vpop.xlane.xlu0 %2612
        %v2614 = vsel %vm1229, %v2601, -inf
        %2615 = vmax.xlane.f32.xlu0 %v2614
        %v2616 = vpop.xlane.xlu0 %2615
        %v2617 = vsel %vm1236, %v2606, -inf
        %2618 = vmax.xlane.f32.xlu0 %v2617
        %v2619 = vpop.xlane.xlu0 %2618
        %v2620 = vsub.f32 %v2598, %v2613
        %v2621 = vsub.f32 %v2601, %v2616
        %v2622 = vsub.f32 %v2606, %v2619
        %v2623 = vmul.f32 %v2620, 1.442695
        %v2624 = vpow.pop %v2623
        %v2625 = vmul.f32 %v2621, 1.442695
        %v2626 = vpow.pop %v2625
        %v2627 = vmul.f32 %v2622, 1.442695
        %v2628 = vpow.pop %v2627
        %v2629 = vsel %vm1229, %v2624, 0.0
        %2630 = vadd.xlane.f32.xlu0 %v2629
        %v2631 = vpop.xlane.xlu0 %2630
        %v2632 = vsel %vm1229, %v2626, 0.0
        %2633 = vadd.xlane.f32.xlu0 %v2632
        %v2634 = vpop.xlane.xlu0 %2633
        %v2635 = vsel %vm1236, %v2628, 0.0
        %2636 = vadd.xlane.f32.xlu0 %v2635
        %v2637 = vpop.xlane.xlu0 %2636
        %v2638 = vrcp.pop %v2631
        %v2639 = vrcp.pop %v2634
        %v2640 = vrcp.pop %v2637
        %v2641 = vmul.f32 %v2624, %v2638
        %v2642 = vmul.f32 %v2626, %v2639
        %v2643 = vmul.f32 %v2628, %v2640
        %v2644 = vpack.c.bf16 %v2642, %v2641
        %v2645 = vpack.c.bf16 %v2643, %v2643
        %2646 = vrot.lane.b32.xlu0 %v2378, 56
        %v2647 = vpop.permute.xlu0 %2646
        %2648 = vrot.lane.b32.xlu0 %v2379, 56
        %v2649 = vpop.permute.xlu0 %2648
        %v2652 = vsel %vm1229, %v2644, 0
        %v2655 = vsel %vm1229, %v2645, 0
        %v2658 = vand.u32 %v2649, %v1279
        %2660 = vmatprep.subr.bf16.mxu0 0
        %2661 = vmatpush1.bf16.msra.mxu0 %v2647
        %2662 = vmatprep.subr.bf16.mxu0 0
        %2663 = vmatpush1.bf16.msra.mxu0 %v2658
        %2664 = vmatprep.subr.bf16.mxu0 0
        %2665 = vmatpush1.bf16.msra.mxu0 0
        %2666 = vmatprep.subr.bf16.mxu0 0
        %2667 = vmatpush1.bf16.msra.mxu0 0
        %2668 = vmatprep.subr.bf16.mxu0 0
        %2669 = vmatpush1.bf16.msra.mxu0 0
        %2670 = vmatprep.subr.bf16.mxu0 0
        %2671 = vmatpush1.bf16.msra.mxu0 0
        %2672 = vmatprep.subr.bf16.mxu0 0
        %2673 = vmatpush1.bf16.msra.mxu0 0
        %2674 = vmatprep.subr.bf16.mxu0 0
        %2675 = vmatpush1.bf16.msra.mxu0 0
        %2676 = vmatprep.subr.bf16.mxu0 0
        %2677 = vmatpush1.bf16.msra.mxu0 0
        %2678 = vmatprep.subr.bf16.mxu0 0
        %2679 = vmatpush1.bf16.msra.mxu0 0
        %2680 = vmatprep.subr.bf16.mxu0 0
        %2681 = vmatpush1.bf16.msra.mxu0 0
        %2682 = vmatprep.subr.bf16.mxu0 0
        %2683 = vmatpush1.bf16.msra.mxu0 0
        %2684 = vmatprep.subr.bf16.mxu0 0
        %2685 = vmatpush1.bf16.msra.mxu0 0
        %2686 = vmatprep.subr.bf16.mxu0 0
        %2687 = vmatpush1.bf16.msra.mxu0 0
        %2688 = vmatprep.subr.bf16.mxu0 0
        %2689 = vmatpush1.bf16.msra.mxu0 0
        %2690 = vmatprep.subr.bf16.mxu0 0
        %2691 = vmatpush1.bf16.msra.mxu0 0
        %2692 = vmatprep.mubr.bf16.mxu0 0
        %2693 = vmatmul.mubr.bf16.gmra.mrb[0].mxu0 %v2652
        %v2694 = vpop.f32.mrb[0].mxu0
        %v2695 = vadd.f32 0.0, %v2694
        %v2696 = vpop.f32.mrb[0].mxu0
        %v2697 = vpop.f32.mrb[0].mxu0
        %v2698 = vadd.f32 0.0, %v2697
        %v2699 = vpop.f32.mrb[0].mxu0
        %2700 = vmatprep.mubr.bf16.mxu0 0
        %2701 = vmatmul.mubr.bf16.gmra.mrb[0].mxu0 %v2655
        %v2702 = vpop.f32.mrb[0].mxu0
        %v2703 = vadd.f32 0.0, %v2702
        %v2704 = vpop.f32.mrb[0].mxu0
        %v2705 = vpop.f32.mrb[0].mxu0
        %v2706 = vpop.f32.mrb[0].mxu0
        %2707 = vdwg.mxu0
        %2708 = vrot.lane.b32.xlu0 %v2378, 112
        %v2709 = vpop.permute.xlu0 %2708
        %2710 = vrot.lane.b32.xlu0 %v2379, 112
        %v2711 = vpop.permute.xlu0 %2710
        %2712 = vrot.lane.b32.xlu0 %v2378, 80
        %v2713 = vpop.permute.xlu0 %2712
        %2714 = vrot.lane.b32.xlu0 %v2379, 80
        %v2715 = vpop.permute.xlu0 %2714
        %v2717 = vsel %vm1168, %v2709, 0
        %v2720 = vsel %vm1168, %v2711, 0
        %v2723 = vsel %vm1168, %v2713, 0
        %v2726 = vsel %vm1168, %v2715, 0
        %2728 = vmatprep.subr.bf16.mxu0 0
        %2729 = vmatpush1.bf16.xpose.msra.mxu0 %v2723
        %2730 = vmatprep.subr.bf16.mxu0 0
        %2731 = vmatpush1.bf16.xpose.msra.mxu0 %v2726
        %2732 = vmatprep.subr.bf16.mxu0 0
        %2733 = vmatpush1.bf16.xpose.msra.mxu0 0
        %2734 = vmatprep.subr.bf16.mxu0 0
        %2735 = vmatpush1.bf16.xpose.msra.mxu0 0
        %2736 = vmatprep.subr.bf16.mxu0 0
        %2737 = vmatpush1.bf16.xpose.msra.mxu0 0
        %2738 = vmatprep.subr.bf16.mxu0 0
        %2739 = vmatpush1.bf16.xpose.msra.mxu0 0
        %2740 = vmatprep.subr.bf16.mxu0 0
        %2741 = vmatpush1.bf16.xpose.msra.mxu0 0
        %2742 = vmatprep.subr.bf16.mxu0 0
        %2743 = vmatpush1.bf16.xpose.msra.mxu0 0
        %2744 = vmatprep.subr.bf16.mxu0 0
        %2745 = vmatpush1.bf16.xpose.msra.mxu0 0
        %2746 = vmatprep.subr.bf16.mxu0 0
        %2747 = vmatpush1.bf16.xpose.msra.mxu0 0
        %2748 = vmatprep.subr.bf16.mxu0 0
        %2749 = vmatpush1.bf16.xpose.msra.mxu0 0
        %2750 = vmatprep.subr.bf16.mxu0 0
        %2751 = vmatpush1.bf16.xpose.msra.mxu0 0
        %2752 = vmatprep.subr.bf16.mxu0 0
        %2753 = vmatpush1.bf16.xpose.msra.mxu0 0
        %2754 = vmatprep.subr.bf16.mxu0 0
        %2755 = vmatpush1.bf16.xpose.msra.mxu0 0
        %2756 = vmatprep.subr.bf16.mxu0 0
        %2757 = vmatpush1.bf16.xpose.msra.mxu0 0
        %2758 = vmatprep.subr.bf16.mxu0 0
        %2759 = vmatpush1.bf16.xpose.msra.mxu0 0
        %2760 = vmatprep.mubr.bf16.mxu0 0
        %2761 = vmatmul.mubr.bf16.gmra.mrb[0].mxu0 %v2717
        %v2762 = vpop.f32.mrb[0].mxu0
        %v2763 = vadd.f32 0.0, %v2762
        %v2764 = vpop.f32.mrb[0].mxu0
        %v2765 = vpop.f32.mrb[0].mxu0
        %v2766 = vadd.f32 0.0, %v2765
        %v2767 = vpop.f32.mrb[0].mxu0
        %2768 = vmatprep.mubr.bf16.mxu0 0
        %2769 = vmatmul.mubr.bf16.gmra.mrb[0].mxu0 %v2720
        %v2770 = vpop.f32.mrb[0].mxu0
        %v2771 = vadd.f32 0.0, %v2770
        %v2772 = vpop.f32.mrb[0].mxu0
        %v2773 = vpop.f32.mrb[0].mxu0
        %v2774 = vpop.f32.mrb[0].mxu0
        %2775 = vdwg.mxu0
        %v2776 = vsel %vm1229, %v2763, -inf
        %2777 = vmax.xlane.f32.xlu0 %v2776
        %v2778 = vpop.xlane.xlu0 %2777
        %v2779 = vsel %vm1229, %v2766, -inf
        %2780 = vmax.xlane.f32.xlu0 %v2779
        %v2781 = vpop.xlane.xlu0 %2780
        %v2782 = vsel %vm1236, %v2771, -inf
        %2783 = vmax.xlane.f32.xlu0 %v2782
        %v2784 = vpop.xlane.xlu0 %2783
        %v2785 = vsub.f32 %v2763, %v2778
        %v2786 = vsub.f32 %v2766, %v2781
        %v2787 = vsub.f32 %v2771, %v2784
        %v2788 = vmul.f32 %v2785, 1.442695
        %v2789 = vpow.pop %v2788
        %v2790 = vmul.f32 %v2786, 1.442695
        %v2791 = vpow.pop %v2790
        %v2792 = vmul.f32 %v2787, 1.442695
        %v2793 = vpow.pop %v2792
        %v2794 = vsel %vm1229, %v2789, 0.0
        %2795 = vadd.xlane.f32.xlu0 %v2794
        %v2796 = vpop.xlane.xlu0 %2795
        %v2797 = vsel %vm1229, %v2791, 0.0
        %2798 = vadd.xlane.f32.xlu0 %v2797
        %v2799 = vpop.xlane.xlu0 %2798
        %v2800 = vsel %vm1236, %v2793, 0.0
        %2801 = vadd.xlane.f32.xlu0 %v2800
        %v2802 = vpop.xlane.xlu0 %2801
        %v2803 = vrcp.pop %v2796
        %v2804 = vrcp.pop %v2799
        %v2805 = vrcp.pop %v2802
        %v2806 = vmul.f32 %v2789, %v2803
        %v2807 = vmul.f32 %v2791, %v2804
        %v2808 = vmul.f32 %v2793, %v2805
        %v2809 = vpack.c.bf16 %v2807, %v2806
        %v2810 = vpack.c.bf16 %v2808, %v2808
        %2811 = vrot.lane.b32.xlu0 %v2378, 48
        %v2812 = vpop.permute.xlu0 %2811
        %2813 = vrot.lane.b32.xlu0 %v2379, 48
        %v2814 = vpop.permute.xlu0 %2813
        %v2817 = vsel %vm1229, %v2809, 0
        %v2820 = vsel %vm1229, %v2810, 0
        %v2823 = vand.u32 %v2814, %v1279
        %2825 = vmatprep.subr.bf16.mxu0 0
        %2826 = vmatpush1.bf16.msra.mxu0 %v2812
        %2827 = vmatprep.subr.bf16.mxu0 0
        %2828 = vmatpush1.bf16.msra.mxu0 %v2823
        %2829 = vmatprep.subr.bf16.mxu0 0
        %2830 = vmatpush1.bf16.msra.mxu0 0
        %2831 = vmatprep.subr.bf16.mxu0 0
        %2832 = vmatpush1.bf16.msra.mxu0 0
        %2833 = vmatprep.subr.bf16.mxu0 0
        %2834 = vmatpush1.bf16.msra.mxu0 0
        %2835 = vmatprep.subr.bf16.mxu0 0
        %2836 = vmatpush1.bf16.msra.mxu0 0
        %2837 = vmatprep.subr.bf16.mxu0 0
        %2838 = vmatpush1.bf16.msra.mxu0 0
        %2839 = vmatprep.subr.bf16.mxu0 0
        %2840 = vmatpush1.bf16.msra.mxu0 0
        %2841 = vmatprep.subr.bf16.mxu0 0
        %2842 = vmatpush1.bf16.msra.mxu0 0
        %2843 = vmatprep.subr.bf16.mxu0 0
        %2844 = vmatpush1.bf16.msra.mxu0 0
        %2845 = vmatprep.subr.bf16.mxu0 0
        %2846 = vmatpush1.bf16.msra.mxu0 0
        %2847 = vmatprep.subr.bf16.mxu0 0
        %2848 = vmatpush1.bf16.msra.mxu0 0
        %2849 = vmatprep.subr.bf16.mxu0 0
        %2850 = vmatpush1.bf16.msra.mxu0 0
        %2851 = vmatprep.subr.bf16.mxu0 0
        %2852 = vmatpush1.bf16.msra.mxu0 0
        %2853 = vmatprep.subr.bf16.mxu0 0
        %2854 = vmatpush1.bf16.msra.mxu0 0
        %2855 = vmatprep.subr.bf16.mxu0 0
        %2856 = vmatpush1.bf16.msra.mxu0 0
        %2857 = vmatprep.mubr.bf16.mxu0 0
        %2858 = vmatmul.mubr.bf16.gmra.mrb[0].mxu0 %v2817
        %v2859 = vpop.f32.mrb[0].mxu0
        %v2860 = vadd.f32 0.0, %v2859
        %v2861 = vpop.f32.mrb[0].mxu0
        %v2862 = vpop.f32.mrb[0].mxu0
        %v2863 = vadd.f32 0.0, %v2862
        %v2864 = vpop.f32.mrb[0].mxu0
        %2865 = vmatprep.mubr.bf16.mxu0 0
        %2866 = vmatmul.mubr.bf16.gmra.mrb[0].mxu0 %v2820
        %v2867 = vpop.f32.mrb[0].mxu0
        %v2868 = vadd.f32 0.0, %v2867
        %v2869 = vpop.f32.mrb[0].mxu0
        %v2870 = vpop.f32.mrb[0].mxu0
        %v2871 = vpop.f32.mrb[0].mxu0
        %2872 = vdwg.mxu0
        %2873 = vrot.lane.b32.xlu0 %v2378, 104
        %v2874 = vpop.permute.xlu0 %2873
        %2875 = vrot.lane.b32.xlu0 %v2379, 104
        %v2876 = vpop.permute.xlu0 %2875
        %2877 = vrot.lane.b32.xlu0 %v2378, 72
        %v2878 = vpop.permute.xlu0 %2877
        %2879 = vrot.lane.b32.xlu0 %v2379, 72
        %v2880 = vpop.permute.xlu0 %2879
        %v2882 = vsel %vm1168, %v2874, 0
        %v2885 = vsel %vm1168, %v2876, 0
        %v2888 = vsel %vm1168, %v2878, 0
        %v2891 = vsel %vm1168, %v2880, 0
        %2893 = vmatprep.subr.bf16.mxu0 0
        %2894 = vmatpush1.bf16.xpose.msra.mxu0 %v2888
        %2895 = vmatprep.subr.bf16.mxu0 0
        %2896 = vmatpush1.bf16.xpose.msra.mxu0 %v2891
        %2897 = vmatprep.subr.bf16.mxu0 0
        %2898 = vmatpush1.bf16.xpose.msra.mxu0 0
        %2899 = vmatprep.subr.bf16.mxu0 0
        %2900 = vmatpush1.bf16.xpose.msra.mxu0 0
        %2901 = vmatprep.subr.bf16.mxu0 0
        %2902 = vmatpush1.bf16.xpose.msra.mxu0 0
        %2903 = vmatprep.subr.bf16.mxu0 0
        %2904 = vmatpush1.bf16.xpose.msra.mxu0 0
        %2905 = vmatprep.subr.bf16.mxu0 0
        %2906 = vmatpush1.bf16.xpose.msra.mxu0 0
        %2907 = vmatprep.subr.bf16.mxu0 0
        %2908 = vmatpush1.bf16.xpose.msra.mxu0 0
        %2909 = vmatprep.subr.bf16.mxu0 0
        %2910 = vmatpush1.bf16.xpose.msra.mxu0 0
        %2911 = vmatprep.subr.bf16.mxu0 0
        %2912 = vmatpush1.bf16.xpose.msra.mxu0 0
        %2913 = vmatprep.subr.bf16.mxu0 0
        %2914 = vmatpush1.bf16.xpose.msra.mxu0 0
        %2915 = vmatprep.subr.bf16.mxu0 0
        %2916 = vmatpush1.bf16.xpose.msra.mxu0 0
        %2917 = vmatprep.subr.bf16.mxu0 0
        %2918 = vmatpush1.bf16.xpose.msra.mxu0 0
        %2919 = vmatprep.subr.bf16.mxu0 0
        %2920 = vmatpush1.bf16.xpose.msra.mxu0 0
        %2921 = vmatprep.subr.bf16.mxu0 0
        %2922 = vmatpush1.bf16.xpose.msra.mxu0 0
        %2923 = vmatprep.subr.bf16.mxu0 0
        %2924 = vmatpush1.bf16.xpose.msra.mxu0 0
        %2925 = vmatprep.mubr.bf16.mxu0 0
        %2926 = vmatmul.mubr.bf16.gmra.mrb[0].mxu0 %v2882
        %v2927 = vpop.f32.mrb[0].mxu0
        %v2928 = vadd.f32 0.0, %v2927
        %v2929 = vpop.f32.mrb[0].mxu0
        %v2930 = vpop.f32.mrb[0].mxu0
        %v2931 = vadd.f32 0.0, %v2930
        %v2932 = vpop.f32.mrb[0].mxu0
        %2933 = vmatprep.mubr.bf16.mxu0 0
        %2934 = vmatmul.mubr.bf16.gmra.mrb[0].mxu0 %v2885
        %v2935 = vpop.f32.mrb[0].mxu0
        %v2936 = vadd.f32 0.0, %v2935
        %v2937 = vpop.f32.mrb[0].mxu0
        %v2938 = vpop.f32.mrb[0].mxu0
        %v2939 = vpop.f32.mrb[0].mxu0
        %2940 = vdwg.mxu0
        %v2941 = vsel %vm1229, %v2928, -inf
        %2942 = vmax.xlane.f32.xlu0 %v2941
        %v2943 = vpop.xlane.xlu0 %2942
        %v2944 = vsel %vm1229, %v2931, -inf
        %2945 = vmax.xlane.f32.xlu0 %v2944
        %v2946 = vpop.xlane.xlu0 %2945
        %v2947 = vsel %vm1236, %v2936, -inf
        %2948 = vmax.xlane.f32.xlu0 %v2947
        %v2949 = vpop.xlane.xlu0 %2948
        %v2950 = vsub.f32 %v2928, %v2943
        %v2951 = vsub.f32 %v2931, %v2946
        %v2952 = vsub.f32 %v2936, %v2949
        %v2953 = vmul.f32 %v2950, 1.442695
        %v2954 = vpow.pop %v2953
        %v2955 = vmul.f32 %v2951, 1.442695
        %v2956 = vpow.pop %v2955
        %v2957 = vmul.f32 %v2952, 1.442695
        %v2958 = vpow.pop %v2957
        %v2959 = vsel %vm1229, %v2954, 0.0
        %2960 = vadd.xlane.f32.xlu0 %v2959
        %v2961 = vpop.xlane.xlu0 %2960
        %v2962 = vsel %vm1229, %v2956, 0.0
        %2963 = vadd.xlane.f32.xlu0 %v2962
        %v2964 = vpop.xlane.xlu0 %2963
        %v2965 = vsel %vm1236, %v2958, 0.0
        %2966 = vadd.xlane.f32.xlu0 %v2965
        %v2967 = vpop.xlane.xlu0 %2966
        %v2968 = vrcp.pop %v2961
        %v2969 = vrcp.pop %v2964
        %v2970 = vrcp.pop %v2967
        %v2971 = vmul.f32 %v2954, %v2968
        %v2972 = vmul.f32 %v2956, %v2969
        %v2973 = vmul.f32 %v2958, %v2970
        %v2974 = vpack.c.bf16 %v2972, %v2971
        %v2975 = vpack.c.bf16 %v2973, %v2973
        %2976 = vrot.lane.b32.xlu0 %v2378, 40
        %v2977 = vpop.permute.xlu0 %2976
        %2978 = vrot.lane.b32.xlu0 %v2379, 40
        %v2979 = vpop.permute.xlu0 %2978
        %v2982 = vsel %vm1229, %v2974, 0
        %v2985 = vsel %vm1229, %v2975, 0
        %v2988 = vand.u32 %v2979, %v1279
        %2990 = vmatprep.subr.bf16.mxu0 0
        %2991 = vmatpush1.bf16.msra.mxu0 %v2977
        %2992 = vmatprep.subr.bf16.mxu0 0
        %2993 = vmatpush1.bf16.msra.mxu0 %v2988
        %2994 = vmatprep.subr.bf16.mxu0 0
        %2995 = vmatpush1.bf16.msra.mxu0 0
        %2996 = vmatprep.subr.bf16.mxu0 0
        %2997 = vmatpush1.bf16.msra.mxu0 0
        %2998 = vmatprep.subr.bf16.mxu0 0
        %2999 = vmatpush1.bf16.msra.mxu0 0
        %3000 = vmatprep.subr.bf16.mxu0 0
        %3001 = vmatpush1.bf16.msra.mxu0 0
        %3002 = vmatprep.subr.bf16.mxu0 0
        %3003 = vmatpush1.bf16.msra.mxu0 0
        %3004 = vmatprep.subr.bf16.mxu0 0
        %3005 = vmatpush1.bf16.msra.mxu0 0
        %3006 = vmatprep.subr.bf16.mxu0 0
        %3007 = vmatpush1.bf16.msra.mxu0 0
        %3008 = vmatprep.subr.bf16.mxu0 0
        %3009 = vmatpush1.bf16.msra.mxu0 0
        %3010 = vmatprep.subr.bf16.mxu0 0
        %3011 = vmatpush1.bf16.msra.mxu0 0
        %3012 = vmatprep.subr.bf16.mxu0 0
        %3013 = vmatpush1.bf16.msra.mxu0 0
        %3014 = vmatprep.subr.bf16.mxu0 0
        %3015 = vmatpush1.bf16.msra.mxu0 0
        %3016 = vmatprep.subr.bf16.mxu0 0
        %3017 = vmatpush1.bf16.msra.mxu0 0
        %3018 = vmatprep.subr.bf16.mxu0 0
        %3019 = vmatpush1.bf16.msra.mxu0 0
        %3020 = vmatprep.subr.bf16.mxu0 0
        %3021 = vmatpush1.bf16.msra.mxu0 0
        %3022 = vmatprep.mubr.bf16.mxu0 0
        %3023 = vmatmul.mubr.bf16.gmra.mrb[0].mxu0 %v2982
        %v3024 = vpop.f32.mrb[0].mxu0
        %v3025 = vadd.f32 0.0, %v3024
        %v3026 = vpop.f32.mrb[0].mxu0
        %v3027 = vpop.f32.mrb[0].mxu0
        %v3028 = vadd.f32 0.0, %v3027
        %v3029 = vpop.f32.mrb[0].mxu0
        %3030 = vmatprep.mubr.bf16.mxu0 0
        %3031 = vmatmul.mubr.bf16.gmra.mrb[0].mxu0 %v2985
        %v3032 = vpop.f32.mrb[0].mxu0
        %v3033 = vadd.f32 0.0, %v3032
        %v3034 = vpop.f32.mrb[0].mxu0
        %v3035 = vpop.f32.mrb[0].mxu0
        %v3036 = vpop.f32.mrb[0].mxu0
        %3037 = vdwg.mxu0
        %3041 = vrot.lane.b32.xlu0 %v2695, 8
        %v3042 = vpop.permute.xlu0 %3041
        %3043 = vrot.lane.b32.xlu0 %v2698, 8
        %v3044 = vpop.permute.xlu0 %3043
        %3045 = vrot.lane.b32.xlu0 %v2703, 8
        %v3046 = vpop.permute.xlu0 %3045
        %3053 = vrot.lane.b32.xlu0 %v2860, 16
        %v3054 = vpop.permute.xlu0 %3053
        %3055 = vrot.lane.b32.xlu0 %v2863, 16
        %v3056 = vpop.permute.xlu0 %3055
        %3057 = vrot.lane.b32.xlu0 %v2868, 16
        %v3058 = vpop.permute.xlu0 %3057
        %3065 = vrot.lane.b32.xlu0 %v3025, 24
        %v3066 = vpop.permute.xlu0 %3065
        %3067 = vrot.lane.b32.xlu0 %v3028, 24
        %v3068 = vpop.permute.xlu0 %3067
        %3069 = vrot.lane.b32.xlu0 %v3033, 24
        %v3070 = vpop.permute.xlu0 %3069
        %v3074 = vsel %vm1168, %v2530, %v3042
        %v3075 = vsel %vm1168, %v2533, %v3044
        %v3076 = vsel %vm1168, %v2538, %v3046
        %v3077 = vsel %vm1865, %v3074, %v3054
        %v3078 = vsel %vm1865, %v3075, %v3056
        %v3079 = vsel %vm1865, %v3076, %v3058
        %v3080 = vsel %vm1869, %v3077, %v3066
        %v3081 = vsel %vm1869, %v3078, %v3068
        %v3082 = vsel %vm1869, %v3079, %v3070
        %v3083 = vpack.c.bf16 %v3081, %v3080
        %v3084 = vpack.c.bf16 %v3082, %v3082
        %s3085 = scalar_lea.vmem %s7, 16
        %v3086 = vld [vmem:[%s3085] sm:$0xf]
        %v3087 = vld [vmem:[%s3085 + $0x4] sm:$0xf]
        %v3088 = vld [vmem:[%s3085 + $0x8] sm:$0xf]
        %v3089 = vld [vmem:[%s3085 + $0xc] sm:$0xf]
        %s3090 = scalar_lea.vmem %s8, 1
        %v3091 = vld [vmem:[%s3090] sm:$0x1]
        %v3092 = vunpack.c.l.bf16 %v3091
        %v3093 = vlaneseq
        %v3094 = vshrl.u32 %v3093, 7
        %v3095 = vsub.s32 0, %v3094
        %v3096 = vrot.slane %v3092, %v3095
        %v3101 = vunpack.c.l.b16 %v3086
        %v3102 = vunpack.c.l.b16 %v3087
        %v3103 = vunpack.c.l.b16 %v3088
        %v3104 = vunpack.c.l.b16 %v3089
        %v3105 = vpack.c.b16 %v3102, %v3101
        %v3106 = vpack.c.b16 %v3104, %v3103
        %v3110 = vsel %vm967, %v3083, 0
        %v3113 = vsel %vm967, %v3084, 0
        %3115 = vmatprep.subr.bf16.mxu0 0
        %3116 = vmatpush1.bf16.msra.mxu0 %v3105
        %3117 = vmatprep.subr.bf16.mxu0 0
        %3118 = vmatpush1.bf16.msra.mxu0 %v3106
        %3119 = vmatprep.subr.bf16.mxu0 0
        %3120 = vmatpush1.bf16.msra.mxu0 0
        %3121 = vmatprep.subr.bf16.mxu0 0
        %3122 = vmatpush1.bf16.msra.mxu0 0
        %3123 = vmatprep.subr.bf16.mxu0 0
        %3124 = vmatpush1.bf16.msra.mxu0 0
        %3125 = vmatprep.subr.bf16.mxu0 0
        %3126 = vmatpush1.bf16.msra.mxu0 0
        %3127 = vmatprep.subr.bf16.mxu0 0
        %3128 = vmatpush1.bf16.msra.mxu0 0
        %3129 = vmatprep.subr.bf16.mxu0 0
        %3130 = vmatpush1.bf16.msra.mxu0 0
        %3131 = vmatprep.subr.bf16.mxu0 0
        %3132 = vmatpush1.bf16.msra.mxu0 0
        %3133 = vmatprep.subr.bf16.mxu0 0
        %3134 = vmatpush1.bf16.msra.mxu0 0
        %3135 = vmatprep.subr.bf16.mxu0 0
        %3136 = vmatpush1.bf16.msra.mxu0 0
        %3137 = vmatprep.subr.bf16.mxu0 0
        %3138 = vmatpush1.bf16.msra.mxu0 0
        %3139 = vmatprep.subr.bf16.mxu0 0
        %3140 = vmatpush1.bf16.msra.mxu0 0
        %3141 = vmatprep.subr.bf16.mxu0 0
        %3142 = vmatpush1.bf16.msra.mxu0 0
        %3143 = vmatprep.subr.bf16.mxu0 0
        %3144 = vmatpush1.bf16.msra.mxu0 0
        %3145 = vmatprep.subr.bf16.mxu0 0
        %3146 = vmatpush1.bf16.msra.mxu0 0
        %3147 = vmatprep.mubr.bf16.mxu0 0
        %3148 = vmatmul.mubr.bf16.gmra.mrb[0].mxu0 %v3110
        %v3149 = vpop.f32.mrb[0].mxu0
        %v3150 = vadd.f32 %v3096, %v3149
        %v3151 = vpop.f32.mrb[0].mxu0
        %v3152 = vpop.f32.mrb[0].mxu0
        %v3153 = vadd.f32 %v3096, %v3152
        %v3154 = vpop.f32.mrb[0].mxu0
        %3155 = vmatprep.mubr.bf16.mxu0 0
        %3156 = vmatmul.mubr.bf16.gmra.mrb[0].mxu0 %v3113
        %v3157 = vpop.f32.mrb[0].mxu0
        %v3158 = vadd.f32 %v3096, %v3157
        %v3159 = vpop.f32.mrb[0].mxu0
        %v3160 = vpop.f32.mrb[0].mxu0
        %v3161 = vpop.f32.mrb[0].mxu0
        %3162 = vdwg.mxu0
        %v3163 = vadd.f32 %v2236, %v3150
        %v3164 = vadd.f32 %v2237, %v3153
        %v3165 = vadd.f32 %v2238, %v3158
        %s3166 = scalar_lea.vmem %s11, 1
        %v3167 = vld [vmem:[%s3166] sm:$0x1]
        %s3168 = scalar_lea.vmem %s12, 1
        %v3169 = vld [vmem:[%s3168] sm:$0x1]
        %v3170 = vsel %vm967, %v3163, 0.0
        %3171 = vadd.xlane.f32.xlu0 %v3170
        %v3172 = vpop.xlane.xlu0 %3171
        %v3173 = vsel %vm967, %v3164, 0.0
        %3174 = vadd.xlane.f32.xlu0 %v3173
        %v3175 = vpop.xlane.xlu0 %3174
        %v3176 = vsel %vm974, %v3165, 0.0
        %3177 = vadd.xlane.f32.xlu0 %v3176
        %v3178 = vpop.xlane.xlu0 %3177
        %v3179 = vmul.f32 %v3172, %v978
        %v3180 = vmul.f32 %v3175, %v978
        %v3181 = vmul.f32 %v3178, %v978
        %v3182 = vsub.f32 %v3163, %v3179
        %v3183 = vsub.f32 %v3164, %v3180
        %v3184 = vsub.f32 %v3165, %v3181
        %v3185 = vmul.f32 %v3182, %v3182
        %v3186 = vmul.f32 %v3183, %v3183
        %v3187 = vmul.f32 %v3184, %v3184
        %v3188 = vsel %vm967, %v3185, 0.0
        %3189 = vadd.xlane.f32.xlu0 %v3188
        %v3190 = vpop.xlane.xlu0 %3189
        %v3191 = vsel %vm967, %v3186, 0.0
        %3192 = vadd.xlane.f32.xlu0 %v3191
        %v3193 = vpop.xlane.xlu0 %3192
        %v3194 = vsel %vm974, %v3187, 0.0
        %3195 = vadd.xlane.f32.xlu0 %v3194
        %v3196 = vpop.xlane.xlu0 %3195
        %v3197 = vmul.f32 %v3190, %v978
        %v3198 = vmul.f32 %v3193, %v978
        %v3199 = vmul.f32 %v3196, %v978
        %v3200 = vadd.f32 %v3197, 1e-05
        %v3201 = vadd.f32 %v3198, 1e-05
        %v3202 = vadd.f32 %v3199, 1e-05
        %v3203 = vrsqrt.pop %v3200
        %v3204 = vrsqrt.pop %v3201
        %v3205 = vrsqrt.pop %v3202
        %v3206 = vmul.f32 %v3182, %v3203
        %v3207 = vmul.f32 %v3183, %v3204
        %v3208 = vmul.f32 %v3184, %v3205
        %v3209 = vunpack.c.l.bf16 %v3167
        %v3210 = vlaneseq
        %v3211 = vshrl.u32 %v3210, 7
        %v3212 = vsub.s32 0, %v3211
        %v3213 = vrot.slane %v3209, %v3212
        %v3214 = vmul.f32 %v3206, %v3213
        %v3215 = vmul.f32 %v3207, %v3213
        %v3216 = vmul.f32 %v3208, %v3213
        %v3217 = vunpack.c.l.bf16 %v3169
        %v3218 = vlaneseq
        %v3219 = vshrl.u32 %v3218, 7
        %v3220 = vsub.s32 0, %v3219
        %v3221 = vrot.slane %v3217, %v3220
        %v3222 = vadd.f32 %v3214, %v3221
        %v3223 = vadd.f32 %v3215, %v3221
        %v3224 = vadd.f32 %v3216, %v3221
        %v3225 = vpack.c.bf16 %v3223, %v3222
        %v3226 = vpack.c.bf16 %v3224, %v3224
        %s3227 = scalar_lea.vmem %s13, 16
        %v3228 = vld [vmem:[%s3227] sm:$0xf]
        %v3229 = vld [vmem:[%s3227 + $0x4] sm:$0xf]
        %v3230 = vld [vmem:[%s3227 + $0x8] sm:$0xf]
        %v3231 = vld [vmem:[%s3227 + $0xc] sm:$0xf]
        %s3232 = scalar_lea.vmem %s14, 1
        %v3233 = vld [vmem:[%s3232] sm:$0x1]
        %v3234 = vunpack.c.l.bf16 %v3233
        %v3235 = vlaneseq
        %v3236 = vshrl.u32 %v3235, 7
        %v3237 = vsub.s32 0, %v3236
        %v3238 = vrot.slane %v3234, %v3237
        %v3243 = vunpack.c.l.b16 %v3228
        %v3244 = vunpack.c.l.b16 %v3229
        %v3245 = vunpack.c.l.b16 %v3230
        %v3246 = vunpack.c.l.b16 %v3231
        %v3247 = vpack.c.b16 %v3244, %v3243
        %v3248 = vpack.c.b16 %v3246, %v3245
        %v3252 = vsel %vm967, %v3225, 0
        %v3255 = vsel %vm967, %v3226, 0
        %3257 = vmatprep.subr.bf16.mxu0 0
        %3258 = vmatpush1.bf16.msra.mxu0 %v3247
        %3259 = vmatprep.subr.bf16.mxu0 0
        %3260 = vmatpush1.bf16.msra.mxu0 %v3248
        %3261 = vmatprep.subr.bf16.mxu0 0
        %3262 = vmatpush1.bf16.msra.mxu0 0
        %3263 = vmatprep.subr.bf16.mxu0 0
        %3264 = vmatpush1.bf16.msra.mxu0 0
        %3265 = vmatprep.subr.bf16.mxu0 0
        %3266 = vmatpush1.bf16.msra.mxu0 0
        %3267 = vmatprep.subr.bf16.mxu0 0
        %3268 = vmatpush1.bf16.msra.mxu0 0
        %3269 = vmatprep.subr.bf16.mxu0 0
        %3270 = vmatpush1.bf16.msra.mxu0 0
        %3271 = vmatprep.subr.bf16.mxu0 0
        %3272 = vmatpush1.bf16.msra.mxu0 0
        %3273 = vmatprep.subr.bf16.mxu0 0
        %3274 = vmatpush1.bf16.msra.mxu0 0
        %3275 = vmatprep.subr.bf16.mxu0 0
        %3276 = vmatpush1.bf16.msra.mxu0 0
        %3277 = vmatprep.subr.bf16.mxu0 0
        %3278 = vmatpush1.bf16.msra.mxu0 0
        %3279 = vmatprep.subr.bf16.mxu0 0
        %3280 = vmatpush1.bf16.msra.mxu0 0
        %3281 = vmatprep.subr.bf16.mxu0 0
        %3282 = vmatpush1.bf16.msra.mxu0 0
        %3283 = vmatprep.subr.bf16.mxu0 0
        %3284 = vmatpush1.bf16.msra.mxu0 0
        %3285 = vmatprep.subr.bf16.mxu0 0
        %3286 = vmatpush1.bf16.msra.mxu0 0
        %3287 = vmatprep.subr.bf16.mxu0 0
        %3288 = vmatpush1.bf16.msra.mxu0 0
        %3289 = vmatprep.mubr.bf16.mxu0 0
        %3290 = vmatmul.mubr.bf16.gmra.mrb[0].mxu0 %v3252
        %v3291 = vpop.f32.mrb[0].mxu0
        %v3292 = vadd.f32 %v3238, %v3291
        %v3293 = vpop.f32.mrb[0].mxu0
        %v3294 = vpop.f32.mrb[0].mxu0
        %v3295 = vadd.f32 %v3238, %v3294
        %v3296 = vpop.f32.mrb[0].mxu0
        %3297 = vmatprep.mubr.bf16.mxu0 0
        %3298 = vmatmul.mubr.bf16.gmra.mrb[0].mxu0 %v3255
        %v3299 = vpop.f32.mrb[0].mxu0
        %v3300 = vadd.f32 %v3238, %v3299
        %v3301 = vpop.f32.mrb[0].mxu0
        %v3302 = vpop.f32.mrb[0].mxu0
        %v3303 = vpop.f32.mrb[0].mxu0
        %3304 = vdwg.mxu0
        %v3305 = vmul.f32 %v3292, 1.702
        %v3306 = vmul.f32 %v3295, 1.702
        %v3307 = vmul.f32 %v3300, 1.702
        %v3308 = vxor.u32 %v3305, 2147483648
        %v3309 = vxor.u32 %v3306, 2147483648
        %v3310 = vxor.u32 %v3307, 2147483648
        %v3311 = vmul.f32 %v3308, 1.442695
        %v3312 = vpow.pop %v3311
        %v3313 = vmul.f32 %v3309, 1.442695
        %v3314 = vpow.pop %v3313
        %v3315 = vmul.f32 %v3310, 1.442695
        %v3316 = vpow.pop %v3315
        %v3317 = vadd.f32 %v3312, 1.0
        %v3318 = vadd.f32 %v3314, 1.0
        %v3319 = vadd.f32 %v3316, 1.0
        %v3320 = vrcp.pop %v3317
        %v3321 = vmul.f32 1.0, %v3320
        %v3322 = vrcp.pop %v3318
        %v3323 = vmul.f32 1.0, %v3322
        %v3324 = vrcp.pop %v3319
        %v3325 = vmul.f32 1.0, %v3324
        %v3326 = vmul.f32 %v3292, %v3321
        %v3327 = vmul.f32 %v3295, %v3323
        %v3328 = vmul.f32 %v3300, %v3325
        %v3329 = vpack.c.bf16 %v3327, %v3326
        %v3330 = vpack.c.bf16 %v3328, %v3328
        %s3331 = scalar_lea.vmem %s15, 64
        %v3332 = vld [vmem:[%s3331] sm:$0xf]
        %v3333 = vld [vmem:[%s3331 + $0x4] sm:$0xf]
        %v3334 = vld [vmem:[%s3331 + $0x8] sm:$0xf]
        %v3335 = vld [vmem:[%s3331 + $0xc] sm:$0xf]
        %v3336 = vld [vmem:[%s3331 + $0x10] sm:$0xf]
        %v3337 = vld [vmem:[%s3331 + $0x14] sm:$0xf]
        %v3338 = vld [vmem:[%s3331 + $0x18] sm:$0xf]
        %v3339 = vld [vmem:[%s3331 + $0x1c] sm:$0xf]
        %v3340 = vld [vmem:[%s3331 + $0x20] sm:$0xf]
        %v3341 = vld [vmem:[%s3331 + $0x24] sm:$0xf]
        %v3342 = vld [vmem:[%s3331 + $0x28] sm:$0xf]
        %v3343 = vld [vmem:[%s3331 + $0x2c] sm:$0xf]
        %v3344 = vld [vmem:[%s3331 + $0x30] sm:$0xf]
        %v3345 = vld [vmem:[%s3331 + $0x34] sm:$0xf]
        %v3346 = vld [vmem:[%s3331 + $0x38] sm:$0xf]
        %v3347 = vld [vmem:[%s3331 + $0x3c] sm:$0xf]
        %v3364 = vunpack.c.l.b16 %v3332
        %v3365 = vunpack.c.l.b16 %v3333
        %v3366 = vunpack.c.l.b16 %v3334
        %v3367 = vunpack.c.l.b16 %v3335
        %v3368 = vunpack.c.l.b16 %v3336
        %v3369 = vunpack.c.l.b16 %v3337
        %v3370 = vunpack.c.l.b16 %v3338
        %v3371 = vunpack.c.l.b16 %v3339
        %v3372 = vunpack.c.l.b16 %v3340
        %v3373 = vunpack.c.l.b16 %v3341
        %v3374 = vunpack.c.l.b16 %v3342
        %v3375 = vunpack.c.l.b16 %v3343
        %v3376 = vunpack.c.l.b16 %v3344
        %v3377 = vunpack.c.l.b16 %v3345
        %v3378 = vunpack.c.l.b16 %v3346
        %v3379 = vunpack.c.l.b16 %v3347
        %v3380 = vpack.c.b16 %v3365, %v3364
        %v3381 = vpack.c.b16 %v3367, %v3366
        %v3382 = vpack.c.b16 %v3369, %v3368
        %v3383 = vpack.c.b16 %v3371, %v3370
        %v3384 = vpack.c.b16 %v3373, %v3372
        %v3385 = vpack.c.b16 %v3375, %v3374
        %v3386 = vpack.c.b16 %v3377, %v3376
        %v3387 = vpack.c.b16 %v3379, %v3378
        %3396 = vmatprep.subr.bf16.mxu0 0
        %3397 = vmatpush1.bf16.msra.mxu0 %v3380
        %3398 = vmatprep.subr.bf16.mxu0 0
        %3399 = vmatpush1.bf16.msra.mxu0 %v3381
        %3400 = vmatprep.subr.bf16.mxu0 0
        %3401 = vmatpush1.bf16.msra.mxu0 %v3382
        %3402 = vmatprep.subr.bf16.mxu0 0
        %3403 = vmatpush1.bf16.msra.mxu0 %v3383
        %3404 = vmatprep.subr.bf16.mxu0 0
        %3405 = vmatpush1.bf16.msra.mxu0 %v3384
        %3406 = vmatprep.subr.bf16.mxu0 0
        %3407 = vmatpush1.bf16.msra.mxu0 %v3385
        %3408 = vmatprep.subr.bf16.mxu0 0
        %3409 = vmatpush1.bf16.msra.mxu0 %v3386
        %3410 = vmatprep.subr.bf16.mxu0 0
        %3411 = vmatpush1.bf16.msra.mxu0 %v3387
        %3412 = vmatprep.subr.bf16.mxu0 0
        %3413 = vmatpush1.bf16.msra.mxu0 0
        %3414 = vmatprep.subr.bf16.mxu0 0
        %3415 = vmatpush1.bf16.msra.mxu0 0
        %3416 = vmatprep.subr.bf16.mxu0 0
        %3417 = vmatpush1.bf16.msra.mxu0 0
        %3418 = vmatprep.subr.bf16.mxu0 0
        %3419 = vmatpush1.bf16.msra.mxu0 0
        %3420 = vmatprep.subr.bf16.mxu0 0
        %3421 = vmatpush1.bf16.msra.mxu0 0
        %3422 = vmatprep.subr.bf16.mxu0 0
        %3423 = vmatpush1.bf16.msra.mxu0 0
        %3424 = vmatprep.subr.bf16.mxu0 0
        %3425 = vmatpush1.bf16.msra.mxu0 0
        %3426 = vmatprep.subr.bf16.mxu0 0
        %3427 = vmatpush1.bf16.msra.mxu0 0
        %3428 = vmatprep.mubr.bf16.mxu0 0
        %3429 = vmatmul.mubr.bf16.gmra.mrb[0].mxu0 %v3329
        %v3430 = vpop.f32.mrb[0].mxu0
        %v3431 = vadd.f32 0.0, %v3430
        %v3432 = vpop.f32.mrb[0].mxu0
        %v3433 = vpop.f32.mrb[0].mxu0
        %v3434 = vpop.f32.mrb[0].mxu0
        %3435 = vmatprep.mubr.bf16.mxu0 0
        %3436 = vmatmul.mubr.bf16.gmra.mrb[0].mxu0 %v3330
        %v3437 = vpop.f32.mrb[0].mxu0
        %v3438 = vpop.f32.mrb[0].mxu0
        %v3439 = vpop.f32.mrb[0].mxu0
        %v3440 = vpop.f32.mrb[0].mxu0
        %3441 = vdwg.mxu0
        %v3442 = vadd.f32 %v3163, %v3431
        %s3443 = scalar_lea.vmem %s16, 1
        %v3444 = vld [vmem:[%s3443] sm:$0x1]
        %v3445 = vunpack.c.l.bf16 %v3444
        %v3446 = vlaneseq
        %v3447 = vshrl.u32 %v3446, 7
        %v3448 = vsub.s32 0, %v3447
        %v3449 = vrot.slane %v3445, %v3448
        %v3450 = vadd.f32 %v3442, %v3449
        %v3451 = vld [vmem:[%s17] sm:$0x1]
        %v3452 = vld [vmem:[%s18] sm:$0x1]
        %v3453 = vsel %vm974, %v3450, 0.0
        %3454 = vadd.xlane.f32.xlu0 %v3453
        %v3455 = vpop.xlane.xlu0 %3454
        %v3456 = vmul.f32 %v3455, %v978
        %v3457 = vsub.f32 %v3450, %v3456
        %v3458 = vmul.f32 %v3457, %v3457
        %v3459 = vsel %vm974, %v3458, 0.0
        %3460 = vadd.xlane.f32.xlu0 %v3459
        %v3461 = vpop.xlane.xlu0 %3460
        %v3462 = vmul.f32 %v3461, %v978
        %v3463 = vadd.f32 %v3462, 1e-05
        %v3464 = vrsqrt.pop %v3463
        %v3465 = vmul.f32 %v3457, %v3464
        %v3466 = vunpack.c.l.bf16 %v3451
        %v3467 = vmul.f32 %v3465, %v3466
        %v3468 = vunpack.c.l.bf16 %v3452
        %v3469 = vadd.f32 %v3467, %v3468
        %v3470 = vpack.c.bf16 %v3469, %v3469
        %v3471 = vld [vmem:[%s19] sm:$0xf]
        %v3472 = vld [vmem:[%s19 + $0x4] sm:$0xf]
        %v3473 = vld [vmem:[%s19 + $0x8] sm:$0xf]
        %v3474 = vld [vmem:[%s19 + $0xc] sm:$0xf]
        %v3479 = vunpack.c.l.b16 %v3471
        %v3480 = vunpack.c.l.b16 %v3472
        %v3481 = vunpack.c.l.b16 %v3473
        %v3482 = vunpack.c.l.b16 %v3474
        %v3483 = vpack.c.b16 %v3480, %v3479
        %v3484 = vpack.c.b16 %v3482, %v3481
        %v3488 = vsel %vm967, %v3470, 0
        %3490 = vmatprep.subr.bf16.mxu0 0
        %3491 = vmatpush1.bf16.msra.mxu0 %v3483
        %3492 = vmatprep.subr.bf16.mxu0 0
        %3493 = vmatpush1.bf16.msra.mxu0 %v3484
        %3494 = vmatprep.subr.bf16.mxu0 0
        %3495 = vmatpush1.bf16.msra.mxu0 0
        %3496 = vmatprep.subr.bf16.mxu0 0
        %3497 = vmatpush1.bf16.msra.mxu0 0
        %3498 = vmatprep.subr.bf16.mxu0 0
        %3499 = vmatpush1.bf16.msra.mxu0 0
        %3500 = vmatprep.subr.bf16.mxu0 0
        %3501 = vmatpush1.bf16.msra.mxu0 0
        %3502 = vmatprep.subr.bf16.mxu0 0
        %3503 = vmatpush1.bf16.msra.mxu0 0
        %3504 = vmatprep.subr.bf16.mxu0 0
        %3505 = vmatpush1.bf16.msra.mxu0 0
        %3506 = vmatprep.subr.bf16.mxu0 0
        %3507 = vmatpush1.bf16.msra.mxu0 0
        %3508 = vmatprep.subr.bf16.mxu0 0
        %3509 = vmatpush1.bf16.msra.mxu0 0
        %3510 = vmatprep.subr.bf16.mxu0 0
        %3511 = vmatpush1.bf16.msra.mxu0 0
        %3512 = vmatprep.subr.bf16.mxu0 0
        %3513 = vmatpush1.bf16.msra.mxu0 0
        %3514 = vmatprep.subr.bf16.mxu0 0
        %3515 = vmatpush1.bf16.msra.mxu0 0
        %3516 = vmatprep.subr.bf16.mxu0 0
        %3517 = vmatpush1.bf16.msra.mxu0 0
        %3518 = vmatprep.subr.bf16.mxu0 0
        %3519 = vmatpush1.bf16.msra.mxu0 0
        %3520 = vmatprep.subr.bf16.mxu0 0
        %3521 = vmatpush1.bf16.msra.mxu0 0
        %3522 = vmatprep.mubr.bf16.mxu0 0
        %3523 = vmatmul.mubr.bf16.gmra.mrb[0].mxu0 %v3488
        %v3524 = vpop.f32.mrb[0].mxu0
        %v3525 = vadd.f32 0.0, %v3524
        %v3526 = vpop.f32.mrb[0].mxu0
        %v3527 = vpop.f32.mrb[0].mxu0
        %v3528 = vpop.f32.mrb[0].mxu0
        %3529 = vdwg.mxu0
        %v3530 = vld [vmem:[%s20] sm:$0xff]
        %v3531 = vld [vmem:[%s20 + $0x8] sm:$0xff]
        %v3532 = vld [vmem:[%s21] sm:$0x1]
        %v3534 = vsel %vm1865, %v3525, 0
        %3536 = vmatprep.subr.mxu0 0.0
        %3537 = vmatpush1.msra.mxu0 %v3530
        %3538 = vmatprep.subr.mxu0 0.0
        %3539 = vmatpush1.msra.mxu0 %v3531
        %3540 = vmatprep.subr.mxu0 0.0
        %3541 = vmatpush1.msra.mxu0 0.0
        %3542 = vmatprep.subr.mxu0 0.0
        %3543 = vmatpush1.msra.mxu0 0.0
        %3544 = vmatprep.subr.mxu0 0.0
        %3545 = vmatpush1.msra.mxu0 0.0
        %3546 = vmatprep.subr.mxu0 0.0
        %3547 = vmatpush1.msra.mxu0 0.0
        %3548 = vmatprep.subr.mxu0 0.0
        %3549 = vmatpush1.msra.mxu0 0.0
        %3550 = vmatprep.subr.mxu0 0.0
        %3551 = vmatpush1.msra.mxu0 0.0
        %3552 = vmatprep.subr.mxu0 0.0
        %3553 = vmatpush1.msra.mxu0 0.0
        %3554 = vmatprep.subr.mxu0 0.0
        %3555 = vmatpush1.msra.mxu0 0.0
        %3556 = vmatprep.subr.mxu0 0.0
        %3557 = vmatpush1.msra.mxu0 0.0
        %3558 = vmatprep.subr.mxu0 0.0
        %3559 = vmatpush1.msra.mxu0 0.0
        %3560 = vmatprep.subr.mxu0 0.0
        %3561 = vmatpush1.msra.mxu0 0.0
        %3562 = vmatprep.subr.mxu0 0.0
        %3563 = vmatpush1.msra.mxu0 0.0
        %3564 = vmatprep.subr.mxu0 0.0
        %3565 = vmatpush1.msra.mxu0 0.0
        %3566 = vmatprep.subr.mxu0 0.0
        %3567 = vmatpush1.msra.mxu0 0.0
        %3568 = vmatprep.subr.mxu0 0.0
        %3569 = vmatpush1.msra.mxu0 0.0
        %3570 = vmatprep.subr.mxu0 0.0
        %3571 = vmatpush1.msra.mxu0 0.0
        %3572 = vmatprep.subr.mxu0 0.0
        %3573 = vmatpush1.msra.mxu0 0.0
        %3574 = vmatprep.subr.mxu0 0.0
        %3575 = vmatpush1.msra.mxu0 0.0
        %3576 = vmatprep.subr.mxu0 0.0
        %3577 = vmatpush1.msra.mxu0 0.0
        %3578 = vmatprep.subr.mxu0 0.0
        %3579 = vmatpush1.msra.mxu0 0.0
        %3580 = vmatprep.subr.mxu0 0.0
        %3581 = vmatpush1.msra.mxu0 0.0
        %3582 = vmatprep.subr.mxu0 0.0
        %3583 = vmatpush1.msra.mxu0 0.0
        %3584 = vmatprep.subr.mxu0 0.0
        %3585 = vmatpush1.msra.mxu0 0.0
        %3586 = vmatprep.subr.mxu0 0.0
        %3587 = vmatpush1.msra.mxu0 0.0
        %3588 = vmatprep.subr.mxu0 0.0
        %3589 = vmatpush1.msra.mxu0 0.0
        %3590 = vmatprep.subr.mxu0 0.0
        %3591 = vmatpush1.msra.mxu0 0.0
        %3592 = vmatprep.subr.mxu0 0.0
        %3593 = vmatpush1.msra.mxu0 0.0
        %3594 = vmatprep.subr.mxu0 0.0
        %3595 = vmatpush1.msra.mxu0 0.0
        %3596 = vmatprep.subr.mxu0 0.0
        %3597 = vmatpush1.msra.mxu0 0.0
        %3598 = vmatprep.subr.mxu0 0.0
        %3599 = vmatpush1.msra.mxu0 0.0
        %3600 = vmatprep.mubr.f32.mxu0 0.0
        %3601 = vmatmul.mubr.f32.gmra.mrb[0].mxu0 %v3534
        %v3602 = vpop.f32.mrb[0].mxu0
        %v3603 = vadd.f32 %v3532, %v3602
        %v3604 = vpop.f32.mrb[0].mxu0
        %3605 = vdwg.mxu0
        %v3606 = vmax.f32 %v3603, 0.0
        %v3607 = vld [vmem:[%s22] sm:$0xff]
        %v3608 = vld [vmem:[%s22 + $0x8] sm:$0xff]
        %v3609 = vld [vmem:[%s22 + $0x10] sm:$0xff]
        %v3610 = vld [vmem:[%s22 + $0x18] sm:$0xff]
        %v3611 = vld [vmem:[%s23] sm:$0x1]
        %v3613 = vsel %vm967, %v3606, 0
        %3615 = vmatprep.subr.mxu0 0.0
        %3616 = vmatpush1.msra.mxu0 %v3607
        %3617 = vmatprep.subr.mxu0 0.0
        %3618 = vmatpush1.msra.mxu0 %v3608
        %3619 = vmatprep.subr.mxu0 0.0
        %3620 = vmatpush1.msra.mxu0 %v3609
        %3621 = vmatprep.subr.mxu0 0.0
        %3622 = vmatpush1.msra.mxu0 %v3610
        %3623 = vmatprep.subr.mxu0 0.0
        %3624 = vmatpush1.msra.mxu0 0.0
        %3625 = vmatprep.subr.mxu0 0.0
        %3626 = vmatpush1.msra.mxu0 0.0
        %3627 = vmatprep.subr.mxu0 0.0
        %3628 = vmatpush1.msra.mxu0 0.0
        %3629 = vmatprep.subr.mxu0 0.0
        %3630 = vmatpush1.msra.mxu0 0.0
        %3631 = vmatprep.subr.mxu0 0.0
        %3632 = vmatpush1.msra.mxu0 0.0
        %3633 = vmatprep.subr.mxu0 0.0
        %3634 = vmatpush1.msra.mxu0 0.0
        %3635 = vmatprep.subr.mxu0 0.0
        %3636 = vmatpush1.msra.mxu0 0.0
        %3637 = vmatprep.subr.mxu0 0.0
        %3638 = vmatpush1.msra.mxu0 0.0
        %3639 = vmatprep.subr.mxu0 0.0
        %3640 = vmatpush1.msra.mxu0 0.0
        %3641 = vmatprep.subr.mxu0 0.0
        %3642 = vmatpush1.msra.mxu0 0.0
        %3643 = vmatprep.subr.mxu0 0.0
        %3644 = vmatpush1.msra.mxu0 0.0
        %3645 = vmatprep.subr.mxu0 0.0
        %3646 = vmatpush1.msra.mxu0 0.0
        %3647 = vmatprep.subr.mxu0 0.0
        %3648 = vmatpush1.msra.mxu0 0.0
        %3649 = vmatprep.subr.mxu0 0.0
        %3650 = vmatpush1.msra.mxu0 0.0
        %3651 = vmatprep.subr.mxu0 0.0
        %3652 = vmatpush1.msra.mxu0 0.0
        %3653 = vmatprep.subr.mxu0 0.0
        %3654 = vmatpush1.msra.mxu0 0.0
        %3655 = vmatprep.subr.mxu0 0.0
        %3656 = vmatpush1.msra.mxu0 0.0
        %3657 = vmatprep.subr.mxu0 0.0
        %3658 = vmatpush1.msra.mxu0 0.0
        %3659 = vmatprep.subr.mxu0 0.0
        %3660 = vmatpush1.msra.mxu0 0.0
        %3661 = vmatprep.subr.mxu0 0.0
        %3662 = vmatpush1.msra.mxu0 0.0
        %3663 = vmatprep.subr.mxu0 0.0
        %3664 = vmatpush1.msra.mxu0 0.0
        %3665 = vmatprep.subr.mxu0 0.0
        %3666 = vmatpush1.msra.mxu0 0.0
        %3667 = vmatprep.subr.mxu0 0.0
        %3668 = vmatpush1.msra.mxu0 0.0
        %3669 = vmatprep.subr.mxu0 0.0
        %3670 = vmatpush1.msra.mxu0 0.0
        %3671 = vmatprep.subr.mxu0 0.0
        %3672 = vmatpush1.msra.mxu0 0.0
        %3673 = vmatprep.subr.mxu0 0.0
        %3674 = vmatpush1.msra.mxu0 0.0
        %3675 = vmatprep.subr.mxu0 0.0
        %3676 = vmatpush1.msra.mxu0 0.0
        %3677 = vmatprep.subr.mxu0 0.0
        %3678 = vmatpush1.msra.mxu0 0.0
        %3679 = vmatprep.mubr.f32.mxu0 0.0
        %3680 = vmatmul.mubr.f32.gmra.mrb[0].mxu0 %v3613
        %v3681 = vpop.f32.mrb[0].mxu0
        %v3682 = vadd.f32 %v3611, %v3681
        %v3683 = vpop.f32.mrb[0].mxu0
        %3684 = vdwg.mxu0
        %v3685 = vmax.f32 %v3682, 0.0
        %v3686 = vld [vmem:[%s24] sm:$0xff]
        %v3687 = vld [vmem:[%s24 + $0x8] sm:$0xff]
        %v3688 = vld [vmem:[%s25] sm:$0x1]
        %v3690 = vsel %vm1865, %v3685, 0
        %3692 = vmatprep.subr.mxu0 0.0
        %3693 = vmatpush1.msra.mxu0 %v3686
        %3694 = vmatprep.subr.mxu0 0.0
        %3695 = vmatpush1.msra.mxu0 %v3687
        %3696 = vmatprep.subr.mxu0 0.0
        %3697 = vmatpush1.msra.mxu0 0.0
        %3698 = vmatprep.subr.mxu0 0.0
        %3699 = vmatpush1.msra.mxu0 0.0
        %3700 = vmatprep.subr.mxu0 0.0
        %3701 = vmatpush1.msra.mxu0 0.0
        %3702 = vmatprep.subr.mxu0 0.0
        %3703 = vmatpush1.msra.mxu0 0.0
        %3704 = vmatprep.subr.mxu0 0.0
        %3705 = vmatpush1.msra.mxu0 0.0
        %3706 = vmatprep.subr.mxu0 0.0
        %3707 = vmatpush1.msra.mxu0 0.0
        %3708 = vmatprep.subr.mxu0 0.0
        %3709 = vmatpush1.msra.mxu0 0.0
        %3710 = vmatprep.subr.mxu0 0.0
        %3711 = vmatpush1.msra.mxu0 0.0
        %3712 = vmatprep.subr.mxu0 0.0
        %3713 = vmatpush1.msra.mxu0 0.0
        %3714 = vmatprep.subr.mxu0 0.0
        %3715 = vmatpush1.msra.mxu0 0.0
        %3716 = vmatprep.subr.mxu0 0.0
        %3717 = vmatpush1.msra.mxu0 0.0
        %3718 = vmatprep.subr.mxu0 0.0
        %3719 = vmatpush1.msra.mxu0 0.0
        %3720 = vmatprep.subr.mxu0 0.0
        %3721 = vmatpush1.msra.mxu0 0.0
        %3722 = vmatprep.subr.mxu0 0.0
        %3723 = vmatpush1.msra.mxu0 0.0
        %3724 = vmatprep.subr.mxu0 0.0
        %3725 = vmatpush1.msra.mxu0 0.0
        %3726 = vmatprep.subr.mxu0 0.0
        %3727 = vmatpush1.msra.mxu0 0.0
        %3728 = vmatprep.subr.mxu0 0.0
        %3729 = vmatpush1.msra.mxu0 0.0
        %3730 = vmatprep.subr.mxu0 0.0
        %3731 = vmatpush1.msra.mxu0 0.0
        %3732 = vmatprep.subr.mxu0 0.0
        %3733 = vmatpush1.msra.mxu0 0.0
        %3734 = vmatprep.subr.mxu0 0.0
        %3735 = vmatpush1.msra.mxu0 0.0
        %3736 = vmatprep.subr.mxu0 0.0
        %3737 = vmatpush1.msra.mxu0 0.0
        %3738 = vmatprep.subr.mxu0 0.0
        %3739 = vmatpush1.msra.mxu0 0.0
        %3740 = vmatprep.subr.mxu0 0.0
        %3741 = vmatpush1.msra.mxu0 0.0
        %3742 = vmatprep.subr.mxu0 0.0
        %3743 = vmatpush1.msra.mxu0 0.0
        %3744 = vmatprep.subr.mxu0 0.0
        %3745 = vmatpush1.msra.mxu0 0.0
        %3746 = vmatprep.subr.mxu0 0.0
        %3747 = vmatpush1.msra.mxu0 0.0
        %3748 = vmatprep.subr.mxu0 0.0
        %3749 = vmatpush1.msra.mxu0 0.0
        %3750 = vmatprep.subr.mxu0 0.0
        %3751 = vmatpush1.msra.mxu0 0.0
        %3752 = vmatprep.subr.mxu0 0.0
        %3753 = vmatpush1.msra.mxu0 0.0
        %3754 = vmatprep.subr.mxu0 0.0
        %3755 = vmatpush1.msra.mxu0 0.0
        %3756 = vmatprep.mubr.f32.mxu0 0.0
        %3757 = vmatmul.mubr.f32.gmra.mrb[0].mxu0 %v3690
        %v3758 = vpop.f32.mrb[0].mxu0
        %v3759 = vadd.f32 %v3688, %v3758
        %v3760 = vpop.f32.mrb[0].mxu0
        %3761 = vdwg.mxu0
        %3762 = vst [vmem:[%s783] sm:$0x1] %v3759
        %s3763 = sand.u32 %s599, 1
        %s3764 = scalar_lea.sflag [#allocation3], %s3763
        %s3765 = sand.u32 %s599, 1
        %s3766 = scalar_lea.vmem [#allocation2], %s3765
        // Predicated region
        $region125: #{traffic_light_classifier_forward.1} parent=123 // pred_check
          %p3767 = pneg %p609
        $region126: #{traffic_light_classifier_forward.1} parent=123 // pred_check_branch
          %3769 = sbr.rel (%p3767) target = $region128
        $region127: #{traffic_light_classifier_forward.1} parent=123 // pred_region
          %s3771 = ssub.s32 16, 16
          %3772 = vsyncadd %s3764, %s3771
          %s3773 = smul.addr %s40, 16
          %s3774 = scalar_lea.hbm %s26, %s3773
          %s3776 = sshll.u32 %s3766, 4
          %s3777 = int_to_ptr.vmem [resolvable:$true] %s3776
          %3779 = dma.vmem_to_hbm [thread:$0]  %s3777, 16, %s3774, %s3764
        $region128: #{traffic_light_classifier_forward.1} parent=123 // pred_fallthru
          _
      $region124: #{traffic_light_classifier_forward.1} parent=5 // pred_fallthru
        _
      %p3780 = scmp.le.s32.totalorder 2, %s35
      // Predicated region
      $region129: #{traffic_light_classifier_forward.1} parent=5 // pred_check
        %p3781 = pneg %p3780
      $region130: #{traffic_light_classifier_forward.1} parent=5 // pred_check_branch
        %3783 = sbr.rel (%p3781) target = $region132
      $region131: #{traffic_light_classifier_forward.1} parent=5 // pred_region
        %s3784 = ssub.s32 %s35, 2
        // Predicated region
        $region133: #{traffic_light_classifier_forward.1} parent=131 // pred_check
          %p3785 = pneg %p615
        $region134: #{traffic_light_classifier_forward.1} parent=131 // pred_check_branch
          %3787 = sbr.rel (%p3785) target = $region136
        $region135: #{traffic_light_classifier_forward.1} parent=131 // pred_region
          %s3788 = sand.u32 %s600, 1
          %s3789 = scalar_lea.sflag [#allocation3], %s3788
          %s3790 = sand.u32 %s600, 1
          %s3791 = scalar_lea.vmem [#allocation2], %s3790
          %3792 = dma.done %s3789, 16
        $region136: #{traffic_light_classifier_forward.1} parent=131 // pred_fallthru
          _
      $region132: #{traffic_light_classifier_forward.1} parent=5 // pred_fallthru
        _
    $region6: #{traffic_light_classifier_forward.1} parent=1 // loop_footer
      %s39 = sadd.s32 1, %s35
    $region7: #{traffic_light_classifier_forward.1} parent=1 // loop_footer_branch
      %34 = sbr.rel target = $region3
    $region8: #{traffic_light_classifier_forward.1} parent=1 // loop_exit
      _
    %3793 = vsyncpa [#allocation3], 1
    %s3794 = scalar_lea.sflag [#allocation3], 1
    %3795 = vsyncpa %s3794, 1

</llo_original>
